<compile_context>
chip_gen: v7x
topology: tpu7x:2x2x1
jax: 0.10.0
libtpu: 0.0.40
codegen_flags: <defaults>
</compile_context>

<pallas_src>
import jax
import jax.numpy as jnp
from jax.experimental import pallas as pl
from jax.experimental.pallas import tpu as pltpu


NPAD = 128       # lane-padded output width of every kernel (channels / features)
KPAD1 = 128      # conv1 contraction: 3*5*5 = 75  -> 128
KPAD2 = 256      # conv2 contraction: 6*5*5 = 150 -> 256
VMEM_LIMIT = 32 * 1024 * 1024


# ----------------------------- Pallas kernels ------------------------------

def _conv_relu_pool_kernel(x_ref, w_ref, b_ref, o_ref):
    # x_ref: (1, 4, G, Kpad) bf16 -- axis 1 = the four 2x2 pool-window positions
    # w_ref: (Kpad, 128) bf16; b_ref: (1, 128) f32; o_ref: (1, G, 128) f32
    w = w_ref[...]
    m = jnp.dot(x_ref[0, 0], w, preferred_element_type=jnp.float32)
    for i in range(1, 4):  # unrolled at trace time
        m = jnp.maximum(m, jnp.dot(x_ref[0, i], w,
                                   preferred_element_type=jnp.float32))
    # relu(max_i(x_i @ w) + b) == max_i(relu(x_i @ w + b)):  bias shared, relu monotone
    o_ref[0] = jnp.maximum(m + b_ref[...], 0.0)


def conv_relu_pool(patches, w, b):
    """patches: (B, 4, G, Kpad) bf16; w: (Kpad, 128) bf16; b: (1, 128) f32.
    Returns pooled, ReLU'd conv output (B, G, 128) f32 (channels lane-padded)."""
    B, _, G, Kp = patches.shape
    N = w.shape[1]
    return pl.pallas_call(
        _conv_relu_pool_kernel,
        out_shape=jax.ShapeDtypeStruct((B, G, N), jnp.float32),
        grid=(B,),
        in_specs=[
            pl.BlockSpec((1, 4, G, Kp), lambda i: (i, 0, 0, 0)),
            pl.BlockSpec((Kp, N), lambda i: (0, 0)),
            pl.BlockSpec((1, N), lambda i: (0, 0)),
        ],
        out_specs=pl.BlockSpec((1, G, N), lambda i: (i, 0, 0)),
        compiler_params=pltpu.CompilerParams(
            dimension_semantics=("parallel",),
            vmem_limit_bytes=VMEM_LIMIT,
        ),
    )(patches, w, b)


def _fc_stack_kernel(x_ref, w1_ref, b1_ref, w2_ref, b2_ref, w3_ref, b3_ref, o_ref):
    # fc1 -> relu -> fc2 -> relu -> fc3, all resident in VMEM.
    h = jnp.dot(x_ref[...], w1_ref[...], preferred_element_type=jnp.float32)
    h = jnp.maximum(h + b1_ref[...], 0.0)
    h = jnp.dot(h.astype(w2_ref.dtype), w2_ref[...],
                preferred_element_type=jnp.float32)
    h = jnp.maximum(h + b2_ref[...], 0.0)
    h = jnp.dot(h.astype(w3_ref.dtype), w3_ref[...],
                preferred_element_type=jnp.float32)
    o_ref[...] = h + b3_ref[...]


def fc_stack(x, w1, b1, w2, b2, w3, b3):
    """x: (B, 3200) bf16.  Returns (B, 128) f32 (logits in lanes 0..9)."""
    B = x.shape[0]
    vmem = pl.BlockSpec(memory_space=pltpu.MemorySpace.VMEM)
    return pl.pallas_call(
        _fc_stack_kernel,
        out_shape=jax.ShapeDtypeStruct((B, NPAD), jnp.float32),
        in_specs=[vmem] * 7,
        out_specs=vmem,
        compiler_params=pltpu.CompilerParams(vmem_limit_bytes=VMEM_LIMIT),
    )(x, w1, b1, w2, b2, w3, b3)


# ------------------------------- JAX glue ----------------------------------

def _im2col_pooled(x, K):
    """x: (B, H, W, C) NHWC.  Valid conv (stride 1) followed by 2x2/2 pool.

    Returns (patches, PH, PW) where patches: (B, 4, PH*PW, K*K*C).
    Axis 1 indexes the four positions inside each 2x2 pooling window; axis 2
    the pooled output pixel (ph, pw); last-axis column order is (kh, kw, cin),
    matching the prepared conv weight layout."""
    B, H, W, C = x.shape
    OH, OW = H - K + 1, W - K + 1
    PH, PW = OH // 2, OW // 2
    cols = [x[:, i:i + OH, j:j + OW, :] for i in range(K) for j in range(K)]
    p = jnp.concatenate(cols, axis=-1)                  # (B, OH, OW, K*K*C)
    p = p.reshape(B, PH, 2, PW, 2, K * K * C)
    p = p.transpose(0, 2, 4, 1, 3, 5)                   # (B, wy, wx, PH, PW, KKC)
    return p.reshape(B, 4, PH * PW, K * K * C), PH, PW


def _pad_k_bf16(p, kpad):
    pad = kpad - p.shape[-1]
    if pad:
        p = jnp.pad(p, ((0, 0), (0, 0), (0, 0), (0, pad)))
    return p.astype(jnp.bfloat16)


def init_params(key):
    """Deterministic init mimicking PyTorch's default U(-1/sqrt(fan_in), +)."""
    def uniform(k, shape, fan_in):
        bound = 1.0 / float(fan_in) ** 0.5
        return jax.random.uniform(k, shape, jnp.float32, -bound, bound)

    keys = jax.random.split(key, 10)
    return {
        "conv1_w": uniform(keys[0], (6, 3, 5, 5), 3 * 5 * 5),
        "conv1_b": uniform(keys[1], (6,), 3 * 5 * 5),
        "conv2_w": uniform(keys[2], (16, 6, 5, 5), 6 * 5 * 5),
        "conv2_b": uniform(keys[3], (16,), 6 * 5 * 5),
        "fc1_w": uniform(keys[4], (120, 16 * 5 * 5), 16 * 5 * 5),
        "fc1_b": uniform(keys[5], (120,), 16 * 5 * 5),
        "fc2_w": uniform(keys[6], (84, 120), 120),
        "fc2_b": uniform(keys[7], (84,), 120),
        "fc3_w": uniform(keys[8], (10, 84), 84),
        "fc3_b": uniform(keys[9], (10,), 84),
    }


def prepare_params(params):
    """One-time re-layout of the PyTorch-style parameters into padded,
    lane-dense, kernel-ready matrices (done once, off the forward path)."""
    def pad_bias(b):
        return jnp.pad(b, (0, NPAD - b.shape[0])).reshape(1, NPAD).astype(jnp.float32)

    def conv_w(w, kpad):
        cout, cin, k, _ = w.shape
        # rows ordered (kh, kw, cin) to match _im2col_pooled's column order
        wm = w.transpose(2, 3, 1, 0).reshape(k * k * cin, cout)
        wm = jnp.pad(wm, ((0, kpad - k * k * cin), (0, NPAD - cout)))
        return wm.astype(jnp.bfloat16)

    # fc1: (120, 400) with input order (c, h, w)  ->  expanded to the
    # channel-padded NHWC flatten order (h, w, c_pad) of the conv2 output.
    w1 = params["fc1_w"].reshape(120, 16, 5, 5).transpose(2, 3, 1, 0)  # (5,5,16,120)
    w1 = jnp.pad(w1, ((0, 0), (0, 0), (0, NPAD - 16), (0, NPAD - 120)))
    w1 = w1.reshape(5 * 5 * NPAD, NPAD).astype(jnp.bfloat16)           # (3200, 128)

    w2 = jnp.pad(params["fc2_w"].T, ((0, NPAD - 120), (0, NPAD - 84))).astype(jnp.bfloat16)
    w3 = jnp.pad(params["fc3_w"].T, ((0, NPAD - 84), (0, NPAD - 10))).astype(jnp.bfloat16)

    return {
        "conv1_w": conv_w(params["conv1_w"], KPAD1), "conv1_b": pad_bias(params["conv1_b"]),
        "conv2_w": conv_w(params["conv2_w"], KPAD2), "conv2_b": pad_bias(params["conv2_b"]),
        "fc1_w": w1, "fc1_b": pad_bias(params["fc1_b"]),
        "fc2_w": w2, "fc2_b": pad_bias(params["fc2_b"]),
        "fc3_w": w3, "fc3_b": pad_bias(params["fc3_b"]),
    }


@jax.jit
def forward(prep, x):
    """x: (B, 3, 32, 32) float32, NCHW (PyTorch layout)."""
    B = x.shape[0]
    x = x.transpose(0, 2, 3, 1)                                    # NHWC, once
    # conv1 + ReLU + 2x2 maxpool  (single fused Pallas kernel)
    p1, ph1, pw1 = _im2col_pooled(x, 5)                            # (B,4,196,75)
    y1 = conv_relu_pool(_pad_k_bf16(p1, KPAD1),
                        prep["conv1_w"], prep["conv1_b"])          # (B,196,128)
    # conv2 + ReLU + 2x2 maxpool
    x2 = y1.reshape(B, ph1, pw1, NPAD)[..., :6]                    # (B,14,14,6)
    p2, ph2, pw2 = _im2col_pooled(x2, 5)                           # (B,4,25,150)
    y2 = conv_relu_pool(_pad_k_bf16(p2, KPAD2),
                        prep["conv2_w"], prep["conv2_b"])          # (B,25,128)
    # fc1 -> relu -> fc2 -> relu -> fc3  (single fused Pallas kernel)
    xf = y2.reshape(B, ph2 * pw2 * NPAD).astype(jnp.bfloat16)      # (B, 3200)
    out = fc_stack(xf, prep["fc1_w"], prep["fc1_b"],
                   prep["fc2_w"], prep["fc2_b"],
                   prep["fc3_w"], prep["fc3_b"])                   # (B, 128)
    return out[:, :10]


if __name__ == "__main__":
    key = jax.random.PRNGKey(0)
    pkey, xkey = jax.random.split(key)
    params = init_params(pkey)
    prep = prepare_params(params)
    # The module's flatten to 16*5*5 implies 3x32x32 inputs (LeNet on CIFAR-size).
    x = jax.random.normal(xkey, (2, 3, 32, 32), jnp.float32)
    out = forward(prep, x)
    jax.block_until_ready(out)
    assert out.shape == (2, 10) and out.dtype == jnp.float32
    print("KERNEL_OK")
</pallas_src>

<mosaic_0001>
module attributes {stable_mosaic.version = 11 : i64} {
  func.func @_conv_relu_pool_kernel(%arg0: i32, %arg1: memref<1x4x196x128xbf16, #tpu.memory_space<vmem>>, %arg2: memref<128x128xbf16, #tpu.memory_space<vmem>>, %arg3: memref<1x128xf32, #tpu.memory_space<vmem>>, %arg4: memref<1x196x128xf32, #tpu.memory_space<vmem>>) attributes {dimension_semantics = [#tpu.dimension_semantics<parallel>], iteration_bounds = array<i64: 2>, scalar_prefetch = 0 : i64, scratch_operands = 0 : i64, tpu.core_type = #tpu.core_type<tc>, window_params = [{transform_indices = @transform_0, window_bounds = array<i64: 1, 4, 196, 128>}, {pipeline_mode = #tpu.pipeline_mode<synchronous>, transform_indices = @transform_1, window_bounds = array<i64: 128, 128>}, {pipeline_mode = #tpu.pipeline_mode<synchronous>, transform_indices = @transform_2, window_bounds = array<i64: 1, 128>}, {transform_indices = @transform_3, window_bounds = array<i64: 1, 196, 128>}]} {
    %c0 = arith.constant 0 : index
    %c0_0 = arith.constant 0 : index
    %0 = vector.load %arg2[%c0, %c0_0] : memref<128x128xbf16, #tpu.memory_space<vmem>>, vector<128x128xbf16>
    %c0_1 = arith.constant 0 : index
    %c0_2 = arith.constant 0 : index
    %c0_3 = arith.constant 0 : index
    %c0_4 = arith.constant 0 : index
    %1 = vector.load %arg1[%c0_1, %c0_2, %c0_3, %c0_4] : memref<1x4x196x128xbf16, #tpu.memory_space<vmem>>, vector<1x1x196x128xbf16>
    %2 = vector.shape_cast %1 : vector<1x1x196x128xbf16> to vector<196x128xbf16>
    %cst = arith.constant dense<0.000000e+00> : vector<196x128xf32>
    %3 = tpu.matmul %2, %0, %cst {dimension_numbers = #tpu.dot_dimension_numbers<[1], [0], [0], [1], [0, 0, 1, 1], [], []>} : vector<196x128xbf16>, vector<128x128xbf16>, vector<196x128xf32> -> vector<196x128xf32>
    %c0_5 = arith.constant 0 : index
    %c1 = arith.constant 1 : index
    %c0_6 = arith.constant 0 : index
    %c0_7 = arith.constant 0 : index
    %4 = vector.load %arg1[%c0_5, %c1, %c0_6, %c0_7] : memref<1x4x196x128xbf16, #tpu.memory_space<vmem>>, vector<1x1x196x128xbf16>
    %5 = vector.shape_cast %4 : vector<1x1x196x128xbf16> to vector<196x128xbf16>
    %cst_8 = arith.constant dense<0.000000e+00> : vector<196x128xf32>
    %6 = tpu.matmul %5, %0, %cst_8 {dimension_numbers = #tpu.dot_dimension_numbers<[1], [0], [0], [1], [0, 0, 1, 1], [], []>} : vector<196x128xbf16>, vector<128x128xbf16>, vector<196x128xf32> -> vector<196x128xf32>
    %7 = arith.maximumf %3, %6 : vector<196x128xf32>
    %c0_9 = arith.constant 0 : index
    %c2 = arith.constant 2 : index
    %c0_10 = arith.constant 0 : index
    %c0_11 = arith.constant 0 : index
    %8 = vector.load %arg1[%c0_9, %c2, %c0_10, %c0_11] : memref<1x4x196x128xbf16, #tpu.memory_space<vmem>>, vector<1x1x196x128xbf16>
    %9 = vector.shape_cast %8 : vector<1x1x196x128xbf16> to vector<196x128xbf16>
    %cst_12 = arith.constant dense<0.000000e+00> : vector<196x128xf32>
    %10 = tpu.matmul %9, %0, %cst_12 {dimension_numbers = #tpu.dot_dimension_numbers<[1], [0], [0], [1], [0, 0, 1, 1], [], []>} : vector<196x128xbf16>, vector<128x128xbf16>, vector<196x128xf32> -> vector<196x128xf32>
    %11 = arith.maximumf %7, %10 : vector<196x128xf32>
    %c0_13 = arith.constant 0 : index
    %c3 = arith.constant 3 : index
    %c0_14 = arith.constant 0 : index
    %c0_15 = arith.constant 0 : index
    %12 = vector.load %arg1[%c0_13, %c3, %c0_14, %c0_15] : memref<1x4x196x128xbf16, #tpu.memory_space<vmem>>, vector<1x1x196x128xbf16>
    %13 = vector.shape_cast %12 : vector<1x1x196x128xbf16> to vector<196x128xbf16>
    %cst_16 = arith.constant dense<0.000000e+00> : vector<196x128xf32>
    %14 = tpu.matmul %13, %0, %cst_16 {dimension_numbers = #tpu.dot_dimension_numbers<[1], [0], [0], [1], [0, 0, 1, 1], [], []>} : vector<196x128xbf16>, vector<128x128xbf16>, vector<196x128xf32> -> vector<196x128xf32>
    %15 = arith.maximumf %11, %14 : vector<196x128xf32>
    %c0_17 = arith.constant 0 : index
    %c0_18 = arith.constant 0 : index
    %16 = vector.load %arg3[%c0_17, %c0_18] : memref<1x128xf32, #tpu.memory_space<vmem>>, vector<1x128xf32>
    %17 = vector.broadcast %16 : vector<1x128xf32> to vector<196x128xf32>
    %18 = arith.addf %15, %17 : vector<196x128xf32>
    %cst_19 = arith.constant 0.000000e+00 : f32
    %19 = vector.broadcast %cst_19 : f32 to vector<196x128xf32>
    %20 = arith.maximumf %18, %19 : vector<196x128xf32>
    %c0_20 = arith.constant 0 : index
    %c0_21 = arith.constant 0 : index
    %c0_22 = arith.constant 0 : index
    %21 = vector.load %arg4[%c0_20, %c0_21, %c0_22] : memref<1x196x128xf32, #tpu.memory_space<vmem>>, vector<1x196x128xf32>
    %22 = vector.shape_cast %21 : vector<1x196x128xf32> to vector<196x128xf32>
    %23 = vector.shape_cast %20 : vector<196x128xf32> to vector<1x196x128xf32>
    tpu.vector_store %arg4[%c0_20, %c0_21, %c0_22], %23 {strides = array<i32>} : memref<1x196x128xf32, #tpu.memory_space<vmem>>, vector<1x196x128xf32>,
    return
  }
  func.func @transform_0(%arg0: i32) -> (i32, i32, i32, i32) {
    %c0_i32 = arith.constant 0 : i32
    %c0_i32_0 = arith.constant 0 : i32
    %c0_i32_1 = arith.constant 0 : i32
    %c0_i32_2 = arith.constant 0 : i32
    return %arg0, %c0_i32, %c0_i32_0, %c0_i32_1 : i32, i32, i32, i32
  }
  func.func @transform_1(%arg0: i32) -> (i32, i32) {
    %c0_i32 = arith.constant 0 : i32
    %c0_i32_0 = arith.constant 0 : i32
    %c0_i32_1 = arith.constant 0 : i32
    return %c0_i32, %c0_i32_0 : i32, i32
  }
  func.func @transform_2(%arg0: i32) -> (i32, i32) {
    %c0_i32 = arith.constant 0 : i32
    %c0_i32_0 = arith.constant 0 : i32
    %c0_i32_1 = arith.constant 0 : i32
    return %c0_i32, %c0_i32_0 : i32, i32
  }
  func.func @transform_3(%arg0: i32) -> (i32, i32, i32) {
    %c0_i32 = arith.constant 0 : i32
    %c0_i32_0 = arith.constant 0 : i32
    %c0_i32_1 = arith.constant 0 : i32
    return %arg0, %c0_i32, %c0_i32_0 : i32, i32, i32
  }
}

module attributes {stable_mosaic.version = 11 : i64} {
  func.func @_conv_relu_pool_kernel(%arg0: i32, %arg1: memref<1x4x25x256xbf16, #tpu.memory_space<vmem>>, %arg2: memref<256x128xbf16, #tpu.memory_space<vmem>>, %arg3: memref<1x128xf32, #tpu.memory_space<vmem>>, %arg4: memref<1x25x128xf32, #tpu.memory_space<vmem>>) attributes {dimension_semantics = [#tpu.dimension_semantics<parallel>], iteration_bounds = array<i64: 2>, scalar_prefetch = 0 : i64, scratch_operands = 0 : i64, tpu.core_type = #tpu.core_type<tc>, window_params = [{transform_indices = @transform_0, window_bounds = array<i64: 1, 4, 25, 256>}, {pipeline_mode = #tpu.pipeline_mode<synchronous>, transform_indices = @transform_1, window_bounds = array<i64: 256, 128>}, {pipeline_mode = #tpu.pipeline_mode<synchronous>, transform_indices = @transform_2, window_bounds = array<i64: 1, 128>}, {transform_indices = @transform_3, window_bounds = array<i64: 1, 25, 128>}]} {
    %c0 = arith.constant 0 : index
    %c0_0 = arith.constant 0 : index
    %0 = vector.load %arg2[%c0, %c0_0] : memref<256x128xbf16, #tpu.memory_space<vmem>>, vector<256x128xbf16>
    %c0_1 = arith.constant 0 : index
    %c0_2 = arith.constant 0 : index
    %c0_3 = arith.constant 0 : index
    %c0_4 = arith.constant 0 : index
    %1 = vector.load %arg1[%c0_1, %c0_2, %c0_3, %c0_4] : memref<1x4x25x256xbf16, #tpu.memory_space<vmem>>, vector<1x1x25x256xbf16>
    %2 = vector.shape_cast %1 : vector<1x1x25x256xbf16> to vector<25x256xbf16>
    %cst = arith.constant dense<0.000000e+00> : vector<25x128xf32>
    %3 = tpu.matmul %2, %0, %cst {dimension_numbers = #tpu.dot_dimension_numbers<[1], [0], [0], [1], [0, 0, 1, 1], [], []>} : vector<25x256xbf16>, vector<256x128xbf16>, vector<25x128xf32> -> vector<25x128xf32>
    %c0_5 = arith.constant 0 : index
    %c1 = arith.constant 1 : index
    %c0_6 = arith.constant 0 : index
    %c0_7 = arith.constant 0 : index
    %4 = vector.load %arg1[%c0_5, %c1, %c0_6, %c0_7] : memref<1x4x25x256xbf16, #tpu.memory_space<vmem>>, vector<1x1x25x256xbf16>
    %5 = vector.shape_cast %4 : vector<1x1x25x256xbf16> to vector<25x256xbf16>
    %cst_8 = arith.constant dense<0.000000e+00> : vector<25x128xf32>
    %6 = tpu.matmul %5, %0, %cst_8 {dimension_numbers = #tpu.dot_dimension_numbers<[1], [0], [0], [1], [0, 0, 1, 1], [], []>} : vector<25x256xbf16>, vector<256x128xbf16>, vector<25x128xf32> -> vector<25x128xf32>
    %7 = arith.maximumf %3, %6 : vector<25x128xf32>
    %c0_9 = arith.constant 0 : index
    %c2 = arith.constant 2 : index
    %c0_10 = arith.constant 0 : index
    %c0_11 = arith.constant 0 : index
    %8 = vector.load %arg1[%c0_9, %c2, %c0_10, %c0_11] : memref<1x4x25x256xbf16, #tpu.memory_space<vmem>>, vector<1x1x25x256xbf16>
    %9 = vector.shape_cast %8 : vector<1x1x25x256xbf16> to vector<25x256xbf16>
    %cst_12 = arith.constant dense<0.000000e+00> : vector<25x128xf32>
    %10 = tpu.matmul %9, %0, %cst_12 {dimension_numbers = #tpu.dot_dimension_numbers<[1], [0], [0], [1], [0, 0, 1, 1], [], []>} : vector<25x256xbf16>, vector<256x128xbf16>, vector<25x128xf32> -> vector<25x128xf32>
    %11 = arith.maximumf %7, %10 : vector<25x128xf32>
    %c0_13 = arith.constant 0 : index
    %c3 = arith.constant 3 : index
    %c0_14 = arith.constant 0 : index
    %c0_15 = arith.constant 0 : index
    %12 = vector.load %arg1[%c0_13, %c3, %c0_14, %c0_15] : memref<1x4x25x256xbf16, #tpu.memory_space<vmem>>, vector<1x1x25x256xbf16>
    %13 = vector.shape_cast %12 : vector<1x1x25x256xbf16> to vector<25x256xbf16>
    %cst_16 = arith.constant dense<0.000000e+00> : vector<25x128xf32>
    %14 = tpu.matmul %13, %0, %cst_16 {dimension_numbers = #tpu.dot_dimension_numbers<[1], [0], [0], [1], [0, 0, 1, 1], [], []>} : vector<25x256xbf16>, vector<256x128xbf16>, vector<25x128xf32> -> vector<25x128xf32>
    %15 = arith.maximumf %11, %14 : vector<25x128xf32>
    %c0_17 = arith.constant 0 : index
    %c0_18 = arith.constant 0 : index
    %16 = vector.load %arg3[%c0_17, %c0_18] : memref<1x128xf32, #tpu.memory_space<vmem>>, vector<1x128xf32>
    %17 = vector.broadcast %16 : vector<1x128xf32> to vector<25x128xf32>
    %18 = arith.addf %15, %17 : vector<25x128xf32>
    %cst_19 = arith.constant 0.000000e+00 : f32
    %19 = vector.broadcast %cst_19 : f32 to vector<25x128xf32>
    %20 = arith.maximumf %18, %19 : vector<25x128xf32>
    %c0_20 = arith.constant 0 : index
    %c0_21 = arith.constant 0 : index
    %c0_22 = arith.constant 0 : index
    %21 = vector.load %arg4[%c0_20, %c0_21, %c0_22] : memref<1x25x128xf32, #tpu.memory_space<vmem>>, vector<1x25x128xf32>
    %22 = vector.shape_cast %21 : vector<1x25x128xf32> to vector<25x128xf32>
    %23 = vector.shape_cast %20 : vector<25x128xf32> to vector<1x25x128xf32>
    tpu.vector_store %arg4[%c0_20, %c0_21, %c0_22], %23 {strides = array<i32>} : memref<1x25x128xf32, #tpu.memory_space<vmem>>, vector<1x25x128xf32>,
    return
  }
  func.func @transform_0(%arg0: i32) -> (i32, i32, i32, i32) {
    %c0_i32 = arith.constant 0 : i32
    %c0_i32_0 = arith.constant 0 : i32
    %c0_i32_1 = arith.constant 0 : i32
    %c0_i32_2 = arith.constant 0 : i32
    return %arg0, %c0_i32, %c0_i32_0, %c0_i32_1 : i32, i32, i32, i32
  }
  func.func @transform_1(%arg0: i32) -> (i32, i32) {
    %c0_i32 = arith.constant 0 : i32
    %c0_i32_0 = arith.constant 0 : i32
    %c0_i32_1 = arith.constant 0 : i32
    return %c0_i32, %c0_i32_0 : i32, i32
  }
  func.func @transform_2(%arg0: i32) -> (i32, i32) {
    %c0_i32 = arith.constant 0 : i32
    %c0_i32_0 = arith.constant 0 : i32
    %c0_i32_1 = arith.constant 0 : i32
    return %c0_i32, %c0_i32_0 : i32, i32
  }
  func.func @transform_3(%arg0: i32) -> (i32, i32, i32) {
    %c0_i32 = arith.constant 0 : i32
    %c0_i32_0 = arith.constant 0 : i32
    %c0_i32_1 = arith.constant 0 : i32
    return %arg0, %c0_i32, %c0_i32_0 : i32, i32, i32
  }
}

module attributes {stable_mosaic.version = 11 : i64} {
  func.func @_fc_stack_kernel(%arg0: memref<2x3200xbf16, #tpu.memory_space<vmem>>, %arg1: memref<3200x128xbf16, #tpu.memory_space<vmem>>, %arg2: memref<1x128xf32, #tpu.memory_space<vmem>>, %arg3: memref<128x128xbf16, #tpu.memory_space<vmem>>, %arg4: memref<1x128xf32, #tpu.memory_space<vmem>>, %arg5: memref<128x128xbf16, #tpu.memory_space<vmem>>, %arg6: memref<1x128xf32, #tpu.memory_space<vmem>>, %arg7: memref<2x128xf32, #tpu.memory_space<vmem>>) attributes {dimension_semantics = [], scalar_prefetch = 0 : i64, scratch_operands = 0 : i64, tpu.core_type = #tpu.core_type<tc>} {
    %c0 = arith.constant 0 : index
    %c0_0 = arith.constant 0 : index
    %0 = vector.load %arg0[%c0, %c0_0] : memref<2x3200xbf16, #tpu.memory_space<vmem>>, vector<2x3200xbf16>
    %c0_1 = arith.constant 0 : index
    %c0_2 = arith.constant 0 : index
    %1 = vector.load %arg1[%c0_1, %c0_2] : memref<3200x128xbf16, #tpu.memory_space<vmem>>, vector<3200x128xbf16>
    %cst = arith.constant dense<0.000000e+00> : vector<2x128xf32>
    %2 = tpu.matmul %0, %1, %cst {dimension_numbers = #tpu.dot_dimension_numbers<[1], [0], [0], [1], [0, 0, 1, 1], [], []>} : vector<2x3200xbf16>, vector<3200x128xbf16>, vector<2x128xf32> -> vector<2x128xf32>
    %c0_3 = arith.constant 0 : index
    %c0_4 = arith.constant 0 : index
    %3 = vector.load %arg2[%c0_3, %c0_4] : memref<1x128xf32, #tpu.memory_space<vmem>>, vector<1x128xf32>
    %4 = vector.broadcast %3 : vector<1x128xf32> to vector<2x128xf32>
    %5 = arith.addf %2, %4 : vector<2x128xf32>
    %cst_5 = arith.constant 0.000000e+00 : f32
    %6 = vector.broadcast %cst_5 : f32 to vector<2x128xf32>
    %7 = arith.maximumf %5, %6 : vector<2x128xf32>
    %8 = arith.truncf %7 : vector<2x128xf32> to vector<2x128xbf16>
    %c0_6 = arith.constant 0 : index
    %c0_7 = arith.constant 0 : index
    %9 = vector.load %arg3[%c0_6, %c0_7] : memref<128x128xbf16, #tpu.memory_space<vmem>>, vector<128x128xbf16>
    %cst_8 = arith.constant dense<0.000000e+00> : vector<2x128xf32>
    %10 = tpu.matmul %8, %9, %cst_8 {dimension_numbers = #tpu.dot_dimension_numbers<[1], [0], [0], [1], [0, 0, 1, 1], [], []>} : vector<2x128xbf16>, vector<128x128xbf16>, vector<2x128xf32> -> vector<2x128xf32>
    %c0_9 = arith.constant 0 : index
    %c0_10 = arith.constant 0 : index
    %11 = vector.load %arg4[%c0_9, %c0_10] : memref<1x128xf32, #tpu.memory_space<vmem>>, vector<1x128xf32>
    %12 = vector.broadcast %11 : vector<1x128xf32> to vector<2x128xf32>
    %13 = arith.addf %10, %12 : vector<2x128xf32>
    %cst_11 = arith.constant 0.000000e+00 : f32
    %14 = vector.broadcast %cst_11 : f32 to vector<2x128xf32>
    %15 = arith.maximumf %13, %14 : vector<2x128xf32>
    %16 = arith.truncf %15 : vector<2x128xf32> to vector<2x128xbf16>
    %c0_12 = arith.constant 0 : index
    %c0_13 = arith.constant 0 : index
    %17 = vector.load %arg5[%c0_12, %c0_13] : memref<128x128xbf16, #tpu.memory_space<vmem>>, vector<128x128xbf16>
    %cst_14 = arith.constant dense<0.000000e+00> : vector<2x128xf32>
    %18 = tpu.matmul %16, %17, %cst_14 {dimension_numbers = #tpu.dot_dimension_numbers<[1], [0], [0], [1], [0, 0, 1, 1], [], []>} : vector<2x128xbf16>, vector<128x128xbf16>, vector<2x128xf32> -> vector<2x128xf32>
    %c0_15 = arith.constant 0 : index
    %c0_16 = arith.constant 0 : index
    %19 = vector.load %arg6[%c0_15, %c0_16] : memref<1x128xf32, #tpu.memory_space<vmem>>, vector<1x128xf32>
    %20 = vector.broadcast %19 : vector<1x128xf32> to vector<2x128xf32>
    %21 = arith.addf %18, %20 : vector<2x128xf32>
    %c0_17 = arith.constant 0 : index
    %c0_18 = arith.constant 0 : index
    %22 = vector.load %arg7[%c0_17, %c0_18] : memref<2x128xf32, #tpu.memory_space<vmem>>, vector<2x128xf32>
    tpu.vector_store %arg7[%c0_17, %c0_18], %21 {strides = array<i32>} : memref<2x128xf32, #tpu.memory_space<vmem>>, vector<2x128xf32>,
    return
  }
}

</mosaic_0001>

<llo_original>
// kernel: forward.3
$region0: #{forward.3}
  #allocation0 [shape = 'u32[]', space=smem, size = 0x4, offset = 0x4, fixed_abs, tag = 'smem constant byte address 0x4 - core index']
  #allocation1 [shape = 'u32[144,128]{1,0:T(1,128)}', space=vmem, size = 0x12000, scoped, tag = 'internal scratch']
  %s0 = inlined_call_operand.vmem [shape: bf16[2,4,196,128], index: 0, kind: input, shape index: {}]
  %s1 = inlined_call_operand.vmem [shape: bf16[128,128], index: 1, kind: input, shape index: {}]
  %s2 = inlined_call_operand.vmem [shape: f32[1,128], index: 2, kind: input, shape index: {}]
  %s3 = inlined_call_operand.vmem [shape: f32[2,196,128], index: 3, kind: output, shape index: {}]
  %s4 = sld [smem:[#allocation0]]
  $region45: #{forward.3} parent=0
    _
  %s6 = ssub.s32 1, %s4
  %s7 = scalar_select 0, %s6, %s4
  loop: start=0, step=1, limit=4
  $region2: #{forward.3} parent=0 // loop_pre_header
    _
  $region3: #{forward.3} parent=0 // loop_header
    %s9 = sphi 0, %s13
    %p10 = scmp.ge.s32.totalorder %s9, 4
    %s19 = sphi 0, %s21
    %s22 = sphi 0, %s19
    %s23 = sphi 0, %s22
    %s39 = sphi 0, %s23
    %s43 = sphi 0, %s43
    %s45 = sphi 0, %s43
    %s46 = sphi 0, %s45
    %s60 = sphi 0, %s46
    %s64 = sphi 0, %s64
    %s66 = sphi 0, %s64
    %s67 = sphi 0, %s66
    %s81 = sphi 0, %s67
    %s87 = sphi 0, %s89
    %s90 = sphi 0, %s87
    %s91 = sphi 0, %s90
    %s107 = sphi 0, %s91
  $region4: #{forward.3} parent=0 // loop_header_branch
    %12 = sbr.rel (%p10) target = $region8
  $region5: #{forward.3} parent=0 // loop_body
    %s14 = ssub.s32 %s9, 1
    %s15 = ssub.s32 %s9, 2
    %s16 = sadd.s32 %s9, 1
    %s17 = ssub.s32 %s9, %s16
    %p18 = scmp.eq.s32.totalorder %s17, 0
    %s20 = sadd.s32 %s19, 1
    %s21 = scalar_select %p18, %s19, %s20
    %p24 = pneg %p18
    %p25 = scmp.eq.s32.totalorder %s9, 1
    %p26 = por %p24, %p25
    %p27 = scmp.ne.s32.totalorder %s19, %s22
    %p28 = scmp.eq.s32.totalorder %s9, 0
    %p29 = por %p27, %p28
    %p30 = scmp.ne.s32.totalorder %s19, %s22
    %p31 = scmp.eq.s32.totalorder %s14, 1
    %p32 = por %p30, %p31
    %p33 = scmp.ne.s32.totalorder %s22, %s23
    %p34 = scmp.eq.s32.totalorder %s14, 0
    %p35 = por %p33, %p34
    %p36 = scmp.ne.s32.totalorder %s22, %s23
    %p37 = scmp.eq.s32.totalorder %s15, 1
    %p38 = por %p36, %p37
    %p40 = scmp.ne.s32.totalorder %s23, %s39
    %p41 = scmp.eq.s32.totalorder %s15, 0
    %p42 = por %p40, %p41
    %s44 = sadd.s32 %s43, 1
    %p47 = scmp.eq.s32.totalorder %s9, 1
    %p48 = scmp.ne.s32.totalorder %s43, %s45
    %p49 = scmp.eq.s32.totalorder %s9, 0
    %p50 = por %p48, %p49
    %p51 = scmp.ne.s32.totalorder %s43, %s45
    %p52 = scmp.eq.s32.totalorder %s14, 1
    %p53 = por %p51, %p52
    %p54 = scmp.ne.s32.totalorder %s45, %s46
    %p55 = scmp.eq.s32.totalorder %s14, 0
    %p56 = por %p54, %p55
    %p57 = scmp.ne.s32.totalorder %s45, %s46
    %p58 = scmp.eq.s32.totalorder %s15, 1
    %p59 = por %p57, %p58
    %p61 = scmp.ne.s32.totalorder %s46, %s60
    %p62 = scmp.eq.s32.totalorder %s15, 0
    %p63 = por %p61, %p62
    %s65 = sadd.s32 %s64, 1
    %p68 = scmp.eq.s32.totalorder %s9, 1
    %p69 = scmp.ne.s32.totalorder %s64, %s66
    %p70 = scmp.eq.s32.totalorder %s9, 0
    %p71 = por %p69, %p70
    %p72 = scmp.ne.s32.totalorder %s64, %s66
    %p73 = scmp.eq.s32.totalorder %s14, 1
    %p74 = por %p72, %p73
    %p75 = scmp.ne.s32.totalorder %s66, %s67
    %p76 = scmp.eq.s32.totalorder %s14, 0
    %p77 = por %p75, %p76
    %p78 = scmp.ne.s32.totalorder %s66, %s67
    %p79 = scmp.eq.s32.totalorder %s15, 1
    %p80 = por %p78, %p79
    %p82 = scmp.ne.s32.totalorder %s67, %s81
    %p83 = scmp.eq.s32.totalorder %s15, 0
    %p84 = por %p82, %p83
    %s85 = ssub.s32 %s9, %s16
    %p86 = scmp.eq.s32.totalorder %s85, 0
    %s88 = sadd.s32 %s87, 1
    %s89 = scalar_select %p86, %s87, %s88
    %p92 = pneg %p86
    %p93 = scmp.eq.s32.totalorder %s9, 1
    %p94 = por %p92, %p93
    %p95 = scmp.ne.s32.totalorder %s87, %s90
    %p96 = scmp.eq.s32.totalorder %s9, 0
    %p97 = por %p95, %p96
    %p98 = scmp.ne.s32.totalorder %s87, %s90
    %p99 = scmp.eq.s32.totalorder %s14, 1
    %p100 = por %p98, %p99
    %p101 = scmp.ne.s32.totalorder %s90, %s91
    %p102 = scmp.eq.s32.totalorder %s14, 0
    %p103 = por %p101, %p102
    %p104 = scmp.ne.s32.totalorder %s90, %s91
    %p105 = scmp.eq.s32.totalorder %s15, 1
    %p106 = por %p104, %p105
    %p108 = scmp.ne.s32.totalorder %s91, %s107
    %p109 = scmp.eq.s32.totalorder %s15, 0
    %p110 = por %p108, %p109
    %p111 = scmp.le.s32.totalorder 1, %s9
    %p112 = scmp.lt.s32.totalorder %s9, 3
    %p113 = pnand %p111, %p112
    %p114 = pneg %p113
    // Predicated region
    $region9: #{forward.3} parent=5 // pred_check
      _
    $region10: #{forward.3} parent=5 // pred_check_branch
      %116 = sbr.rel (%p113) target = $region12
    $region11: #{forward.3} parent=5 // pred_region
      %s117 = ssub.s32 %s9, 1
      // Predicated region
      $region13: #{forward.3} parent=11 // pred_check
        %p118 = pneg %p56
      $region14: #{forward.3} parent=11 // pred_check_branch
        %120 = sbr.rel (%p118) target = $region16
      $region15: #{forward.3} parent=11 // pred_region
        _
      $region16: #{forward.3} parent=11 // pred_fallthru
        _
      // Predicated region
      $region17: #{forward.3} parent=11 // pred_check
        %p121 = pneg %p77
      $region18: #{forward.3} parent=11 // pred_check_branch
        %123 = sbr.rel (%p121) target = $region20
      $region19: #{forward.3} parent=11 // pred_region
        _
      $region20: #{forward.3} parent=11 // pred_fallthru
        _
    $region12: #{forward.3} parent=5 // pred_fallthru
      _
    %p124 = scmp.lt.s32.totalorder %s9, 2
    // Predicated region
    $region21: #{forward.3} parent=5 // pred_check
      %p125 = pneg %p124
    $region22: #{forward.3} parent=5 // pred_check_branch
      %127 = sbr.rel (%p125) target = $region24
    $region23: #{forward.3} parent=5 // pred_region
      // Predicated region
      $region25: #{forward.3} parent=23 // pred_check
        %p128 = pneg %p29
      $region26: #{forward.3} parent=23 // pred_check_branch
        %130 = sbr.rel (%p128) target = $region28
      $region27: #{forward.3} parent=23 // pred_region
        %p131 = scmp.lt.s32.totalorder %s9, 1
        %s132 = scalar_select %p131, %s9, 1
        %s133 = smul.addr %s132, 100
        %s134 = smul.addr %s133, 4
        %s135 = scalar_lea.vmem %s0, %s134
      $region28: #{forward.3} parent=23 // pred_fallthru
        _
    $region24: #{forward.3} parent=5 // pred_fallthru
      _
    %p136 = scmp.le.s32.totalorder 1, %s9
    %p137 = scmp.lt.s32.totalorder %s9, 3
    %p138 = pnand %p136, %p137
    %p139 = pneg %p138
    // Predicated region
    $region29: #{forward.3} parent=5 // pred_check
      _
    $region30: #{forward.3} parent=5 // pred_check_branch
      %141 = sbr.rel (%p138) target = $region32
    $region31: #{forward.3} parent=5 // pred_region
      %s142 = ssub.s32 %s9, 1
      %p143 = scmp.lt.s32.totalorder %s14, 1
      %s144 = scalar_select %p143, %s14, 1
      %s145 = smul.addr %s144, 100
      %s146 = smul.addr %s145, 4
      %s147 = scalar_lea.vmem %s0, %s146
      %p148 = pneg %p35
      %p149 = pneg %p32
      %p150 = pneg %p56
      %p151 = pneg %p53
      %p152 = pneg %p77
      %p153 = pneg %p74
      %p154 = pneg %p103
      %p155 = pneg %p100
      %p156 = scmp.lt.s32.totalorder %s14, 1
      %s157 = scalar_select %p156, %s14, 1
      %s158 = smul.addr %s157, 25
      %s159 = smul.addr %s158, 8
      %s160 = scalar_lea.vmem %s3, %s159
      %p161 = scmp.lt.s32.totalorder %s14, 1
      %s162 = scalar_select %p161, %s14, 1
      %s163 = smul.addr %s162, 100
      %s164 = smul.addr %s163, 4
      %s165 = scalar_lea.vmem %s0, %s164
      %p166 = scmp.lt.s32.totalorder %s14, 1
      %s167 = scalar_select %p166, %s14, 1
      %s168 = smul.addr %s167, 25
      %s169 = smul.addr %s168, 8
      %s170 = scalar_lea.vmem %s3, %s169
      %v172 = vld [vmem:[%s1] sm:$0xf]
      %v173 = vld [vmem:[%s1 + $0x4] sm:$0xf]
      %v174 = vld [vmem:[%s1 + $0x8] sm:$0xf]
      %v175 = vld [vmem:[%s1 + $0xc] sm:$0xf]
      %v176 = vld [vmem:[%s1 + $0x10] sm:$0xf]
      %v177 = vld [vmem:[%s1 + $0x14] sm:$0xf]
      %v178 = vld [vmem:[%s1 + $0x18] sm:$0xf]
      %v179 = vld [vmem:[%s1 + $0x1c] sm:$0xf]
      %v180 = vld [vmem:[%s1 + $0x20] sm:$0xf]
      %v181 = vld [vmem:[%s1 + $0x24] sm:$0xf]
      %v182 = vld [vmem:[%s1 + $0x28] sm:$0xf]
      %v183 = vld [vmem:[%s1 + $0x2c] sm:$0xf]
      %v184 = vld [vmem:[%s1 + $0x30] sm:$0xf]
      %v185 = vld [vmem:[%s1 + $0x34] sm:$0xf]
      %v186 = vld [vmem:[%s1 + $0x38] sm:$0xf]
      %v187 = vld [vmem:[%s1 + $0x3c] sm:$0xf]
      %v188 = vld [vmem:[%s165] sm:$0xf]
      %v189 = vld [vmem:[%s165 + $0x4] sm:$0xf]
      %v190 = vld [vmem:[%s165 + $0x8] sm:$0xf]
      %v191 = vld [vmem:[%s165 + $0xc] sm:$0xf]
      %v192 = vld [vmem:[%s165 + $0x10] sm:$0xf]
      %v193 = vld [vmem:[%s165 + $0x14] sm:$0xf]
      %v194 = vld [vmem:[%s165 + $0x18] sm:$0xf]
      %v195 = vld [vmem:[%s165 + $0x1c] sm:$0xf]
      %v196 = vld [vmem:[%s165 + $0x20] sm:$0xf]
      %v197 = vld [vmem:[%s165 + $0x24] sm:$0xf]
      %v198 = vld [vmem:[%s165 + $0x28] sm:$0xf]
      %v199 = vld [vmem:[%s165 + $0x2c] sm:$0xf]
      %v200 = vld [vmem:[%s165 + $0x30] sm:$0xf]
      %v201 = vld [vmem:[%s165 + $0x34] sm:$0xf]
      %v202 = vld [vmem:[%s165 + $0x38] sm:$0xf]
      %v203 = vld [vmem:[%s165 + $0x3c] sm:$0xf]
      %v204 = vld [vmem:[%s165 + $0x40] sm:$0xf]
      %v205 = vld [vmem:[%s165 + $0x44] sm:$0xf]
      %v206 = vld [vmem:[%s165 + $0x48] sm:$0xf]
      %v207 = vld [vmem:[%s165 + $0x4c] sm:$0xf]
      %v208 = vld [vmem:[%s165 + $0x50] sm:$0xf]
      %v209 = vld [vmem:[%s165 + $0x54] sm:$0xf]
      %v210 = vld [vmem:[%s165 + $0x58] sm:$0xf]
      %v211 = vld [vmem:[%s165 + $0x5c] sm:$0xf]
      %v212 = vld [vmem:[%s165 + $0x60] sm:$0x3]
      %v238 = vunpack.c.l.b16 %v188
      %v239 = vunpack.c.l.b16 %v189
      %v240 = vunpack.c.l.b16 %v190
      %v241 = vunpack.c.l.b16 %v191
      %v242 = vunpack.c.l.b16 %v192
      %v243 = vunpack.c.l.b16 %v193
      %v244 = vunpack.c.l.b16 %v194
      %v245 = vunpack.c.l.b16 %v195
      %v246 = vunpack.c.l.b16 %v196
      %v247 = vunpack.c.l.b16 %v197
      %v248 = vunpack.c.l.b16 %v198
      %v249 = vunpack.c.l.b16 %v199
      %v250 = vunpack.c.l.b16 %v200
      %v251 = vunpack.c.l.b16 %v201
      %v252 = vunpack.c.l.b16 %v202
      %v253 = vunpack.c.l.b16 %v203
      %v254 = vunpack.c.l.b16 %v204
      %v255 = vunpack.c.l.b16 %v205
      %v256 = vunpack.c.l.b16 %v206
      %v257 = vunpack.c.l.b16 %v207
      %v258 = vunpack.c.l.b16 %v208
      %v259 = vunpack.c.l.b16 %v209
      %v260 = vunpack.c.l.b16 %v210
      %v261 = vunpack.c.l.b16 %v211
      %v262 = vunpack.c.l.b16 %v212
      %v263 = vpack.c.b16 %v239, %v238
      %v264 = vpack.c.b16 %v241, %v240
      %v265 = vpack.c.b16 %v243, %v242
      %v266 = vpack.c.b16 %v245, %v244
      %v267 = vpack.c.b16 %v247, %v246
      %v268 = vpack.c.b16 %v249, %v248
      %v269 = vpack.c.b16 %v251, %v250
      %v270 = vpack.c.b16 %v253, %v252
      %v271 = vpack.c.b16 %v255, %v254
      %v272 = vpack.c.b16 %v257, %v256
      %v273 = vpack.c.b16 %v259, %v258
      %v274 = vpack.c.b16 %v261, %v260
      %v275 = vpack.c.b16 %v262, %v262
      %v305 = vunpack.c.l.b16 %v172
      %v306 = vunpack.c.l.b16 %v173
      %v307 = vunpack.c.l.b16 %v174
      %v308 = vunpack.c.l.b16 %v175
      %v309 = vunpack.c.l.b16 %v176
      %v310 = vunpack.c.l.b16 %v177
      %v311 = vunpack.c.l.b16 %v178
      %v312 = vunpack.c.l.b16 %v179
      %v313 = vunpack.c.l.b16 %v180
      %v314 = vunpack.c.l.b16 %v181
      %v315 = vunpack.c.l.b16 %v182
      %v316 = vunpack.c.l.b16 %v183
      %v317 = vunpack.c.l.b16 %v184
      %v318 = vunpack.c.l.b16 %v185
      %v319 = vunpack.c.l.b16 %v186
      %v320 = vunpack.c.l.b16 %v187
      %v321 = vpack.c.b16 %v306, %v305
      %v322 = vpack.c.b16 %v308, %v307
      %v323 = vpack.c.b16 %v310, %v309
      %v324 = vpack.c.b16 %v312, %v311
      %v325 = vpack.c.b16 %v314, %v313
      %v326 = vpack.c.b16 %v316, %v315
      %v327 = vpack.c.b16 %v318, %v317
      %v328 = vpack.c.b16 %v320, %v319
      %337 = vmatprep.subr.bf16.mxu0 0
      %338 = vmatpush1.bf16.msra.mxu0 %v321
      %339 = vmatprep.subr.bf16.mxu0 0
      %340 = vmatpush1.bf16.msra.mxu0 %v322
      %341 = vmatprep.subr.bf16.mxu0 0
      %342 = vmatpush1.bf16.msra.mxu0 %v323
      %343 = vmatprep.subr.bf16.mxu0 0
      %344 = vmatpush1.bf16.msra.mxu0 %v324
      %345 = vmatprep.subr.bf16.mxu0 0
      %346 = vmatpush1.bf16.msra.mxu0 %v325
      %347 = vmatprep.subr.bf16.mxu0 0
      %348 = vmatpush1.bf16.msra.mxu0 %v326
      %349 = vmatprep.subr.bf16.mxu0 0
      %350 = vmatpush1.bf16.msra.mxu0 %v327
      %351 = vmatprep.subr.bf16.mxu0 0
      %352 = vmatpush1.bf16.msra.mxu0 %v328
      %353 = vmatprep.subr.bf16.mxu0 0
      %354 = vmatpush1.bf16.msra.mxu0 0
      %355 = vmatprep.subr.bf16.mxu0 0
      %356 = vmatpush1.bf16.msra.mxu0 0
      %357 = vmatprep.subr.bf16.mxu0 0
      %358 = vmatpush1.bf16.msra.mxu0 0
      %359 = vmatprep.subr.bf16.mxu0 0
      %360 = vmatpush1.bf16.msra.mxu0 0
      %361 = vmatprep.subr.bf16.mxu0 0
      %362 = vmatpush1.bf16.msra.mxu0 0
      %363 = vmatprep.subr.bf16.mxu0 0
      %364 = vmatpush1.bf16.msra.mxu0 0
      %365 = vmatprep.subr.bf16.mxu0 0
      %366 = vmatpush1.bf16.msra.mxu0 0
      %367 = vmatprep.subr.bf16.mxu0 0
      %368 = vmatpush1.bf16.msra.mxu0 0
      %369 = vmatprep.mubr.bf16.mxu0 0
      %370 = vmatmul.mubr.bf16.gmra.mrb[0].mxu0 %v263
      %v371 = vpop.f32.mrb[0].mxu0
      %v372 = vadd.f32 0.0, %v371
      %v373 = vpop.f32.mrb[0].mxu0
      %v374 = vpop.f32.mrb[0].mxu0
      %v375 = vadd.f32 0.0, %v374
      %v376 = vpop.f32.mrb[0].mxu0
      %377 = vmatprep.mubr.bf16.mxu0 0
      %378 = vmatmul.mubr.bf16.gmra.mrb[0].mxu0 %v264
      %v379 = vpop.f32.mrb[0].mxu0
      %v380 = vadd.f32 0.0, %v379
      %v381 = vpop.f32.mrb[0].mxu0
      %v382 = vpop.f32.mrb[0].mxu0
      %v383 = vadd.f32 0.0, %v382
      %v384 = vpop.f32.mrb[0].mxu0
      %385 = vmatprep.mubr.bf16.mxu0 0
      %386 = vmatmul.mubr.bf16.gmra.mrb[0].mxu0 %v265
      %v387 = vpop.f32.mrb[0].mxu0
      %v388 = vadd.f32 0.0, %v387
      %v389 = vpop.f32.mrb[0].mxu0
      %v390 = vpop.f32.mrb[0].mxu0
      %v391 = vadd.f32 0.0, %v390
      %v392 = vpop.f32.mrb[0].mxu0
      %393 = vmatprep.mubr.bf16.mxu0 0
      %394 = vmatmul.mubr.bf16.gmra.mrb[0].mxu0 %v266
      %v395 = vpop.f32.mrb[0].mxu0
      %v396 = vadd.f32 0.0, %v395
      %v397 = vpop.f32.mrb[0].mxu0
      %v398 = vpop.f32.mrb[0].mxu0
      %v399 = vadd.f32 0.0, %v398
      %v400 = vpop.f32.mrb[0].mxu0
      %401 = vmatprep.mubr.bf16.mxu0 0
      %402 = vmatmul.mubr.bf16.gmra.mrb[0].mxu0 %v267
      %v403 = vpop.f32.mrb[0].mxu0
      %v404 = vadd.f32 0.0, %v403
      %v405 = vpop.f32.mrb[0].mxu0
      %v406 = vpop.f32.mrb[0].mxu0
      %v407 = vadd.f32 0.0, %v406
      %v408 = vpop.f32.mrb[0].mxu0
      %409 = vmatprep.mubr.bf16.mxu0 0
      %410 = vmatmul.mubr.bf16.gmra.mrb[0].mxu0 %v268
      %v411 = vpop.f32.mrb[0].mxu0
      %v412 = vadd.f32 0.0, %v411
      %v413 = vpop.f32.mrb[0].mxu0
      %v414 = vpop.f32.mrb[0].mxu0
      %v415 = vadd.f32 0.0, %v414
      %v416 = vpop.f32.mrb[0].mxu0
      %417 = vmatprep.mubr.bf16.mxu0 0
      %418 = vmatmul.mubr.bf16.gmra.mrb[0].mxu0 %v269
      %v419 = vpop.f32.mrb[0].mxu0
      %v420 = vadd.f32 0.0, %v419
      %v421 = vpop.f32.mrb[0].mxu0
      %v422 = vpop.f32.mrb[0].mxu0
      %v423 = vadd.f32 0.0, %v422
      %v424 = vpop.f32.mrb[0].mxu0
      %425 = vmatprep.mubr.bf16.mxu0 0
      %426 = vmatmul.mubr.bf16.gmra.mrb[0].mxu0 %v270
      %v427 = vpop.f32.mrb[0].mxu0
      %v428 = vadd.f32 0.0, %v427
      %v429 = vpop.f32.mrb[0].mxu0
      %v430 = vpop.f32.mrb[0].mxu0
      %v431 = vadd.f32 0.0, %v430
      %v432 = vpop.f32.mrb[0].mxu0
      %433 = vmatprep.mubr.bf16.mxu0 0
      %434 = vmatmul.mubr.bf16.gmra.mrb[0].mxu0 %v271
      %v435 = vpop.f32.mrb[0].mxu0
      %v436 = vadd.f32 0.0, %v435
      %v437 = vpop.f32.mrb[0].mxu0
      %v438 = vpop.f32.mrb[0].mxu0
      %v439 = vadd.f32 0.0, %v438
      %v440 = vpop.f32.mrb[0].mxu0
      %441 = vmatprep.mubr.bf16.mxu0 0
      %442 = vmatmul.mubr.bf16.gmra.mrb[0].mxu0 %v272
      %v443 = vpop.f32.mrb[0].mxu0
      %v444 = vadd.f32 0.0, %v443
      %v445 = vpop.f32.mrb[0].mxu0
      %v446 = vpop.f32.mrb[0].mxu0
      %v447 = vadd.f32 0.0, %v446
      %v448 = vpop.f32.mrb[0].mxu0
      %449 = vmatprep.mubr.bf16.mxu0 0
      %450 = vmatmul.mubr.bf16.gmra.mrb[0].mxu0 %v273
      %v451 = vpop.f32.mrb[0].mxu0
      %v452 = vadd.f32 0.0, %v451
      %v453 = vpop.f32.mrb[0].mxu0
      %v454 = vpop.f32.mrb[0].mxu0
      %v455 = vadd.f32 0.0, %v454
      %v456 = vpop.f32.mrb[0].mxu0
      %457 = vmatprep.mubr.bf16.mxu0 0
      %458 = vmatmul.mubr.bf16.gmra.mrb[0].mxu0 %v274
      %v459 = vpop.f32.mrb[0].mxu0
      %v460 = vadd.f32 0.0, %v459
      %v461 = vpop.f32.mrb[0].mxu0
      %v462 = vpop.f32.mrb[0].mxu0
      %v463 = vadd.f32 0.0, %v462
      %v464 = vpop.f32.mrb[0].mxu0
      %465 = vmatprep.mubr.bf16.mxu0 0
      %466 = vmatmul.mubr.bf16.gmra.mrb[0].mxu0 %v275
      %v467 = vpop.f32.mrb[0].mxu0
      %v468 = vadd.f32 0.0, %v467
      %v469 = vpop.f32.mrb[0].mxu0
      %v470 = vpop.f32.mrb[0].mxu0
      %v471 = vpop.f32.mrb[0].mxu0
      %472 = vdwg.mxu0
      %s473 = scalar_lea.vmem %s165, 100
      %v474 = vld [vmem:[%s473] sm:$0xf]
      %v475 = vld [vmem:[%s473 + $0x4] sm:$0xf]
      %v476 = vld [vmem:[%s473 + $0x8] sm:$0xf]
      %v477 = vld [vmem:[%s473 + $0xc] sm:$0xf]
      %v478 = vld [vmem:[%s473 + $0x10] sm:$0xf]
      %v479 = vld [vmem:[%s473 + $0x14] sm:$0xf]
      %v480 = vld [vmem:[%s473 + $0x18] sm:$0xf]
      %v481 = vld [vmem:[%s473 + $0x1c] sm:$0xf]
      %v482 = vld [vmem:[%s473 + $0x20] sm:$0xf]
      %v483 = vld [vmem:[%s473 + $0x24] sm:$0xf]
      %v484 = vld [vmem:[%s473 + $0x28] sm:$0xf]
      %v485 = vld [vmem:[%s473 + $0x2c] sm:$0xf]
      %v486 = vld [vmem:[%s473 + $0x30] sm:$0xf]
      %v487 = vld [vmem:[%s473 + $0x34] sm:$0xf]
      %v488 = vld [vmem:[%s473 + $0x38] sm:$0xf]
      %v489 = vld [vmem:[%s473 + $0x3c] sm:$0xf]
      %v490 = vld [vmem:[%s473 + $0x40] sm:$0xf]
      %v491 = vld [vmem:[%s473 + $0x44] sm:$0xf]
      %v492 = vld [vmem:[%s473 + $0x48] sm:$0xf]
      %v493 = vld [vmem:[%s473 + $0x4c] sm:$0xf]
      %v494 = vld [vmem:[%s473 + $0x50] sm:$0xf]
      %v495 = vld [vmem:[%s473 + $0x54] sm:$0xf]
      %v496 = vld [vmem:[%s473 + $0x58] sm:$0xf]
      %v497 = vld [vmem:[%s473 + $0x5c] sm:$0xf]
      %v498 = vld [vmem:[%s473 + $0x60] sm:$0x3]
      %v524 = vunpack.c.l.b16 %v474
      %v525 = vunpack.c.l.b16 %v475
      %v526 = vunpack.c.l.b16 %v476
      %v527 = vunpack.c.l.b16 %v477
      %v528 = vunpack.c.l.b16 %v478
      %v529 = vunpack.c.l.b16 %v479
      %v530 = vunpack.c.l.b16 %v480
      %v531 = vunpack.c.l.b16 %v481
      %v532 = vunpack.c.l.b16 %v482
      %v533 = vunpack.c.l.b16 %v483
      %v534 = vunpack.c.l.b16 %v484
      %v535 = vunpack.c.l.b16 %v485
      %v536 = vunpack.c.l.b16 %v486
      %v537 = vunpack.c.l.b16 %v487
      %v538 = vunpack.c.l.b16 %v488
      %v539 = vunpack.c.l.b16 %v489
      %v540 = vunpack.c.l.b16 %v490
      %v541 = vunpack.c.l.b16 %v491
      %v542 = vunpack.c.l.b16 %v492
      %v543 = vunpack.c.l.b16 %v493
      %v544 = vunpack.c.l.b16 %v494
      %v545 = vunpack.c.l.b16 %v495
      %v546 = vunpack.c.l.b16 %v496
      %v547 = vunpack.c.l.b16 %v497
      %v548 = vunpack.c.l.b16 %v498
      %v549 = vpack.c.b16 %v525, %v524
      %v550 = vpack.c.b16 %v527, %v526
      %v551 = vpack.c.b16 %v529, %v528
      %v552 = vpack.c.b16 %v531, %v530
      %v553 = vpack.c.b16 %v533, %v532
      %v554 = vpack.c.b16 %v535, %v534
      %v555 = vpack.c.b16 %v537, %v536
      %v556 = vpack.c.b16 %v539, %v538
      %v557 = vpack.c.b16 %v541, %v540
      %v558 = vpack.c.b16 %v543, %v542
      %v559 = vpack.c.b16 %v545, %v544
      %v560 = vpack.c.b16 %v547, %v546
      %v561 = vpack.c.b16 %v548, %v548
      %575 = vmatprep.subr.bf16.mxu0 0
      %576 = vmatpush1.bf16.msra.mxu0 %v321
      %577 = vmatprep.subr.bf16.mxu0 0
      %578 = vmatpush1.bf16.msra.mxu0 %v322
      %579 = vmatprep.subr.bf16.mxu0 0
      %580 = vmatpush1.bf16.msra.mxu0 %v323
      %581 = vmatprep.subr.bf16.mxu0 0
      %582 = vmatpush1.bf16.msra.mxu0 %v324
      %583 = vmatprep.subr.bf16.mxu0 0
      %584 = vmatpush1.bf16.msra.mxu0 %v325
      %585 = vmatprep.subr.bf16.mxu0 0
      %586 = vmatpush1.bf16.msra.mxu0 %v326
      %587 = vmatprep.subr.bf16.mxu0 0
      %588 = vmatpush1.bf16.msra.mxu0 %v327
      %589 = vmatprep.subr.bf16.mxu0 0
      %590 = vmatpush1.bf16.msra.mxu0 %v328
      %591 = vmatprep.subr.bf16.mxu0 0
      %592 = vmatpush1.bf16.msra.mxu0 0
      %593 = vmatprep.subr.bf16.mxu0 0
      %594 = vmatpush1.bf16.msra.mxu0 0
      %595 = vmatprep.subr.bf16.mxu0 0
      %596 = vmatpush1.bf16.msra.mxu0 0
      %597 = vmatprep.subr.bf16.mxu0 0
      %598 = vmatpush1.bf16.msra.mxu0 0
      %599 = vmatprep.subr.bf16.mxu0 0
      %600 = vmatpush1.bf16.msra.mxu0 0
      %601 = vmatprep.subr.bf16.mxu0 0
      %602 = vmatpush1.bf16.msra.mxu0 0
      %603 = vmatprep.subr.bf16.mxu0 0
      %604 = vmatpush1.bf16.msra.mxu0 0
      %605 = vmatprep.subr.bf16.mxu0 0
      %606 = vmatpush1.bf16.msra.mxu0 0
      %607 = vmatprep.mubr.bf16.mxu0 0
      %608 = vmatmul.mubr.bf16.gmra.mrb[0].mxu0 %v549
      %v609 = vpop.f32.mrb[0].mxu0
      %v610 = vadd.f32 0.0, %v609
      %v611 = vpop.f32.mrb[0].mxu0
      %v612 = vpop.f32.mrb[0].mxu0
      %v613 = vadd.f32 0.0, %v612
      %v614 = vpop.f32.mrb[0].mxu0
      %615 = vmatprep.mubr.bf16.mxu0 0
      %616 = vmatmul.mubr.bf16.gmra.mrb[0].mxu0 %v550
      %v617 = vpop.f32.mrb[0].mxu0
      %v618 = vadd.f32 0.0, %v617
      %v619 = vpop.f32.mrb[0].mxu0
      %v620 = vpop.f32.mrb[0].mxu0
      %v621 = vadd.f32 0.0, %v620
      %v622 = vpop.f32.mrb[0].mxu0
      %623 = vmatprep.mubr.bf16.mxu0 0
      %624 = vmatmul.mubr.bf16.gmra.mrb[0].mxu0 %v551
      %v625 = vpop.f32.mrb[0].mxu0
      %v626 = vadd.f32 0.0, %v625
      %v627 = vpop.f32.mrb[0].mxu0
      %v628 = vpop.f32.mrb[0].mxu0
      %v629 = vadd.f32 0.0, %v628
      %v630 = vpop.f32.mrb[0].mxu0
      %631 = vmatprep.mubr.bf16.mxu0 0
      %632 = vmatmul.mubr.bf16.gmra.mrb[0].mxu0 %v552
      %v633 = vpop.f32.mrb[0].mxu0
      %v634 = vadd.f32 0.0, %v633
      %v635 = vpop.f32.mrb[0].mxu0
      %v636 = vpop.f32.mrb[0].mxu0
      %v637 = vadd.f32 0.0, %v636
      %v638 = vpop.f32.mrb[0].mxu0
      %639 = vmatprep.mubr.bf16.mxu0 0
      %640 = vmatmul.mubr.bf16.gmra.mrb[0].mxu0 %v553
      %v641 = vpop.f32.mrb[0].mxu0
      %v642 = vadd.f32 0.0, %v641
      %v643 = vpop.f32.mrb[0].mxu0
      %v644 = vpop.f32.mrb[0].mxu0
      %v645 = vadd.f32 0.0, %v644
      %v646 = vpop.f32.mrb[0].mxu0
      %647 = vmatprep.mubr.bf16.mxu0 0
      %648 = vmatmul.mubr.bf16.gmra.mrb[0].mxu0 %v554
      %v649 = vpop.f32.mrb[0].mxu0
      %v650 = vadd.f32 0.0, %v649
      %v651 = vpop.f32.mrb[0].mxu0
      %v652 = vpop.f32.mrb[0].mxu0
      %v653 = vadd.f32 0.0, %v652
      %v654 = vpop.f32.mrb[0].mxu0
      %655 = vmatprep.mubr.bf16.mxu0 0
      %656 = vmatmul.mubr.bf16.gmra.mrb[0].mxu0 %v555
      %v657 = vpop.f32.mrb[0].mxu0
      %v658 = vadd.f32 0.0, %v657
      %v659 = vpop.f32.mrb[0].mxu0
      %v660 = vpop.f32.mrb[0].mxu0
      %v661 = vadd.f32 0.0, %v660
      %v662 = vpop.f32.mrb[0].mxu0
      %663 = vmatprep.mubr.bf16.mxu0 0
      %664 = vmatmul.mubr.bf16.gmra.mrb[0].mxu0 %v556
      %v665 = vpop.f32.mrb[0].mxu0
      %v666 = vadd.f32 0.0, %v665
      %v667 = vpop.f32.mrb[0].mxu0
      %v668 = vpop.f32.mrb[0].mxu0
      %v669 = vadd.f32 0.0, %v668
      %v670 = vpop.f32.mrb[0].mxu0
      %671 = vmatprep.mubr.bf16.mxu0 0
      %672 = vmatmul.mubr.bf16.gmra.mrb[0].mxu0 %v557
      %v673 = vpop.f32.mrb[0].mxu0
      %v674 = vadd.f32 0.0, %v673
      %v675 = vpop.f32.mrb[0].mxu0
      %v676 = vpop.f32.mrb[0].mxu0
      %v677 = vadd.f32 0.0, %v676
      %v678 = vpop.f32.mrb[0].mxu0
      %679 = vmatprep.mubr.bf16.mxu0 0
      %680 = vmatmul.mubr.bf16.gmra.mrb[0].mxu0 %v558
      %v681 = vpop.f32.mrb[0].mxu0
      %v682 = vadd.f32 0.0, %v681
      %v683 = vpop.f32.mrb[0].mxu0
      %v684 = vpop.f32.mrb[0].mxu0
      %v685 = vadd.f32 0.0, %v684
      %v686 = vpop.f32.mrb[0].mxu0
      %687 = vmatprep.mubr.bf16.mxu0 0
      %688 = vmatmul.mubr.bf16.gmra.mrb[0].mxu0 %v559
      %v689 = vpop.f32.mrb[0].mxu0
      %v690 = vadd.f32 0.0, %v689
      %v691 = vpop.f32.mrb[0].mxu0
      %v692 = vpop.f32.mrb[0].mxu0
      %v693 = vadd.f32 0.0, %v692
      %v694 = vpop.f32.mrb[0].mxu0
      %695 = vmatprep.mubr.bf16.mxu0 0
      %696 = vmatmul.mubr.bf16.gmra.mrb[0].mxu0 %v560
      %v697 = vpop.f32.mrb[0].mxu0
      %v698 = vadd.f32 0.0, %v697
      %v699 = vpop.f32.mrb[0].mxu0
      %v700 = vpop.f32.mrb[0].mxu0
      %v701 = vadd.f32 0.0, %v700
      %v702 = vpop.f32.mrb[0].mxu0
      %703 = vmatprep.mubr.bf16.mxu0 0
      %704 = vmatmul.mubr.bf16.gmra.mrb[0].mxu0 %v561
      %v705 = vpop.f32.mrb[0].mxu0
      %v706 = vadd.f32 0.0, %v705
      %v707 = vpop.f32.mrb[0].mxu0
      %v708 = vpop.f32.mrb[0].mxu0
      %v709 = vpop.f32.mrb[0].mxu0
      %710 = vdwg.mxu0
      %v711 = vmax.f32 %v372, %v610
      %v712 = vmax.f32 %v375, %v613
      %v713 = vmax.f32 %v380, %v618
      %v714 = vmax.f32 %v383, %v621
      %v715 = vmax.f32 %v388, %v626
      %v716 = vmax.f32 %v391, %v629
      %v717 = vmax.f32 %v396, %v634
      %v718 = vmax.f32 %v399, %v637
      %v719 = vmax.f32 %v404, %v642
      %v720 = vmax.f32 %v407, %v645
      %v721 = vmax.f32 %v412, %v650
      %v722 = vmax.f32 %v415, %v653
      %v723 = vmax.f32 %v420, %v658
      %v724 = vmax.f32 %v423, %v661
      %v725 = vmax.f32 %v428, %v666
      %v726 = vmax.f32 %v431, %v669
      %v727 = vmax.f32 %v436, %v674
      %v728 = vmax.f32 %v439, %v677
      %v729 = vmax.f32 %v444, %v682
      %v730 = vmax.f32 %v447, %v685
      %v731 = vmax.f32 %v452, %v690
      %v732 = vmax.f32 %v455, %v693
      %v733 = vmax.f32 %v460, %v698
      %v734 = vmax.f32 %v463, %v701
      %v735 = vmax.f32 %v468, %v706
      %s736 = scalar_lea.vmem %s165, 200
      %v737 = vld [vmem:[%s736] sm:$0xf]
      %v738 = vld [vmem:[%s736 + $0x4] sm:$0xf]
      %v739 = vld [vmem:[%s736 + $0x8] sm:$0xf]
      %v740 = vld [vmem:[%s736 + $0xc] sm:$0xf]
      %v741 = vld [vmem:[%s736 + $0x10] sm:$0xf]
      %v742 = vld [vmem:[%s736 + $0x14] sm:$0xf]
      %v743 = vld [vmem:[%s736 + $0x18] sm:$0xf]
      %v744 = vld [vmem:[%s736 + $0x1c] sm:$0xf]
      %v745 = vld [vmem:[%s736 + $0x20] sm:$0xf]
      %v746 = vld [vmem:[%s736 + $0x24] sm:$0xf]
      %v747 = vld [vmem:[%s736 + $0x28] sm:$0xf]
      %v748 = vld [vmem:[%s736 + $0x2c] sm:$0xf]
      %v749 = vld [vmem:[%s736 + $0x30] sm:$0xf]
      %v750 = vld [vmem:[%s736 + $0x34] sm:$0xf]
      %v751 = vld [vmem:[%s736 + $0x38] sm:$0xf]
      %v752 = vld [vmem:[%s736 + $0x3c] sm:$0xf]
      %v753 = vld [vmem:[%s736 + $0x40] sm:$0xf]
      %v754 = vld [vmem:[%s736 + $0x44] sm:$0xf]
      %v755 = vld [vmem:[%s736 + $0x48] sm:$0xf]
      %v756 = vld [vmem:[%s736 + $0x4c] sm:$0xf]
      %v757 = vld [vmem:[%s736 + $0x50] sm:$0xf]
      %v758 = vld [vmem:[%s736 + $0x54] sm:$0xf]
      %v759 = vld [vmem:[%s736 + $0x58] sm:$0xf]
      %v760 = vld [vmem:[%s736 + $0x5c] sm:$0xf]
      %v761 = vld [vmem:[%s736 + $0x60] sm:$0x3]
      %v787 = vunpack.c.l.b16 %v737
      %v788 = vunpack.c.l.b16 %v738
      %v789 = vunpack.c.l.b16 %v739
      %v790 = vunpack.c.l.b16 %v740
      %v791 = vunpack.c.l.b16 %v741
      %v792 = vunpack.c.l.b16 %v742
      %v793 = vunpack.c.l.b16 %v743
      %v794 = vunpack.c.l.b16 %v744
      %v795 = vunpack.c.l.b16 %v745
      %v796 = vunpack.c.l.b16 %v746
      %v797 = vunpack.c.l.b16 %v747
      %v798 = vunpack.c.l.b16 %v748
      %v799 = vunpack.c.l.b16 %v749
      %v800 = vunpack.c.l.b16 %v750
      %v801 = vunpack.c.l.b16 %v751
      %v802 = vunpack.c.l.b16 %v752
      %v803 = vunpack.c.l.b16 %v753
      %v804 = vunpack.c.l.b16 %v754
      %v805 = vunpack.c.l.b16 %v755
      %v806 = vunpack.c.l.b16 %v756
      %v807 = vunpack.c.l.b16 %v757
      %v808 = vunpack.c.l.b16 %v758
      %v809 = vunpack.c.l.b16 %v759
      %v810 = vunpack.c.l.b16 %v760
      %v811 = vunpack.c.l.b16 %v761
      %v812 = vpack.c.b16 %v788, %v787
      %v813 = vpack.c.b16 %v790, %v789
      %v814 = vpack.c.b16 %v792, %v791
      %v815 = vpack.c.b16 %v794, %v793
      %v816 = vpack.c.b16 %v796, %v795
      %v817 = vpack.c.b16 %v798, %v797
      %v818 = vpack.c.b16 %v800, %v799
      %v819 = vpack.c.b16 %v802, %v801
      %v820 = vpack.c.b16 %v804, %v803
      %v821 = vpack.c.b16 %v806, %v805
      %v822 = vpack.c.b16 %v808, %v807
      %v823 = vpack.c.b16 %v810, %v809
      %v824 = vpack.c.b16 %v811, %v811
      %838 = vmatprep.subr.bf16.mxu0 0
      %839 = vmatpush1.bf16.msra.mxu0 %v321
      %840 = vmatprep.subr.bf16.mxu0 0
      %841 = vmatpush1.bf16.msra.mxu0 %v322
      %842 = vmatprep.subr.bf16.mxu0 0
      %843 = vmatpush1.bf16.msra.mxu0 %v323
      %844 = vmatprep.subr.bf16.mxu0 0
      %845 = vmatpush1.bf16.msra.mxu0 %v324
      %846 = vmatprep.subr.bf16.mxu0 0
      %847 = vmatpush1.bf16.msra.mxu0 %v325
      %848 = vmatprep.subr.bf16.mxu0 0
      %849 = vmatpush1.bf16.msra.mxu0 %v326
      %850 = vmatprep.subr.bf16.mxu0 0
      %851 = vmatpush1.bf16.msra.mxu0 %v327
      %852 = vmatprep.subr.bf16.mxu0 0
      %853 = vmatpush1.bf16.msra.mxu0 %v328
      %854 = vmatprep.subr.bf16.mxu0 0
      %855 = vmatpush1.bf16.msra.mxu0 0
      %856 = vmatprep.subr.bf16.mxu0 0
      %857 = vmatpush1.bf16.msra.mxu0 0
      %858 = vmatprep.subr.bf16.mxu0 0
      %859 = vmatpush1.bf16.msra.mxu0 0
      %860 = vmatprep.subr.bf16.mxu0 0
      %861 = vmatpush1.bf16.msra.mxu0 0
      %862 = vmatprep.subr.bf16.mxu0 0
      %863 = vmatpush1.bf16.msra.mxu0 0
      %864 = vmatprep.subr.bf16.mxu0 0
      %865 = vmatpush1.bf16.msra.mxu0 0
      %866 = vmatprep.subr.bf16.mxu0 0
      %867 = vmatpush1.bf16.msra.mxu0 0
      %868 = vmatprep.subr.bf16.mxu0 0
      %869 = vmatpush1.bf16.msra.mxu0 0
      %870 = vmatprep.mubr.bf16.mxu0 0
      %871 = vmatmul.mubr.bf16.gmra.mrb[0].mxu0 %v812
      %v872 = vpop.f32.mrb[0].mxu0
      %v873 = vadd.f32 0.0, %v872
      %v874 = vpop.f32.mrb[0].mxu0
      %v875 = vpop.f32.mrb[0].mxu0
      %v876 = vadd.f32 0.0, %v875
      %v877 = vpop.f32.mrb[0].mxu0
      %878 = vmatprep.mubr.bf16.mxu0 0
      %879 = vmatmul.mubr.bf16.gmra.mrb[0].mxu0 %v813
      %v880 = vpop.f32.mrb[0].mxu0
      %v881 = vadd.f32 0.0, %v880
      %v882 = vpop.f32.mrb[0].mxu0
      %v883 = vpop.f32.mrb[0].mxu0
      %v884 = vadd.f32 0.0, %v883
      %v885 = vpop.f32.mrb[0].mxu0
      %886 = vmatprep.mubr.bf16.mxu0 0
      %887 = vmatmul.mubr.bf16.gmra.mrb[0].mxu0 %v814
      %v888 = vpop.f32.mrb[0].mxu0
      %v889 = vadd.f32 0.0, %v888
      %v890 = vpop.f32.mrb[0].mxu0
      %v891 = vpop.f32.mrb[0].mxu0
      %v892 = vadd.f32 0.0, %v891
      %v893 = vpop.f32.mrb[0].mxu0
      %894 = vmatprep.mubr.bf16.mxu0 0
      %895 = vmatmul.mubr.bf16.gmra.mrb[0].mxu0 %v815
      %v896 = vpop.f32.mrb[0].mxu0
      %v897 = vadd.f32 0.0, %v896
      %v898 = vpop.f32.mrb[0].mxu0
      %v899 = vpop.f32.mrb[0].mxu0
      %v900 = vadd.f32 0.0, %v899
      %v901 = vpop.f32.mrb[0].mxu0
      %902 = vmatprep.mubr.bf16.mxu0 0
      %903 = vmatmul.mubr.bf16.gmra.mrb[0].mxu0 %v816
      %v904 = vpop.f32.mrb[0].mxu0
      %v905 = vadd.f32 0.0, %v904
      %v906 = vpop.f32.mrb[0].mxu0
      %v907 = vpop.f32.mrb[0].mxu0
      %v908 = vadd.f32 0.0, %v907
      %v909 = vpop.f32.mrb[0].mxu0
      %910 = vmatprep.mubr.bf16.mxu0 0
      %911 = vmatmul.mubr.bf16.gmra.mrb[0].mxu0 %v817
      %v912 = vpop.f32.mrb[0].mxu0
      %v913 = vadd.f32 0.0, %v912
      %v914 = vpop.f32.mrb[0].mxu0
      %v915 = vpop.f32.mrb[0].mxu0
      %v916 = vadd.f32 0.0, %v915
      %v917 = vpop.f32.mrb[0].mxu0
      %918 = vmatprep.mubr.bf16.mxu0 0
      %919 = vmatmul.mubr.bf16.gmra.mrb[0].mxu0 %v818
      %v920 = vpop.f32.mrb[0].mxu0
      %v921 = vadd.f32 0.0, %v920
      %v922 = vpop.f32.mrb[0].mxu0
      %v923 = vpop.f32.mrb[0].mxu0
      %v924 = vadd.f32 0.0, %v923
      %v925 = vpop.f32.mrb[0].mxu0
      %926 = vmatprep.mubr.bf16.mxu0 0
      %927 = vmatmul.mubr.bf16.gmra.mrb[0].mxu0 %v819
      %v928 = vpop.f32.mrb[0].mxu0
      %v929 = vadd.f32 0.0, %v928
      %v930 = vpop.f32.mrb[0].mxu0
      %v931 = vpop.f32.mrb[0].mxu0
      %v932 = vadd.f32 0.0, %v931
      %v933 = vpop.f32.mrb[0].mxu0
      %934 = vmatprep.mubr.bf16.mxu0 0
      %935 = vmatmul.mubr.bf16.gmra.mrb[0].mxu0 %v820
      %v936 = vpop.f32.mrb[0].mxu0
      %v937 = vadd.f32 0.0, %v936
      %v938 = vpop.f32.mrb[0].mxu0
      %v939 = vpop.f32.mrb[0].mxu0
      %v940 = vadd.f32 0.0, %v939
      %v941 = vpop.f32.mrb[0].mxu0
      %942 = vmatprep.mubr.bf16.mxu0 0
      %943 = vmatmul.mubr.bf16.gmra.mrb[0].mxu0 %v821
      %v944 = vpop.f32.mrb[0].mxu0
      %v945 = vadd.f32 0.0, %v944
      %v946 = vpop.f32.mrb[0].mxu0
      %v947 = vpop.f32.mrb[0].mxu0
      %v948 = vadd.f32 0.0, %v947
      %v949 = vpop.f32.mrb[0].mxu0
      %950 = vmatprep.mubr.bf16.mxu0 0
      %951 = vmatmul.mubr.bf16.gmra.mrb[0].mxu0 %v822
      %v952 = vpop.f32.mrb[0].mxu0
      %v953 = vadd.f32 0.0, %v952
      %v954 = vpop.f32.mrb[0].mxu0
      %v955 = vpop.f32.mrb[0].mxu0
      %v956 = vadd.f32 0.0, %v955
      %v957 = vpop.f32.mrb[0].mxu0
      %958 = vmatprep.mubr.bf16.mxu0 0
      %959 = vmatmul.mubr.bf16.gmra.mrb[0].mxu0 %v823
      %v960 = vpop.f32.mrb[0].mxu0
      %v961 = vadd.f32 0.0, %v960
      %v962 = vpop.f32.mrb[0].mxu0
      %v963 = vpop.f32.mrb[0].mxu0
      %v964 = vadd.f32 0.0, %v963
      %v965 = vpop.f32.mrb[0].mxu0
      %966 = vmatprep.mubr.bf16.mxu0 0
      %967 = vmatmul.mubr.bf16.gmra.mrb[0].mxu0 %v824
      %v968 = vpop.f32.mrb[0].mxu0
      %v969 = vadd.f32 0.0, %v968
      %v970 = vpop.f32.mrb[0].mxu0
      %v971 = vpop.f32.mrb[0].mxu0
      %v972 = vpop.f32.mrb[0].mxu0
      %973 = vdwg.mxu0
      %v974 = vmax.f32 %v711, %v873
      %v975 = vmax.f32 %v712, %v876
      %v976 = vmax.f32 %v713, %v881
      %v977 = vmax.f32 %v714, %v884
      %v978 = vmax.f32 %v715, %v889
      %v979 = vmax.f32 %v716, %v892
      %v980 = vmax.f32 %v717, %v897
      %v981 = vmax.f32 %v718, %v900
      %v982 = vmax.f32 %v719, %v905
      %v983 = vmax.f32 %v720, %v908
      %v984 = vmax.f32 %v721, %v913
      %v985 = vmax.f32 %v722, %v916
      %v986 = vmax.f32 %v723, %v921
      %v987 = vmax.f32 %v724, %v924
      %v988 = vmax.f32 %v725, %v929
      %v989 = vmax.f32 %v726, %v932
      %v990 = vmax.f32 %v727, %v937
      %v991 = vmax.f32 %v728, %v940
      %v992 = vmax.f32 %v729, %v945
      %v993 = vmax.f32 %v730, %v948
      %v994 = vmax.f32 %v731, %v953
      %v995 = vmax.f32 %v732, %v956
      %v996 = vmax.f32 %v733, %v961
      %v997 = vmax.f32 %v734, %v964
      %v998 = vmax.f32 %v735, %v969
      %s999 = scalar_lea.vmem %s165, 300
      %v1000 = vld [vmem:[%s999] sm:$0xf]
      %v1001 = vld [vmem:[%s999 + $0x4] sm:$0xf]
      %v1002 = vld [vmem:[%s999 + $0x8] sm:$0xf]
      %v1003 = vld [vmem:[%s999 + $0xc] sm:$0xf]
      %v1004 = vld [vmem:[%s999 + $0x10] sm:$0xf]
      %v1005 = vld [vmem:[%s999 + $0x14] sm:$0xf]
      %v1006 = vld [vmem:[%s999 + $0x18] sm:$0xf]
      %v1007 = vld [vmem:[%s999 + $0x1c] sm:$0xf]
      %v1008 = vld [vmem:[%s999 + $0x20] sm:$0xf]
      %v1009 = vld [vmem:[%s999 + $0x24] sm:$0xf]
      %v1010 = vld [vmem:[%s999 + $0x28] sm:$0xf]
      %v1011 = vld [vmem:[%s999 + $0x2c] sm:$0xf]
      %v1012 = vld [vmem:[%s999 + $0x30] sm:$0xf]
      %v1013 = vld [vmem:[%s999 + $0x34] sm:$0xf]
      %v1014 = vld [vmem:[%s999 + $0x38] sm:$0xf]
      %v1015 = vld [vmem:[%s999 + $0x3c] sm:$0xf]
      %v1016 = vld [vmem:[%s999 + $0x40] sm:$0xf]
      %v1017 = vld [vmem:[%s999 + $0x44] sm:$0xf]
      %v1018 = vld [vmem:[%s999 + $0x48] sm:$0xf]
      %v1019 = vld [vmem:[%s999 + $0x4c] sm:$0xf]
      %v1020 = vld [vmem:[%s999 + $0x50] sm:$0xf]
      %v1021 = vld [vmem:[%s999 + $0x54] sm:$0xf]
      %v1022 = vld [vmem:[%s999 + $0x58] sm:$0xf]
      %v1023 = vld [vmem:[%s999 + $0x5c] sm:$0xf]
      %v1024 = vld [vmem:[%s999 + $0x60] sm:$0x3]
      %v1050 = vunpack.c.l.b16 %v1000
      %v1051 = vunpack.c.l.b16 %v1001
      %v1052 = vunpack.c.l.b16 %v1002
      %v1053 = vunpack.c.l.b16 %v1003
      %v1054 = vunpack.c.l.b16 %v1004
      %v1055 = vunpack.c.l.b16 %v1005
      %v1056 = vunpack.c.l.b16 %v1006
      %v1057 = vunpack.c.l.b16 %v1007
      %v1058 = vunpack.c.l.b16 %v1008
      %v1059 = vunpack.c.l.b16 %v1009
      %v1060 = vunpack.c.l.b16 %v1010
      %v1061 = vunpack.c.l.b16 %v1011
      %v1062 = vunpack.c.l.b16 %v1012
      %v1063 = vunpack.c.l.b16 %v1013
      %v1064 = vunpack.c.l.b16 %v1014
      %v1065 = vunpack.c.l.b16 %v1015
      %v1066 = vunpack.c.l.b16 %v1016
      %v1067 = vunpack.c.l.b16 %v1017
      %v1068 = vunpack.c.l.b16 %v1018
      %v1069 = vunpack.c.l.b16 %v1019
      %v1070 = vunpack.c.l.b16 %v1020
      %v1071 = vunpack.c.l.b16 %v1021
      %v1072 = vunpack.c.l.b16 %v1022
      %v1073 = vunpack.c.l.b16 %v1023
      %v1074 = vunpack.c.l.b16 %v1024
      %v1075 = vpack.c.b16 %v1051, %v1050
      %v1076 = vpack.c.b16 %v1053, %v1052
      %v1077 = vpack.c.b16 %v1055, %v1054
      %v1078 = vpack.c.b16 %v1057, %v1056
      %v1079 = vpack.c.b16 %v1059, %v1058
      %v1080 = vpack.c.b16 %v1061, %v1060
      %v1081 = vpack.c.b16 %v1063, %v1062
      %v1082 = vpack.c.b16 %v1065, %v1064
      %v1083 = vpack.c.b16 %v1067, %v1066
      %v1084 = vpack.c.b16 %v1069, %v1068
      %v1085 = vpack.c.b16 %v1071, %v1070
      %v1086 = vpack.c.b16 %v1073, %v1072
      %v1087 = vpack.c.b16 %v1074, %v1074
      %1101 = vmatprep.subr.bf16.mxu0 0
      %1102 = vmatpush1.bf16.msra.mxu0 %v321
      %1103 = vmatprep.subr.bf16.mxu0 0
      %1104 = vmatpush1.bf16.msra.mxu0 %v322
      %1105 = vmatprep.subr.bf16.mxu0 0
      %1106 = vmatpush1.bf16.msra.mxu0 %v323
      %1107 = vmatprep.subr.bf16.mxu0 0
      %1108 = vmatpush1.bf16.msra.mxu0 %v324
      %1109 = vmatprep.subr.bf16.mxu0 0
      %1110 = vmatpush1.bf16.msra.mxu0 %v325
      %1111 = vmatprep.subr.bf16.mxu0 0
      %1112 = vmatpush1.bf16.msra.mxu0 %v326
      %1113 = vmatprep.subr.bf16.mxu0 0
      %1114 = vmatpush1.bf16.msra.mxu0 %v327
      %1115 = vmatprep.subr.bf16.mxu0 0
      %1116 = vmatpush1.bf16.msra.mxu0 %v328
      %1117 = vmatprep.subr.bf16.mxu0 0
      %1118 = vmatpush1.bf16.msra.mxu0 0
      %1119 = vmatprep.subr.bf16.mxu0 0
      %1120 = vmatpush1.bf16.msra.mxu0 0
      %1121 = vmatprep.subr.bf16.mxu0 0
      %1122 = vmatpush1.bf16.msra.mxu0 0
      %1123 = vmatprep.subr.bf16.mxu0 0
      %1124 = vmatpush1.bf16.msra.mxu0 0
      %1125 = vmatprep.subr.bf16.mxu0 0
      %1126 = vmatpush1.bf16.msra.mxu0 0
      %1127 = vmatprep.subr.bf16.mxu0 0
      %1128 = vmatpush1.bf16.msra.mxu0 0
      %1129 = vmatprep.subr.bf16.mxu0 0
      %1130 = vmatpush1.bf16.msra.mxu0 0
      %1131 = vmatprep.subr.bf16.mxu0 0
      %1132 = vmatpush1.bf16.msra.mxu0 0
      %1133 = vmatprep.mubr.bf16.mxu0 0
      %1134 = vmatmul.mubr.bf16.gmra.mrb[0].mxu0 %v1075
      %v1135 = vpop.f32.mrb[0].mxu0
      %v1136 = vadd.f32 0.0, %v1135
      %v1137 = vpop.f32.mrb[0].mxu0
      %v1138 = vpop.f32.mrb[0].mxu0
      %v1139 = vadd.f32 0.0, %v1138
      %v1140 = vpop.f32.mrb[0].mxu0
      %1141 = vmatprep.mubr.bf16.mxu0 0
      %1142 = vmatmul.mubr.bf16.gmra.mrb[0].mxu0 %v1076
      %v1143 = vpop.f32.mrb[0].mxu0
      %v1144 = vadd.f32 0.0, %v1143
      %v1145 = vpop.f32.mrb[0].mxu0
      %v1146 = vpop.f32.mrb[0].mxu0
      %v1147 = vadd.f32 0.0, %v1146
      %v1148 = vpop.f32.mrb[0].mxu0
      %1149 = vmatprep.mubr.bf16.mxu0 0
      %1150 = vmatmul.mubr.bf16.gmra.mrb[0].mxu0 %v1077
      %v1151 = vpop.f32.mrb[0].mxu0
      %v1152 = vadd.f32 0.0, %v1151
      %v1153 = vpop.f32.mrb[0].mxu0
      %v1154 = vpop.f32.mrb[0].mxu0
      %v1155 = vadd.f32 0.0, %v1154
      %v1156 = vpop.f32.mrb[0].mxu0
      %1157 = vmatprep.mubr.bf16.mxu0 0
      %1158 = vmatmul.mubr.bf16.gmra.mrb[0].mxu0 %v1078
      %v1159 = vpop.f32.mrb[0].mxu0
      %v1160 = vadd.f32 0.0, %v1159
      %v1161 = vpop.f32.mrb[0].mxu0
      %v1162 = vpop.f32.mrb[0].mxu0
      %v1163 = vadd.f32 0.0, %v1162
      %v1164 = vpop.f32.mrb[0].mxu0
      %1165 = vmatprep.mubr.bf16.mxu0 0
      %1166 = vmatmul.mubr.bf16.gmra.mrb[0].mxu0 %v1079
      %v1167 = vpop.f32.mrb[0].mxu0
      %v1168 = vadd.f32 0.0, %v1167
      %v1169 = vpop.f32.mrb[0].mxu0
      %v1170 = vpop.f32.mrb[0].mxu0
      %v1171 = vadd.f32 0.0, %v1170
      %v1172 = vpop.f32.mrb[0].mxu0
      %1173 = vmatprep.mubr.bf16.mxu0 0
      %1174 = vmatmul.mubr.bf16.gmra.mrb[0].mxu0 %v1080
      %v1175 = vpop.f32.mrb[0].mxu0
      %v1176 = vadd.f32 0.0, %v1175
      %v1177 = vpop.f32.mrb[0].mxu0
      %v1178 = vpop.f32.mrb[0].mxu0
      %v1179 = vadd.f32 0.0, %v1178
      %v1180 = vpop.f32.mrb[0].mxu0
      %1181 = vmatprep.mubr.bf16.mxu0 0
      %1182 = vmatmul.mubr.bf16.gmra.mrb[0].mxu0 %v1081
      %v1183 = vpop.f32.mrb[0].mxu0
      %v1184 = vadd.f32 0.0, %v1183
      %v1185 = vpop.f32.mrb[0].mxu0
      %v1186 = vpop.f32.mrb[0].mxu0
      %v1187 = vadd.f32 0.0, %v1186
      %v1188 = vpop.f32.mrb[0].mxu0
      %1189 = vmatprep.mubr.bf16.mxu0 0
      %1190 = vmatmul.mubr.bf16.gmra.mrb[0].mxu0 %v1082
      %v1191 = vpop.f32.mrb[0].mxu0
      %v1192 = vadd.f32 0.0, %v1191
      %v1193 = vpop.f32.mrb[0].mxu0
      %v1194 = vpop.f32.mrb[0].mxu0
      %v1195 = vadd.f32 0.0, %v1194
      %v1196 = vpop.f32.mrb[0].mxu0
      %1197 = vmatprep.mubr.bf16.mxu0 0
      %1198 = vmatmul.mubr.bf16.gmra.mrb[0].mxu0 %v1083
      %v1199 = vpop.f32.mrb[0].mxu0
      %v1200 = vadd.f32 0.0, %v1199
      %v1201 = vpop.f32.mrb[0].mxu0
      %v1202 = vpop.f32.mrb[0].mxu0
      %v1203 = vadd.f32 0.0, %v1202
      %v1204 = vpop.f32.mrb[0].mxu0
      %1205 = vmatprep.mubr.bf16.mxu0 0
      %1206 = vmatmul.mubr.bf16.gmra.mrb[0].mxu0 %v1084
      %v1207 = vpop.f32.mrb[0].mxu0
      %v1208 = vadd.f32 0.0, %v1207
      %v1209 = vpop.f32.mrb[0].mxu0
      %v1210 = vpop.f32.mrb[0].mxu0
      %v1211 = vadd.f32 0.0, %v1210
      %v1212 = vpop.f32.mrb[0].mxu0
      %1213 = vmatprep.mubr.bf16.mxu0 0
      %1214 = vmatmul.mubr.bf16.gmra.mrb[0].mxu0 %v1085
      %v1215 = vpop.f32.mrb[0].mxu0
      %v1216 = vadd.f32 0.0, %v1215
      %v1217 = vpop.f32.mrb[0].mxu0
      %v1218 = vpop.f32.mrb[0].mxu0
      %v1219 = vadd.f32 0.0, %v1218
      %v1220 = vpop.f32.mrb[0].mxu0
      %1221 = vmatprep.mubr.bf16.mxu0 0
      %1222 = vmatmul.mubr.bf16.gmra.mrb[0].mxu0 %v1086
      %v1223 = vpop.f32.mrb[0].mxu0
      %v1224 = vadd.f32 0.0, %v1223
      %v1225 = vpop.f32.mrb[0].mxu0
      %v1226 = vpop.f32.mrb[0].mxu0
      %v1227 = vadd.f32 0.0, %v1226
      %v1228 = vpop.f32.mrb[0].mxu0
      %1229 = vmatprep.mubr.bf16.mxu0 0
      %1230 = vmatmul.mubr.bf16.gmra.mrb[0].mxu0 %v1087
      %v1231 = vpop.f32.mrb[0].mxu0
      %v1232 = vadd.f32 0.0, %v1231
      %v1233 = vpop.f32.mrb[0].mxu0
      %v1234 = vpop.f32.mrb[0].mxu0
      %v1235 = vpop.f32.mrb[0].mxu0
      %1236 = vdwg.mxu0
      %v1237 = vmax.f32 %v974, %v1136
      %v1238 = vmax.f32 %v975, %v1139
      %v1239 = vmax.f32 %v976, %v1144
      %v1240 = vmax.f32 %v977, %v1147
      %v1241 = vmax.f32 %v978, %v1152
      %v1242 = vmax.f32 %v979, %v1155
      %v1243 = vmax.f32 %v980, %v1160
      %v1244 = vmax.f32 %v981, %v1163
      %v1245 = vmax.f32 %v982, %v1168
      %v1246 = vmax.f32 %v983, %v1171
      %v1247 = vmax.f32 %v984, %v1176
      %v1248 = vmax.f32 %v985, %v1179
      %v1249 = vmax.f32 %v986, %v1184
      %v1250 = vmax.f32 %v987, %v1187
      %v1251 = vmax.f32 %v988, %v1192
      %v1252 = vmax.f32 %v989, %v1195
      %v1253 = vmax.f32 %v990, %v1200
      %v1254 = vmax.f32 %v991, %v1203
      %v1255 = vmax.f32 %v992, %v1208
      %v1256 = vmax.f32 %v993, %v1211
      %v1257 = vmax.f32 %v994, %v1216
      %v1258 = vmax.f32 %v995, %v1219
      %v1259 = vmax.f32 %v996, %v1224
      %v1260 = vmax.f32 %v997, %v1227
      %v1261 = vmax.f32 %v998, %v1232
      %v1262 = vld [vmem:[%s2] sm:$0x1]
      %v1264 = vlaneseq
      %v1265 = vshrl.u32 %v1264, 7
      %v1266 = vsub.s32 0, %v1265
      %v1267 = vrot.slane %v1262, %v1266
      %v1269 = vadd.f32 %v1237, %v1267
      %v1270 = vadd.f32 %v1238, %v1267
      %v1271 = vadd.f32 %v1239, %v1267
      %v1272 = vadd.f32 %v1240, %v1267
      %v1273 = vadd.f32 %v1241, %v1267
      %v1274 = vadd.f32 %v1242, %v1267
      %v1275 = vadd.f32 %v1243, %v1267
      %v1276 = vadd.f32 %v1244, %v1267
      %v1277 = vadd.f32 %v1245, %v1267
      %v1278 = vadd.f32 %v1246, %v1267
      %v1279 = vadd.f32 %v1247, %v1267
      %v1280 = vadd.f32 %v1248, %v1267
      %v1281 = vadd.f32 %v1249, %v1267
      %v1282 = vadd.f32 %v1250, %v1267
      %v1283 = vadd.f32 %v1251, %v1267
      %v1284 = vadd.f32 %v1252, %v1267
      %v1285 = vadd.f32 %v1253, %v1267
      %v1286 = vadd.f32 %v1254, %v1267
      %v1287 = vadd.f32 %v1255, %v1267
      %v1288 = vadd.f32 %v1256, %v1267
      %v1289 = vadd.f32 %v1257, %v1267
      %v1290 = vadd.f32 %v1258, %v1267
      %v1291 = vadd.f32 %v1259, %v1267
      %v1292 = vadd.f32 %v1260, %v1267
      %v1293 = vadd.f32 %v1261, %v1267
      %v1294 = vmax.f32 %v1269, 0.0
      %v1295 = vmax.f32 %v1270, 0.0
      %v1296 = vmax.f32 %v1271, 0.0
      %v1297 = vmax.f32 %v1272, 0.0
      %v1298 = vmax.f32 %v1273, 0.0
      %v1299 = vmax.f32 %v1274, 0.0
      %v1300 = vmax.f32 %v1275, 0.0
      %v1301 = vmax.f32 %v1276, 0.0
      %v1302 = vmax.f32 %v1277, 0.0
      %v1303 = vmax.f32 %v1278, 0.0
      %v1304 = vmax.f32 %v1279, 0.0
      %v1305 = vmax.f32 %v1280, 0.0
      %v1306 = vmax.f32 %v1281, 0.0
      %v1307 = vmax.f32 %v1282, 0.0
      %v1308 = vmax.f32 %v1283, 0.0
      %v1309 = vmax.f32 %v1284, 0.0
      %v1310 = vmax.f32 %v1285, 0.0
      %v1311 = vmax.f32 %v1286, 0.0
      %v1312 = vmax.f32 %v1287, 0.0
      %v1313 = vmax.f32 %v1288, 0.0
      %v1314 = vmax.f32 %v1289, 0.0
      %v1315 = vmax.f32 %v1290, 0.0
      %v1316 = vmax.f32 %v1291, 0.0
      %v1317 = vmax.f32 %v1292, 0.0
      %v1318 = vmax.f32 %v1293, 0.0
      %1319 = vst [vmem:[%s170] sm:$0xff] %v1294
      %1320 = vst [vmem:[%s170 + $0x8] sm:$0xff] %v1295
      %1321 = vst [vmem:[%s170 + $0x10] sm:$0xff] %v1296
      %1322 = vst [vmem:[%s170 + $0x18] sm:$0xff] %v1297
      %1323 = vst [vmem:[%s170 + $0x20] sm:$0xff] %v1298
      %1324 = vst [vmem:[%s170 + $0x28] sm:$0xff] %v1299
      %1325 = vst [vmem:[%s170 + $0x30] sm:$0xff] %v1300
      %1326 = vst [vmem:[%s170 + $0x38] sm:$0xff] %v1301
      %1327 = vst [vmem:[%s170 + $0x40] sm:$0xff] %v1302
      %1328 = vst [vmem:[%s170 + $0x48] sm:$0xff] %v1303
      %1329 = vst [vmem:[%s170 + $0x50] sm:$0xff] %v1304
      %1330 = vst [vmem:[%s170 + $0x58] sm:$0xff] %v1305
      %1331 = vst [vmem:[%s170 + $0x60] sm:$0xff] %v1306
      %1332 = vst [vmem:[%s170 + $0x68] sm:$0xff] %v1307
      %1333 = vst [vmem:[%s170 + $0x70] sm:$0xff] %v1308
      %1334 = vst [vmem:[%s170 + $0x78] sm:$0xff] %v1309
      %1335 = vst [vmem:[%s170 + $0x80] sm:$0xff] %v1310
      %1336 = vst [vmem:[%s170 + $0x88] sm:$0xff] %v1311
      %1337 = vst [vmem:[%s170 + $0x90] sm:$0xff] %v1312
      %1338 = vst [vmem:[%s170 + $0x98] sm:$0xff] %v1313
      %1339 = vst [vmem:[%s170 + $0xa0] sm:$0xff] %v1314
      %1340 = vst [vmem:[%s170 + $0xa8] sm:$0xff] %v1315
      %1341 = vst [vmem:[%s170 + $0xb0] sm:$0xff] %v1316
      %1342 = vst [vmem:[%s170 + $0xb8] sm:$0xff] %v1317
      %1343 = vst [vmem:[%s170 + $0xc0] sm:$0xf] %v1318
      %p1344 = scmp.lt.s32.totalorder %s14, 1
      %s1345 = scalar_select %p1344, %s14, 1
      %s1346 = smul.addr %s1345, 25
      %s1347 = smul.addr %s1346, 8
      %s1348 = scalar_lea.vmem %s3, %s1347
      // Predicated region
      $region33: #{forward.3} parent=31 // pred_check
        %p1349 = pneg %p100
      $region34: #{forward.3} parent=31 // pred_check_branch
        %1351 = sbr.rel (%p1349) target = $region36
      $region35: #{forward.3} parent=31 // pred_region
        _
      $region36: #{forward.3} parent=31 // pred_fallthru
        _
    $region32: #{forward.3} parent=5 // pred_fallthru
      _
    %p1352 = scmp.le.s32.totalorder 2, %s9
    // Predicated region
    $region37: #{forward.3} parent=5 // pred_check
      %p1353 = pneg %p1352
    $region38: #{forward.3} parent=5 // pred_check_branch
      %1355 = sbr.rel (%p1353) target = $region40
    $region39: #{forward.3} parent=5 // pred_region
      %s1356 = ssub.s32 %s9, 2
      // Predicated region
      $region41: #{forward.3} parent=39 // pred_check
        %p1357 = pneg %p106
      $region42: #{forward.3} parent=39 // pred_check_branch
        %1359 = sbr.rel (%p1357) target = $region44
      $region43: #{forward.3} parent=39 // pred_region
        %p1360 = scmp.lt.s32.totalorder %s15, 1
        %s1361 = scalar_select %p1360, %s15, 1
        %s1362 = smul.addr %s1361, 25
        %s1363 = smul.addr %s1362, 8
        %s1364 = scalar_lea.vmem %s3, %s1363
      $region44: #{forward.3} parent=39 // pred_fallthru
        _
    $region40: #{forward.3} parent=5 // pred_fallthru
      _
  $region6: #{forward.3} parent=0 // loop_footer
    %s13 = sadd.s32 1, %s9
  $region7: #{forward.3} parent=0 // loop_footer_branch
    %8 = sbr.rel target = $region3
  $region8: #{forward.3} parent=0 // loop_exit
    _

// kernel: forward.4
$region0: #{forward.4}
  #allocation0 [shape = 'u32[]', space=smem, size = 0x4, offset = 0x4, fixed_abs, tag = 'smem constant byte address 0x4 - core index']
  #allocation1 [shape = 'u32[144,128]{1,0:T(1,128)}', space=vmem, size = 0x12000, scoped, tag = 'internal scratch']
  %s0 = inlined_call_operand.vmem [shape: bf16[2,4,25,256], index: 0, kind: input, shape index: {}]
  %s1 = inlined_call_operand.vmem [shape: bf16[256,128], index: 1, kind: input, shape index: {}]
  %s2 = inlined_call_operand.vmem [shape: f32[1,128], index: 2, kind: input, shape index: {}]
  %s3 = inlined_call_operand.vmem [shape: f32[2,25,128], index: 3, kind: output, shape index: {}]
  %s4 = sld [smem:[#allocation0]]
  $region45: #{forward.4} parent=0
    _
  %s6 = ssub.s32 1, %s4
  %s7 = scalar_select 0, %s6, %s4
  loop: start=0, step=1, limit=4
  $region2: #{forward.4} parent=0 // loop_pre_header
    _
  $region3: #{forward.4} parent=0 // loop_header
    %s9 = sphi 0, %s13
    %p10 = scmp.ge.s32.totalorder %s9, 4
    %s19 = sphi 0, %s21
    %s22 = sphi 0, %s19
    %s23 = sphi 0, %s22
    %s39 = sphi 0, %s23
    %s43 = sphi 0, %s43
    %s45 = sphi 0, %s43
    %s46 = sphi 0, %s45
    %s60 = sphi 0, %s46
    %s64 = sphi 0, %s64
    %s66 = sphi 0, %s64
    %s67 = sphi 0, %s66
    %s81 = sphi 0, %s67
    %s87 = sphi 0, %s89
    %s90 = sphi 0, %s87
    %s91 = sphi 0, %s90
    %s107 = sphi 0, %s91
  $region4: #{forward.4} parent=0 // loop_header_branch
    %12 = sbr.rel (%p10) target = $region8
  $region5: #{forward.4} parent=0 // loop_body
    %s14 = ssub.s32 %s9, 1
    %s15 = ssub.s32 %s9, 2
    %s16 = sadd.s32 %s9, 1
    %s17 = ssub.s32 %s9, %s16
    %p18 = scmp.eq.s32.totalorder %s17, 0
    %s20 = sadd.s32 %s19, 1
    %s21 = scalar_select %p18, %s19, %s20
    %p24 = pneg %p18
    %p25 = scmp.eq.s32.totalorder %s9, 1
    %p26 = por %p24, %p25
    %p27 = scmp.ne.s32.totalorder %s19, %s22
    %p28 = scmp.eq.s32.totalorder %s9, 0
    %p29 = por %p27, %p28
    %p30 = scmp.ne.s32.totalorder %s19, %s22
    %p31 = scmp.eq.s32.totalorder %s14, 1
    %p32 = por %p30, %p31
    %p33 = scmp.ne.s32.totalorder %s22, %s23
    %p34 = scmp.eq.s32.totalorder %s14, 0
    %p35 = por %p33, %p34
    %p36 = scmp.ne.s32.totalorder %s22, %s23
    %p37 = scmp.eq.s32.totalorder %s15, 1
    %p38 = por %p36, %p37
    %p40 = scmp.ne.s32.totalorder %s23, %s39
    %p41 = scmp.eq.s32.totalorder %s15, 0
    %p42 = por %p40, %p41
    %s44 = sadd.s32 %s43, 1
    %p47 = scmp.eq.s32.totalorder %s9, 1
    %p48 = scmp.ne.s32.totalorder %s43, %s45
    %p49 = scmp.eq.s32.totalorder %s9, 0
    %p50 = por %p48, %p49
    %p51 = scmp.ne.s32.totalorder %s43, %s45
    %p52 = scmp.eq.s32.totalorder %s14, 1
    %p53 = por %p51, %p52
    %p54 = scmp.ne.s32.totalorder %s45, %s46
    %p55 = scmp.eq.s32.totalorder %s14, 0
    %p56 = por %p54, %p55
    %p57 = scmp.ne.s32.totalorder %s45, %s46
    %p58 = scmp.eq.s32.totalorder %s15, 1
    %p59 = por %p57, %p58
    %p61 = scmp.ne.s32.totalorder %s46, %s60
    %p62 = scmp.eq.s32.totalorder %s15, 0
    %p63 = por %p61, %p62
    %s65 = sadd.s32 %s64, 1
    %p68 = scmp.eq.s32.totalorder %s9, 1
    %p69 = scmp.ne.s32.totalorder %s64, %s66
    %p70 = scmp.eq.s32.totalorder %s9, 0
    %p71 = por %p69, %p70
    %p72 = scmp.ne.s32.totalorder %s64, %s66
    %p73 = scmp.eq.s32.totalorder %s14, 1
    %p74 = por %p72, %p73
    %p75 = scmp.ne.s32.totalorder %s66, %s67
    %p76 = scmp.eq.s32.totalorder %s14, 0
    %p77 = por %p75, %p76
    %p78 = scmp.ne.s32.totalorder %s66, %s67
    %p79 = scmp.eq.s32.totalorder %s15, 1
    %p80 = por %p78, %p79
    %p82 = scmp.ne.s32.totalorder %s67, %s81
    %p83 = scmp.eq.s32.totalorder %s15, 0
    %p84 = por %p82, %p83
    %s85 = ssub.s32 %s9, %s16
    %p86 = scmp.eq.s32.totalorder %s85, 0
    %s88 = sadd.s32 %s87, 1
    %s89 = scalar_select %p86, %s87, %s88
    %p92 = pneg %p86
    %p93 = scmp.eq.s32.totalorder %s9, 1
    %p94 = por %p92, %p93
    %p95 = scmp.ne.s32.totalorder %s87, %s90
    %p96 = scmp.eq.s32.totalorder %s9, 0
    %p97 = por %p95, %p96
    %p98 = scmp.ne.s32.totalorder %s87, %s90
    %p99 = scmp.eq.s32.totalorder %s14, 1
    %p100 = por %p98, %p99
    %p101 = scmp.ne.s32.totalorder %s90, %s91
    %p102 = scmp.eq.s32.totalorder %s14, 0
    %p103 = por %p101, %p102
    %p104 = scmp.ne.s32.totalorder %s90, %s91
    %p105 = scmp.eq.s32.totalorder %s15, 1
    %p106 = por %p104, %p105
    %p108 = scmp.ne.s32.totalorder %s91, %s107
    %p109 = scmp.eq.s32.totalorder %s15, 0
    %p110 = por %p108, %p109
    %p111 = scmp.le.s32.totalorder 1, %s9
    %p112 = scmp.lt.s32.totalorder %s9, 3
    %p113 = pnand %p111, %p112
    %p114 = pneg %p113
    // Predicated region
    $region9: #{forward.4} parent=5 // pred_check
      _
    $region10: #{forward.4} parent=5 // pred_check_branch
      %116 = sbr.rel (%p113) target = $region12
    $region11: #{forward.4} parent=5 // pred_region
      %s117 = ssub.s32 %s9, 1
      // Predicated region
      $region13: #{forward.4} parent=11 // pred_check
        %p118 = pneg %p56
      $region14: #{forward.4} parent=11 // pred_check_branch
        %120 = sbr.rel (%p118) target = $region16
      $region15: #{forward.4} parent=11 // pred_region
        _
      $region16: #{forward.4} parent=11 // pred_fallthru
        _
      // Predicated region
      $region17: #{forward.4} parent=11 // pred_check
        %p121 = pneg %p77
      $region18: #{forward.4} parent=11 // pred_check_branch
        %123 = sbr.rel (%p121) target = $region20
      $region19: #{forward.4} parent=11 // pred_region
        _
      $region20: #{forward.4} parent=11 // pred_fallthru
        _
    $region12: #{forward.4} parent=5 // pred_fallthru
      _
    %p124 = scmp.lt.s32.totalorder %s9, 2
    // Predicated region
    $region21: #{forward.4} parent=5 // pred_check
      %p125 = pneg %p124
    $region22: #{forward.4} parent=5 // pred_check_branch
      %127 = sbr.rel (%p125) target = $region24
    $region23: #{forward.4} parent=5 // pred_region
      // Predicated region
      $region25: #{forward.4} parent=23 // pred_check
        %p128 = pneg %p29
      $region26: #{forward.4} parent=23 // pred_check_branch
        %130 = sbr.rel (%p128) target = $region28
      $region27: #{forward.4} parent=23 // pred_region
        %p131 = scmp.lt.s32.totalorder %s9, 1
        %s132 = scalar_select %p131, %s9, 1
        %s133 = smul.addr %s132, 32
        %s134 = smul.addr %s133, 4
        %s135 = scalar_lea.vmem %s0, %s134
      $region28: #{forward.4} parent=23 // pred_fallthru
        _
    $region24: #{forward.4} parent=5 // pred_fallthru
      _
    %p136 = scmp.le.s32.totalorder 1, %s9
    %p137 = scmp.lt.s32.totalorder %s9, 3
    %p138 = pnand %p136, %p137
    %p139 = pneg %p138
    // Predicated region
    $region29: #{forward.4} parent=5 // pred_check
      _
    $region30: #{forward.4} parent=5 // pred_check_branch
      %141 = sbr.rel (%p138) target = $region32
    $region31: #{forward.4} parent=5 // pred_region
      %s142 = ssub.s32 %s9, 1
      %p143 = scmp.lt.s32.totalorder %s14, 1
      %s144 = scalar_select %p143, %s14, 1
      %s145 = smul.addr %s144, 32
      %s146 = smul.addr %s145, 4
      %s147 = scalar_lea.vmem %s0, %s146
      %p148 = pneg %p35
      %p149 = pneg %p32
      %p150 = pneg %p56
      %p151 = pneg %p53
      %p152 = pneg %p77
      %p153 = pneg %p74
      %p154 = pneg %p103
      %p155 = pneg %p100
      %p156 = scmp.lt.s32.totalorder %s14, 1
      %s157 = scalar_select %p156, %s14, 1
      %s158 = smul.addr %s157, 4
      %s159 = smul.addr %s158, 8
      %s160 = scalar_lea.vmem %s3, %s159
      %p161 = scmp.lt.s32.totalorder %s14, 1
      %s162 = scalar_select %p161, %s14, 1
      %s163 = smul.addr %s162, 32
      %s164 = smul.addr %s163, 4
      %s165 = scalar_lea.vmem %s0, %s164
      %p166 = scmp.lt.s32.totalorder %s14, 1
      %s167 = scalar_select %p166, %s14, 1
      %s168 = smul.addr %s167, 4
      %s169 = smul.addr %s168, 8
      %s170 = scalar_lea.vmem %s3, %s169
      %v172 = vld [vmem:[%s1] sm:$0xf]
      %v173 = vld [vmem:[%s1 + $0x4] sm:$0xf]
      %v174 = vld [vmem:[%s1 + $0x8] sm:$0xf]
      %v175 = vld [vmem:[%s1 + $0xc] sm:$0xf]
      %v176 = vld [vmem:[%s1 + $0x10] sm:$0xf]
      %v177 = vld [vmem:[%s1 + $0x14] sm:$0xf]
      %v178 = vld [vmem:[%s1 + $0x18] sm:$0xf]
      %v179 = vld [vmem:[%s1 + $0x1c] sm:$0xf]
      %v180 = vld [vmem:[%s1 + $0x20] sm:$0xf]
      %v181 = vld [vmem:[%s1 + $0x24] sm:$0xf]
      %v182 = vld [vmem:[%s1 + $0x28] sm:$0xf]
      %v183 = vld [vmem:[%s1 + $0x2c] sm:$0xf]
      %v184 = vld [vmem:[%s1 + $0x30] sm:$0xf]
      %v185 = vld [vmem:[%s1 + $0x34] sm:$0xf]
      %v186 = vld [vmem:[%s1 + $0x38] sm:$0xf]
      %v187 = vld [vmem:[%s1 + $0x3c] sm:$0xf]
      %v188 = vld [vmem:[%s1 + $0x40] sm:$0xf]
      %v189 = vld [vmem:[%s1 + $0x44] sm:$0xf]
      %v190 = vld [vmem:[%s1 + $0x48] sm:$0xf]
      %v191 = vld [vmem:[%s1 + $0x4c] sm:$0xf]
      %v192 = vld [vmem:[%s1 + $0x50] sm:$0xf]
      %v193 = vld [vmem:[%s1 + $0x54] sm:$0xf]
      %v194 = vld [vmem:[%s1 + $0x58] sm:$0xf]
      %v195 = vld [vmem:[%s1 + $0x5c] sm:$0xf]
      %v196 = vld [vmem:[%s1 + $0x60] sm:$0xf]
      %v197 = vld [vmem:[%s1 + $0x64] sm:$0xf]
      %v198 = vld [vmem:[%s1 + $0x68] sm:$0xf]
      %v199 = vld [vmem:[%s1 + $0x6c] sm:$0xf]
      %v200 = vld [vmem:[%s1 + $0x70] sm:$0xf]
      %v201 = vld [vmem:[%s1 + $0x74] sm:$0xf]
      %v202 = vld [vmem:[%s1 + $0x78] sm:$0xf]
      %v203 = vld [vmem:[%s1 + $0x7c] sm:$0xf]
      %v204 = vld [vmem:[%s165] sm:$0xff]
      %v205 = vld [vmem:[%s165 + $0x8] sm:$0xff]
      %v206 = vld [vmem:[%s165 + $0x10] sm:$0xff]
      %v207 = vld [vmem:[%s165 + $0x18] sm:$0x11]
      %v212 = vunpack.c.l.b16 %v204
      %v213 = vunpack.c.h.b16 %v204
      %v214 = vunpack.c.l.b16 %v205
      %v215 = vunpack.c.h.b16 %v205
      %v216 = vunpack.c.l.b16 %v206
      %v217 = vunpack.c.h.b16 %v206
      %v218 = vunpack.c.l.b16 %v207
      %v219 = vunpack.c.h.b16 %v207
      %v220 = vpack.c.b16 %v214, %v212
      %v221 = vpack.c.b16 %v215, %v213
      %v222 = vpack.c.b16 %v218, %v216
      %v223 = vpack.c.b16 %v219, %v217
      %v260 = vunpack.c.l.b16 %v172
      %v261 = vunpack.c.l.b16 %v173
      %v262 = vunpack.c.l.b16 %v174
      %v263 = vunpack.c.l.b16 %v175
      %v264 = vunpack.c.l.b16 %v176
      %v265 = vunpack.c.l.b16 %v177
      %v266 = vunpack.c.l.b16 %v178
      %v267 = vunpack.c.l.b16 %v179
      %v268 = vunpack.c.l.b16 %v180
      %v269 = vunpack.c.l.b16 %v181
      %v270 = vunpack.c.l.b16 %v182
      %v271 = vunpack.c.l.b16 %v183
      %v272 = vunpack.c.l.b16 %v184
      %v273 = vunpack.c.l.b16 %v185
      %v274 = vunpack.c.l.b16 %v186
      %v275 = vunpack.c.l.b16 %v187
      %v276 = vunpack.c.l.b16 %v188
      %v277 = vunpack.c.l.b16 %v189
      %v278 = vunpack.c.l.b16 %v190
      %v279 = vunpack.c.l.b16 %v191
      %v280 = vunpack.c.l.b16 %v192
      %v281 = vunpack.c.l.b16 %v193
      %v282 = vunpack.c.l.b16 %v194
      %v283 = vunpack.c.l.b16 %v195
      %v284 = vunpack.c.l.b16 %v196
      %v285 = vunpack.c.l.b16 %v197
      %v286 = vunpack.c.l.b16 %v198
      %v287 = vunpack.c.l.b16 %v199
      %v288 = vunpack.c.l.b16 %v200
      %v289 = vunpack.c.l.b16 %v201
      %v290 = vunpack.c.l.b16 %v202
      %v291 = vunpack.c.l.b16 %v203
      %v292 = vpack.c.b16 %v261, %v260
      %v293 = vpack.c.b16 %v263, %v262
      %v294 = vpack.c.b16 %v265, %v264
      %v295 = vpack.c.b16 %v267, %v266
      %v296 = vpack.c.b16 %v269, %v268
      %v297 = vpack.c.b16 %v271, %v270
      %v298 = vpack.c.b16 %v273, %v272
      %v299 = vpack.c.b16 %v275, %v274
      %v300 = vpack.c.b16 %v277, %v276
      %v301 = vpack.c.b16 %v279, %v278
      %v302 = vpack.c.b16 %v281, %v280
      %v303 = vpack.c.b16 %v283, %v282
      %v304 = vpack.c.b16 %v285, %v284
      %v305 = vpack.c.b16 %v287, %v286
      %v306 = vpack.c.b16 %v289, %v288
      %v307 = vpack.c.b16 %v291, %v290
      %324 = vmatprep.subr.bf16.mxu0 0
      %325 = vmatpush1.bf16.msra.mxu0 %v292
      %326 = vmatprep.subr.bf16.mxu0 0
      %327 = vmatpush1.bf16.msra.mxu0 %v293
      %328 = vmatprep.subr.bf16.mxu0 0
      %329 = vmatpush1.bf16.msra.mxu0 %v294
      %330 = vmatprep.subr.bf16.mxu0 0
      %331 = vmatpush1.bf16.msra.mxu0 %v295
      %332 = vmatprep.subr.bf16.mxu0 0
      %333 = vmatpush1.bf16.msra.mxu0 %v296
      %334 = vmatprep.subr.bf16.mxu0 0
      %335 = vmatpush1.bf16.msra.mxu0 %v297
      %336 = vmatprep.subr.bf16.mxu0 0
      %337 = vmatpush1.bf16.msra.mxu0 %v298
      %338 = vmatprep.subr.bf16.mxu0 0
      %339 = vmatpush1.bf16.msra.mxu0 %v299
      %340 = vmatprep.subr.bf16.mxu0 0
      %341 = vmatpush1.bf16.msra.mxu0 %v300
      %342 = vmatprep.subr.bf16.mxu0 0
      %343 = vmatpush1.bf16.msra.mxu0 %v301
      %344 = vmatprep.subr.bf16.mxu0 0
      %345 = vmatpush1.bf16.msra.mxu0 %v302
      %346 = vmatprep.subr.bf16.mxu0 0
      %347 = vmatpush1.bf16.msra.mxu0 %v303
      %348 = vmatprep.subr.bf16.mxu0 0
      %349 = vmatpush1.bf16.msra.mxu0 %v304
      %350 = vmatprep.subr.bf16.mxu0 0
      %351 = vmatpush1.bf16.msra.mxu0 %v305
      %352 = vmatprep.subr.bf16.mxu0 0
      %353 = vmatpush1.bf16.msra.mxu0 %v306
      %354 = vmatprep.subr.bf16.mxu0 0
      %355 = vmatpush1.bf16.msra.mxu0 %v307
      %356 = vmatprep.mubr.bf16.mxu0 %v221
      %357 = vmatmul.mubr.bf16.gmra.mrb[0].mxu0 %v220
      %v358 = vpop.f32.mrb[0].mxu0
      %v359 = vadd.f32 0.0, %v358
      %v360 = vpop.f32.mrb[0].mxu0
      %v361 = vpop.f32.mrb[0].mxu0
      %v362 = vadd.f32 0.0, %v361
      %v363 = vpop.f32.mrb[0].mxu0
      %364 = vmatprep.mubr.bf16.mxu0 %v223
      %365 = vmatmul.mubr.bf16.gmra.mrb[0].mxu0 %v222
      %v366 = vpop.f32.mrb[0].mxu0
      %v367 = vadd.f32 0.0, %v366
      %v368 = vpop.f32.mrb[0].mxu0
      %v369 = vpop.f32.mrb[0].mxu0
      %v370 = vadd.f32 0.0, %v369
      %v371 = vpop.f32.mrb[0].mxu0
      %372 = vdwg.mxu0
      %s373 = scalar_lea.vmem %s165, 32
      %v374 = vld [vmem:[%s373] sm:$0xff]
      %v375 = vld [vmem:[%s373 + $0x8] sm:$0xff]
      %v376 = vld [vmem:[%s373 + $0x10] sm:$0xff]
      %v377 = vld [vmem:[%s373 + $0x18] sm:$0x11]
      %v382 = vunpack.c.l.b16 %v374
      %v383 = vunpack.c.h.b16 %v374
      %v384 = vunpack.c.l.b16 %v375
      %v385 = vunpack.c.h.b16 %v375
      %v386 = vunpack.c.l.b16 %v376
      %v387 = vunpack.c.h.b16 %v376
      %v388 = vunpack.c.l.b16 %v377
      %v389 = vunpack.c.h.b16 %v377
      %v390 = vpack.c.b16 %v384, %v382
      %v391 = vpack.c.b16 %v385, %v383
      %v392 = vpack.c.b16 %v388, %v386
      %v393 = vpack.c.b16 %v389, %v387
      %398 = vmatprep.subr.bf16.mxu0 0
      %399 = vmatpush1.bf16.msra.mxu0 %v292
      %400 = vmatprep.subr.bf16.mxu0 0
      %401 = vmatpush1.bf16.msra.mxu0 %v293
      %402 = vmatprep.subr.bf16.mxu0 0
      %403 = vmatpush1.bf16.msra.mxu0 %v294
      %404 = vmatprep.subr.bf16.mxu0 0
      %405 = vmatpush1.bf16.msra.mxu0 %v295
      %406 = vmatprep.subr.bf16.mxu0 0
      %407 = vmatpush1.bf16.msra.mxu0 %v296
      %408 = vmatprep.subr.bf16.mxu0 0
      %409 = vmatpush1.bf16.msra.mxu0 %v297
      %410 = vmatprep.subr.bf16.mxu0 0
      %411 = vmatpush1.bf16.msra.mxu0 %v298
      %412 = vmatprep.subr.bf16.mxu0 0
      %413 = vmatpush1.bf16.msra.mxu0 %v299
      %414 = vmatprep.subr.bf16.mxu0 0
      %415 = vmatpush1.bf16.msra.mxu0 %v300
      %416 = vmatprep.subr.bf16.mxu0 0
      %417 = vmatpush1.bf16.msra.mxu0 %v301
      %418 = vmatprep.subr.bf16.mxu0 0
      %419 = vmatpush1.bf16.msra.mxu0 %v302
      %420 = vmatprep.subr.bf16.mxu0 0
      %421 = vmatpush1.bf16.msra.mxu0 %v303
      %422 = vmatprep.subr.bf16.mxu0 0
      %423 = vmatpush1.bf16.msra.mxu0 %v304
      %424 = vmatprep.subr.bf16.mxu0 0
      %425 = vmatpush1.bf16.msra.mxu0 %v305
      %426 = vmatprep.subr.bf16.mxu0 0
      %427 = vmatpush1.bf16.msra.mxu0 %v306
      %428 = vmatprep.subr.bf16.mxu0 0
      %429 = vmatpush1.bf16.msra.mxu0 %v307
      %430 = vmatprep.mubr.bf16.mxu0 %v391
      %431 = vmatmul.mubr.bf16.gmra.mrb[0].mxu0 %v390
      %v432 = vpop.f32.mrb[0].mxu0
      %v433 = vadd.f32 0.0, %v432
      %v434 = vpop.f32.mrb[0].mxu0
      %v435 = vpop.f32.mrb[0].mxu0
      %v436 = vadd.f32 0.0, %v435
      %v437 = vpop.f32.mrb[0].mxu0
      %438 = vmatprep.mubr.bf16.mxu0 %v393
      %439 = vmatmul.mubr.bf16.gmra.mrb[0].mxu0 %v392
      %v440 = vpop.f32.mrb[0].mxu0
      %v441 = vadd.f32 0.0, %v440
      %v442 = vpop.f32.mrb[0].mxu0
      %v443 = vpop.f32.mrb[0].mxu0
      %v444 = vadd.f32 0.0, %v443
      %v445 = vpop.f32.mrb[0].mxu0
      %446 = vdwg.mxu0
      %v447 = vmax.f32 %v359, %v433
      %v448 = vmax.f32 %v362, %v436
      %v449 = vmax.f32 %v367, %v441
      %v450 = vmax.f32 %v370, %v444
      %s451 = scalar_lea.vmem %s165, 64
      %v452 = vld [vmem:[%s451] sm:$0xff]
      %v453 = vld [vmem:[%s451 + $0x8] sm:$0xff]
      %v454 = vld [vmem:[%s451 + $0x10] sm:$0xff]
      %v455 = vld [vmem:[%s451 + $0x18] sm:$0x11]
      %v460 = vunpack.c.l.b16 %v452
      %v461 = vunpack.c.h.b16 %v452
      %v462 = vunpack.c.l.b16 %v453
      %v463 = vunpack.c.h.b16 %v453
      %v464 = vunpack.c.l.b16 %v454
      %v465 = vunpack.c.h.b16 %v454
      %v466 = vunpack.c.l.b16 %v455
      %v467 = vunpack.c.h.b16 %v455
      %v468 = vpack.c.b16 %v462, %v460
      %v469 = vpack.c.b16 %v463, %v461
      %v470 = vpack.c.b16 %v466, %v464
      %v471 = vpack.c.b16 %v467, %v465
      %476 = vmatprep.subr.bf16.mxu0 0
      %477 = vmatpush1.bf16.msra.mxu0 %v292
      %478 = vmatprep.subr.bf16.mxu0 0
      %479 = vmatpush1.bf16.msra.mxu0 %v293
      %480 = vmatprep.subr.bf16.mxu0 0
      %481 = vmatpush1.bf16.msra.mxu0 %v294
      %482 = vmatprep.subr.bf16.mxu0 0
      %483 = vmatpush1.bf16.msra.mxu0 %v295
      %484 = vmatprep.subr.bf16.mxu0 0
      %485 = vmatpush1.bf16.msra.mxu0 %v296
      %486 = vmatprep.subr.bf16.mxu0 0
      %487 = vmatpush1.bf16.msra.mxu0 %v297
      %488 = vmatprep.subr.bf16.mxu0 0
      %489 = vmatpush1.bf16.msra.mxu0 %v298
      %490 = vmatprep.subr.bf16.mxu0 0
      %491 = vmatpush1.bf16.msra.mxu0 %v299
      %492 = vmatprep.subr.bf16.mxu0 0
      %493 = vmatpush1.bf16.msra.mxu0 %v300
      %494 = vmatprep.subr.bf16.mxu0 0
      %495 = vmatpush1.bf16.msra.mxu0 %v301
      %496 = vmatprep.subr.bf16.mxu0 0
      %497 = vmatpush1.bf16.msra.mxu0 %v302
      %498 = vmatprep.subr.bf16.mxu0 0
      %499 = vmatpush1.bf16.msra.mxu0 %v303
      %500 = vmatprep.subr.bf16.mxu0 0
      %501 = vmatpush1.bf16.msra.mxu0 %v304
      %502 = vmatprep.subr.bf16.mxu0 0
      %503 = vmatpush1.bf16.msra.mxu0 %v305
      %504 = vmatprep.subr.bf16.mxu0 0
      %505 = vmatpush1.bf16.msra.mxu0 %v306
      %506 = vmatprep.subr.bf16.mxu0 0
      %507 = vmatpush1.bf16.msra.mxu0 %v307
      %508 = vmatprep.mubr.bf16.mxu0 %v469
      %509 = vmatmul.mubr.bf16.gmra.mrb[0].mxu0 %v468
      %v510 = vpop.f32.mrb[0].mxu0
      %v511 = vadd.f32 0.0, %v510
      %v512 = vpop.f32.mrb[0].mxu0
      %v513 = vpop.f32.mrb[0].mxu0
      %v514 = vadd.f32 0.0, %v513
      %v515 = vpop.f32.mrb[0].mxu0
      %516 = vmatprep.mubr.bf16.mxu0 %v471
      %517 = vmatmul.mubr.bf16.gmra.mrb[0].mxu0 %v470
      %v518 = vpop.f32.mrb[0].mxu0
      %v519 = vadd.f32 0.0, %v518
      %v520 = vpop.f32.mrb[0].mxu0
      %v521 = vpop.f32.mrb[0].mxu0
      %v522 = vadd.f32 0.0, %v521
      %v523 = vpop.f32.mrb[0].mxu0
      %524 = vdwg.mxu0
      %v525 = vmax.f32 %v447, %v511
      %v526 = vmax.f32 %v448, %v514
      %v527 = vmax.f32 %v449, %v519
      %v528 = vmax.f32 %v450, %v522
      %s529 = scalar_lea.vmem %s165, 96
      %v530 = vld [vmem:[%s529] sm:$0xff]
      %v531 = vld [vmem:[%s529 + $0x8] sm:$0xff]
      %v532 = vld [vmem:[%s529 + $0x10] sm:$0xff]
      %v533 = vld [vmem:[%s529 + $0x18] sm:$0x11]
      %v538 = vunpack.c.l.b16 %v530
      %v539 = vunpack.c.h.b16 %v530
      %v540 = vunpack.c.l.b16 %v531
      %v541 = vunpack.c.h.b16 %v531
      %v542 = vunpack.c.l.b16 %v532
      %v543 = vunpack.c.h.b16 %v532
      %v544 = vunpack.c.l.b16 %v533
      %v545 = vunpack.c.h.b16 %v533
      %v546 = vpack.c.b16 %v540, %v538
      %v547 = vpack.c.b16 %v541, %v539
      %v548 = vpack.c.b16 %v544, %v542
      %v549 = vpack.c.b16 %v545, %v543
      %554 = vmatprep.subr.bf16.mxu0 0
      %555 = vmatpush1.bf16.msra.mxu0 %v292
      %556 = vmatprep.subr.bf16.mxu0 0
      %557 = vmatpush1.bf16.msra.mxu0 %v293
      %558 = vmatprep.subr.bf16.mxu0 0
      %559 = vmatpush1.bf16.msra.mxu0 %v294
      %560 = vmatprep.subr.bf16.mxu0 0
      %561 = vmatpush1.bf16.msra.mxu0 %v295
      %562 = vmatprep.subr.bf16.mxu0 0
      %563 = vmatpush1.bf16.msra.mxu0 %v296
      %564 = vmatprep.subr.bf16.mxu0 0
      %565 = vmatpush1.bf16.msra.mxu0 %v297
      %566 = vmatprep.subr.bf16.mxu0 0
      %567 = vmatpush1.bf16.msra.mxu0 %v298
      %568 = vmatprep.subr.bf16.mxu0 0
      %569 = vmatpush1.bf16.msra.mxu0 %v299
      %570 = vmatprep.subr.bf16.mxu0 0
      %571 = vmatpush1.bf16.msra.mxu0 %v300
      %572 = vmatprep.subr.bf16.mxu0 0
      %573 = vmatpush1.bf16.msra.mxu0 %v301
      %574 = vmatprep.subr.bf16.mxu0 0
      %575 = vmatpush1.bf16.msra.mxu0 %v302
      %576 = vmatprep.subr.bf16.mxu0 0
      %577 = vmatpush1.bf16.msra.mxu0 %v303
      %578 = vmatprep.subr.bf16.mxu0 0
      %579 = vmatpush1.bf16.msra.mxu0 %v304
      %580 = vmatprep.subr.bf16.mxu0 0
      %581 = vmatpush1.bf16.msra.mxu0 %v305
      %582 = vmatprep.subr.bf16.mxu0 0
      %583 = vmatpush1.bf16.msra.mxu0 %v306
      %584 = vmatprep.subr.bf16.mxu0 0
      %585 = vmatpush1.bf16.msra.mxu0 %v307
      %586 = vmatprep.mubr.bf16.mxu0 %v547
      %587 = vmatmul.mubr.bf16.gmra.mrb[0].mxu0 %v546
      %v588 = vpop.f32.mrb[0].mxu0
      %v589 = vadd.f32 0.0, %v588
      %v590 = vpop.f32.mrb[0].mxu0
      %v591 = vpop.f32.mrb[0].mxu0
      %v592 = vadd.f32 0.0, %v591
      %v593 = vpop.f32.mrb[0].mxu0
      %594 = vmatprep.mubr.bf16.mxu0 %v549
      %595 = vmatmul.mubr.bf16.gmra.mrb[0].mxu0 %v548
      %v596 = vpop.f32.mrb[0].mxu0
      %v597 = vadd.f32 0.0, %v596
      %v598 = vpop.f32.mrb[0].mxu0
      %v599 = vpop.f32.mrb[0].mxu0
      %v600 = vadd.f32 0.0, %v599
      %v601 = vpop.f32.mrb[0].mxu0
      %602 = vdwg.mxu0
      %v603 = vmax.f32 %v525, %v589
      %v604 = vmax.f32 %v526, %v592
      %v605 = vmax.f32 %v527, %v597
      %v606 = vmax.f32 %v528, %v600
      %v607 = vld [vmem:[%s2] sm:$0x1]
      %v609 = vlaneseq
      %v610 = vshrl.u32 %v609, 7
      %v611 = vsub.s32 0, %v610
      %v612 = vrot.slane %v607, %v611
      %v614 = vadd.f32 %v603, %v612
      %v615 = vadd.f32 %v604, %v612
      %v616 = vadd.f32 %v605, %v612
      %v617 = vadd.f32 %v606, %v612
      %v618 = vmax.f32 %v614, 0.0
      %v619 = vmax.f32 %v615, 0.0
      %v620 = vmax.f32 %v616, 0.0
      %v621 = vmax.f32 %v617, 0.0
      %622 = vst [vmem:[%s170] sm:$0xff] %v618
      %623 = vst [vmem:[%s170 + $0x8] sm:$0xff] %v619
      %624 = vst [vmem:[%s170 + $0x10] sm:$0xff] %v620
      %625 = vst [vmem:[%s170 + $0x18] sm:$0x1] %v621
      %p626 = scmp.lt.s32.totalorder %s14, 1
      %s627 = scalar_select %p626, %s14, 1
      %s628 = smul.addr %s627, 4
      %s629 = smul.addr %s628, 8
      %s630 = scalar_lea.vmem %s3, %s629
      // Predicated region
      $region33: #{forward.4} parent=31 // pred_check
        %p631 = pneg %p100
      $region34: #{forward.4} parent=31 // pred_check_branch
        %633 = sbr.rel (%p631) target = $region36
      $region35: #{forward.4} parent=31 // pred_region
        _
      $region36: #{forward.4} parent=31 // pred_fallthru
        _
    $region32: #{forward.4} parent=5 // pred_fallthru
      _
    %p634 = scmp.le.s32.totalorder 2, %s9
    // Predicated region
    $region37: #{forward.4} parent=5 // pred_check
      %p635 = pneg %p634
    $region38: #{forward.4} parent=5 // pred_check_branch
      %637 = sbr.rel (%p635) target = $region40
    $region39: #{forward.4} parent=5 // pred_region
      %s638 = ssub.s32 %s9, 2
      // Predicated region
      $region41: #{forward.4} parent=39 // pred_check
        %p639 = pneg %p106
      $region42: #{forward.4} parent=39 // pred_check_branch
        %641 = sbr.rel (%p639) target = $region44
      $region43: #{forward.4} parent=39 // pred_region
        %p642 = scmp.lt.s32.totalorder %s15, 1
        %s643 = scalar_select %p642, %s15, 1
        %s644 = smul.addr %s643, 4
        %s645 = smul.addr %s644, 8
        %s646 = scalar_lea.vmem %s3, %s645
      $region44: #{forward.4} parent=39 // pred_fallthru
        _
    $region40: #{forward.4} parent=5 // pred_fallthru
      _
  $region6: #{forward.4} parent=0 // loop_footer
    %s13 = sadd.s32 1, %s9
  $region7: #{forward.4} parent=0 // loop_footer_branch
    %8 = sbr.rel target = $region3
  $region8: #{forward.4} parent=0 // loop_exit
    _

// kernel: forward.5
$region0: #{forward.5}
  #allocation0 [shape = 'u32[]', space=smem, size = 0x4, offset = 0x4, fixed_abs, tag = 'smem constant byte address 0x4 - core index']
  #allocation1 [shape = 'u32[144,128]{1,0:T(1,128)}', space=vmem, size = 0x12000, scoped, tag = 'internal scratch']
  %s0 = inlined_call_operand.vmem [shape: bf16[2,3200], index: 0, kind: input, shape index: {}]
  %s1 = inlined_call_operand.vmem [shape: bf16[3200,128], index: 1, kind: input, shape index: {}]
  %s2 = inlined_call_operand.vmem [shape: f32[1,128], index: 2, kind: input, shape index: {}]
  %s3 = inlined_call_operand.vmem [shape: bf16[128,128], index: 3, kind: input, shape index: {}]
  %s4 = inlined_call_operand.vmem [shape: f32[1,128], index: 4, kind: input, shape index: {}]
  %s5 = inlined_call_operand.vmem [shape: bf16[128,128], index: 5, kind: input, shape index: {}]
  %s6 = inlined_call_operand.vmem [shape: f32[1,128], index: 6, kind: input, shape index: {}]
  %s7 = inlined_call_operand.hbm [shape: f32[2,128], index: 7, kind: output, shape index: {}]
  %s8 = sld [smem:[#allocation0]]
  $region38: #{forward.5} parent=0
    _
  %s10 = ssub.s32 1, %s8
  %s11 = scalar_select 0, %s10, %s8
  $region1: #{forward.5} parent=0
    #allocation2 [shape = 'u8[1024]{0}', space=vmem, size = 0x400, scoped, tag = 'output window, operand 0, single buffered']
    #allocation3 [shape = 's32[1]{0}', space=sflag, size = 0x4, scoped, tag = 'scoped memory for forward.5']
    %12 = vsyncpa [#allocation3], 0
    // Predicated region
    $region2: #{forward.5} parent=1 // pred_check
      _
    $region3: #{forward.5} parent=1 // pred_check_branch
      %14 = sbr.rel (0) target = $region5
    $region4: #{forward.5} parent=1 // pred_region
      _
    $region5: #{forward.5} parent=1 // pred_fallthru
      _
    // Predicated region
    $region6: #{forward.5} parent=1 // pred_check
      _
    $region7: #{forward.5} parent=1 // pred_check_branch
      %16 = sbr.rel (0) target = $region9
    $region8: #{forward.5} parent=1 // pred_region
      _
    $region9: #{forward.5} parent=1 // pred_fallthru
      _
    // Predicated region
    $region10: #{forward.5} parent=1 // pred_check
      _
    $region11: #{forward.5} parent=1 // pred_check_branch
      %18 = sbr.rel (0) target = $region13
    $region12: #{forward.5} parent=1 // pred_region
      _
    $region13: #{forward.5} parent=1 // pred_fallthru
      _
    // Predicated region
    $region14: #{forward.5} parent=1 // pred_check
      _
    $region15: #{forward.5} parent=1 // pred_check_branch
      %20 = sbr.rel (0) target = $region17
    $region16: #{forward.5} parent=1 // pred_region
      _
    $region17: #{forward.5} parent=1 // pred_fallthru
      _
    // Predicated region
    $region18: #{forward.5} parent=1 // pred_check
      _
    $region19: #{forward.5} parent=1 // pred_check_branch
      %22 = sbr.rel (0) target = $region21
    $region20: #{forward.5} parent=1 // pred_region
      _
    $region21: #{forward.5} parent=1 // pred_fallthru
      _
    // Predicated region
    $region22: #{forward.5} parent=1 // pred_check
      _
    $region23: #{forward.5} parent=1 // pred_check_branch
      %24 = sbr.rel (0) target = $region25
    $region24: #{forward.5} parent=1 // pred_region
      _
    $region25: #{forward.5} parent=1 // pred_fallthru
      _
    // Predicated region
    $region26: #{forward.5} parent=1 // pred_check
      _
    $region27: #{forward.5} parent=1 // pred_check_branch
      %26 = sbr.rel (0) target = $region29
    $region28: #{forward.5} parent=1 // pred_region
      _
    $region29: #{forward.5} parent=1 // pred_fallthru
      _
    %v28 = vld [vmem:[%s0] sm:$0xff]
    %v29 = vld [vmem:[%s0 + $0x8] sm:$0xff]
    %v30 = vld [vmem:[%s0 + $0x10] sm:$0xff]
    %v31 = vld [vmem:[%s0 + $0x18] sm:$0x1]
    %v32 = vld [vmem:[%s1] sm:$0xf]
    %v33 = vld [vmem:[%s1 + $0x4] sm:$0xf]
    %v34 = vld [vmem:[%s1 + $0x8] sm:$0xf]
    %v35 = vld [vmem:[%s1 + $0xc] sm:$0xf]
    %v36 = vld [vmem:[%s1 + $0x10] sm:$0xf]
    %v37 = vld [vmem:[%s1 + $0x14] sm:$0xf]
    %v38 = vld [vmem:[%s1 + $0x18] sm:$0xf]
    %v39 = vld [vmem:[%s1 + $0x1c] sm:$0xf]
    %v40 = vld [vmem:[%s1 + $0x20] sm:$0xf]
    %v41 = vld [vmem:[%s1 + $0x24] sm:$0xf]
    %v42 = vld [vmem:[%s1 + $0x28] sm:$0xf]
    %v43 = vld [vmem:[%s1 + $0x2c] sm:$0xf]
    %v44 = vld [vmem:[%s1 + $0x30] sm:$0xf]
    %v45 = vld [vmem:[%s1 + $0x34] sm:$0xf]
    %v46 = vld [vmem:[%s1 + $0x38] sm:$0xf]
    %v47 = vld [vmem:[%s1 + $0x3c] sm:$0xf]
    %v48 = vld [vmem:[%s1 + $0x40] sm:$0xf]
    %v49 = vld [vmem:[%s1 + $0x44] sm:$0xf]
    %v50 = vld [vmem:[%s1 + $0x48] sm:$0xf]
    %v51 = vld [vmem:[%s1 + $0x4c] sm:$0xf]
    %v52 = vld [vmem:[%s1 + $0x50] sm:$0xf]
    %v53 = vld [vmem:[%s1 + $0x54] sm:$0xf]
    %v54 = vld [vmem:[%s1 + $0x58] sm:$0xf]
    %v55 = vld [vmem:[%s1 + $0x5c] sm:$0xf]
    %v56 = vld [vmem:[%s1 + $0x60] sm:$0xf]
    %v57 = vld [vmem:[%s1 + $0x64] sm:$0xf]
    %v58 = vld [vmem:[%s1 + $0x68] sm:$0xf]
    %v59 = vld [vmem:[%s1 + $0x6c] sm:$0xf]
    %v60 = vld [vmem:[%s1 + $0x70] sm:$0xf]
    %v61 = vld [vmem:[%s1 + $0x74] sm:$0xf]
    %v62 = vld [vmem:[%s1 + $0x78] sm:$0xf]
    %v63 = vld [vmem:[%s1 + $0x7c] sm:$0xf]
    %v64 = vld [vmem:[%s1 + $0x80] sm:$0xf]
    %v65 = vld [vmem:[%s1 + $0x84] sm:$0xf]
    %v66 = vld [vmem:[%s1 + $0x88] sm:$0xf]
    %v67 = vld [vmem:[%s1 + $0x8c] sm:$0xf]
    %v68 = vld [vmem:[%s1 + $0x90] sm:$0xf]
    %v69 = vld [vmem:[%s1 + $0x94] sm:$0xf]
    %v70 = vld [vmem:[%s1 + $0x98] sm:$0xf]
    %v71 = vld [vmem:[%s1 + $0x9c] sm:$0xf]
    %v72 = vld [vmem:[%s1 + $0xa0] sm:$0xf]
    %v73 = vld [vmem:[%s1 + $0xa4] sm:$0xf]
    %v74 = vld [vmem:[%s1 + $0xa8] sm:$0xf]
    %v75 = vld [vmem:[%s1 + $0xac] sm:$0xf]
    %v76 = vld [vmem:[%s1 + $0xb0] sm:$0xf]
    %v77 = vld [vmem:[%s1 + $0xb4] sm:$0xf]
    %v78 = vld [vmem:[%s1 + $0xb8] sm:$0xf]
    %v79 = vld [vmem:[%s1 + $0xbc] sm:$0xf]
    %v80 = vld [vmem:[%s1 + $0xc0] sm:$0xf]
    %v81 = vld [vmem:[%s1 + $0xc4] sm:$0xf]
    %v82 = vld [vmem:[%s1 + $0xc8] sm:$0xf]
    %v83 = vld [vmem:[%s1 + $0xcc] sm:$0xf]
    %v84 = vld [vmem:[%s1 + $0xd0] sm:$0xf]
    %v85 = vld [vmem:[%s1 + $0xd4] sm:$0xf]
    %v86 = vld [vmem:[%s1 + $0xd8] sm:$0xf]
    %v87 = vld [vmem:[%s1 + $0xdc] sm:$0xf]
    %v88 = vld [vmem:[%s1 + $0xe0] sm:$0xf]
    %v89 = vld [vmem:[%s1 + $0xe4] sm:$0xf]
    %v90 = vld [vmem:[%s1 + $0xe8] sm:$0xf]
    %v91 = vld [vmem:[%s1 + $0xec] sm:$0xf]
    %v92 = vld [vmem:[%s1 + $0xf0] sm:$0xf]
    %v93 = vld [vmem:[%s1 + $0xf4] sm:$0xf]
    %v94 = vld [vmem:[%s1 + $0xf8] sm:$0xf]
    %v95 = vld [vmem:[%s1 + $0xfc] sm:$0xf]
    %v96 = vld [vmem:[%s1 + $0x100] sm:$0xf]
    %v97 = vld [vmem:[%s1 + $0x104] sm:$0xf]
    %v98 = vld [vmem:[%s1 + $0x108] sm:$0xf]
    %v99 = vld [vmem:[%s1 + $0x10c] sm:$0xf]
    %v100 = vld [vmem:[%s1 + $0x110] sm:$0xf]
    %v101 = vld [vmem:[%s1 + $0x114] sm:$0xf]
    %v102 = vld [vmem:[%s1 + $0x118] sm:$0xf]
    %v103 = vld [vmem:[%s1 + $0x11c] sm:$0xf]
    %v104 = vld [vmem:[%s1 + $0x120] sm:$0xf]
    %v105 = vld [vmem:[%s1 + $0x124] sm:$0xf]
    %v106 = vld [vmem:[%s1 + $0x128] sm:$0xf]
    %v107 = vld [vmem:[%s1 + $0x12c] sm:$0xf]
    %v108 = vld [vmem:[%s1 + $0x130] sm:$0xf]
    %v109 = vld [vmem:[%s1 + $0x134] sm:$0xf]
    %v110 = vld [vmem:[%s1 + $0x138] sm:$0xf]
    %v111 = vld [vmem:[%s1 + $0x13c] sm:$0xf]
    %v112 = vld [vmem:[%s1 + $0x140] sm:$0xf]
    %v113 = vld [vmem:[%s1 + $0x144] sm:$0xf]
    %v114 = vld [vmem:[%s1 + $0x148] sm:$0xf]
    %v115 = vld [vmem:[%s1 + $0x14c] sm:$0xf]
    %v116 = vld [vmem:[%s1 + $0x150] sm:$0xf]
    %v117 = vld [vmem:[%s1 + $0x154] sm:$0xf]
    %v118 = vld [vmem:[%s1 + $0x158] sm:$0xf]
    %v119 = vld [vmem:[%s1 + $0x15c] sm:$0xf]
    %v120 = vld [vmem:[%s1 + $0x160] sm:$0xf]
    %v121 = vld [vmem:[%s1 + $0x164] sm:$0xf]
    %v122 = vld [vmem:[%s1 + $0x168] sm:$0xf]
    %v123 = vld [vmem:[%s1 + $0x16c] sm:$0xf]
    %v124 = vld [vmem:[%s1 + $0x170] sm:$0xf]
    %v125 = vld [vmem:[%s1 + $0x174] sm:$0xf]
    %v126 = vld [vmem:[%s1 + $0x178] sm:$0xf]
    %v127 = vld [vmem:[%s1 + $0x17c] sm:$0xf]
    %v128 = vld [vmem:[%s1 + $0x180] sm:$0xf]
    %v129 = vld [vmem:[%s1 + $0x184] sm:$0xf]
    %v130 = vld [vmem:[%s1 + $0x188] sm:$0xf]
    %v131 = vld [vmem:[%s1 + $0x18c] sm:$0xf]
    %v132 = vld [vmem:[%s1 + $0x190] sm:$0xf]
    %v133 = vld [vmem:[%s1 + $0x194] sm:$0xf]
    %v134 = vld [vmem:[%s1 + $0x198] sm:$0xf]
    %v135 = vld [vmem:[%s1 + $0x19c] sm:$0xf]
    %v136 = vld [vmem:[%s1 + $0x1a0] sm:$0xf]
    %v137 = vld [vmem:[%s1 + $0x1a4] sm:$0xf]
    %v138 = vld [vmem:[%s1 + $0x1a8] sm:$0xf]
    %v139 = vld [vmem:[%s1 + $0x1ac] sm:$0xf]
    %v140 = vld [vmem:[%s1 + $0x1b0] sm:$0xf]
    %v141 = vld [vmem:[%s1 + $0x1b4] sm:$0xf]
    %v142 = vld [vmem:[%s1 + $0x1b8] sm:$0xf]
    %v143 = vld [vmem:[%s1 + $0x1bc] sm:$0xf]
    %v144 = vld [vmem:[%s1 + $0x1c0] sm:$0xf]
    %v145 = vld [vmem:[%s1 + $0x1c4] sm:$0xf]
    %v146 = vld [vmem:[%s1 + $0x1c8] sm:$0xf]
    %v147 = vld [vmem:[%s1 + $0x1cc] sm:$0xf]
    %v148 = vld [vmem:[%s1 + $0x1d0] sm:$0xf]
    %v149 = vld [vmem:[%s1 + $0x1d4] sm:$0xf]
    %v150 = vld [vmem:[%s1 + $0x1d8] sm:$0xf]
    %v151 = vld [vmem:[%s1 + $0x1dc] sm:$0xf]
    %v152 = vld [vmem:[%s1 + $0x1e0] sm:$0xf]
    %v153 = vld [vmem:[%s1 + $0x1e4] sm:$0xf]
    %v154 = vld [vmem:[%s1 + $0x1e8] sm:$0xf]
    %v155 = vld [vmem:[%s1 + $0x1ec] sm:$0xf]
    %v156 = vld [vmem:[%s1 + $0x1f0] sm:$0xf]
    %v157 = vld [vmem:[%s1 + $0x1f4] sm:$0xf]
    %v158 = vld [vmem:[%s1 + $0x1f8] sm:$0xf]
    %v159 = vld [vmem:[%s1 + $0x1fc] sm:$0xf]
    %v160 = vld [vmem:[%s1 + $0x200] sm:$0xf]
    %v161 = vld [vmem:[%s1 + $0x204] sm:$0xf]
    %v162 = vld [vmem:[%s1 + $0x208] sm:$0xf]
    %v163 = vld [vmem:[%s1 + $0x20c] sm:$0xf]
    %v164 = vld [vmem:[%s1 + $0x210] sm:$0xf]
    %v165 = vld [vmem:[%s1 + $0x214] sm:$0xf]
    %v166 = vld [vmem:[%s1 + $0x218] sm:$0xf]
    %v167 = vld [vmem:[%s1 + $0x21c] sm:$0xf]
    %v168 = vld [vmem:[%s1 + $0x220] sm:$0xf]
    %v169 = vld [vmem:[%s1 + $0x224] sm:$0xf]
    %v170 = vld [vmem:[%s1 + $0x228] sm:$0xf]
    %v171 = vld [vmem:[%s1 + $0x22c] sm:$0xf]
    %v172 = vld [vmem:[%s1 + $0x230] sm:$0xf]
    %v173 = vld [vmem:[%s1 + $0x234] sm:$0xf]
    %v174 = vld [vmem:[%s1 + $0x238] sm:$0xf]
    %v175 = vld [vmem:[%s1 + $0x23c] sm:$0xf]
    %v176 = vld [vmem:[%s1 + $0x240] sm:$0xf]
    %v177 = vld [vmem:[%s1 + $0x244] sm:$0xf]
    %v178 = vld [vmem:[%s1 + $0x248] sm:$0xf]
    %v179 = vld [vmem:[%s1 + $0x24c] sm:$0xf]
    %v180 = vld [vmem:[%s1 + $0x250] sm:$0xf]
    %v181 = vld [vmem:[%s1 + $0x254] sm:$0xf]
    %v182 = vld [vmem:[%s1 + $0x258] sm:$0xf]
    %v183 = vld [vmem:[%s1 + $0x25c] sm:$0xf]
    %v184 = vld [vmem:[%s1 + $0x260] sm:$0xf]
    %v185 = vld [vmem:[%s1 + $0x264] sm:$0xf]
    %v186 = vld [vmem:[%s1 + $0x268] sm:$0xf]
    %v187 = vld [vmem:[%s1 + $0x26c] sm:$0xf]
    %v188 = vld [vmem:[%s1 + $0x270] sm:$0xf]
    %v189 = vld [vmem:[%s1 + $0x274] sm:$0xf]
    %v190 = vld [vmem:[%s1 + $0x278] sm:$0xf]
    %v191 = vld [vmem:[%s1 + $0x27c] sm:$0xf]
    %v192 = vld [vmem:[%s1 + $0x280] sm:$0xf]
    %v193 = vld [vmem:[%s1 + $0x284] sm:$0xf]
    %v194 = vld [vmem:[%s1 + $0x288] sm:$0xf]
    %v195 = vld [vmem:[%s1 + $0x28c] sm:$0xf]
    %v196 = vld [vmem:[%s1 + $0x290] sm:$0xf]
    %v197 = vld [vmem:[%s1 + $0x294] sm:$0xf]
    %v198 = vld [vmem:[%s1 + $0x298] sm:$0xf]
    %v199 = vld [vmem:[%s1 + $0x29c] sm:$0xf]
    %v200 = vld [vmem:[%s1 + $0x2a0] sm:$0xf]
    %v201 = vld [vmem:[%s1 + $0x2a4] sm:$0xf]
    %v202 = vld [vmem:[%s1 + $0x2a8] sm:$0xf]
    %v203 = vld [vmem:[%s1 + $0x2ac] sm:$0xf]
    %v204 = vld [vmem:[%s1 + $0x2b0] sm:$0xf]
    %v205 = vld [vmem:[%s1 + $0x2b4] sm:$0xf]
    %v206 = vld [vmem:[%s1 + $0x2b8] sm:$0xf]
    %v207 = vld [vmem:[%s1 + $0x2bc] sm:$0xf]
    %v208 = vld [vmem:[%s1 + $0x2c0] sm:$0xf]
    %v209 = vld [vmem:[%s1 + $0x2c4] sm:$0xf]
    %v210 = vld [vmem:[%s1 + $0x2c8] sm:$0xf]
    %v211 = vld [vmem:[%s1 + $0x2cc] sm:$0xf]
    %v212 = vld [vmem:[%s1 + $0x2d0] sm:$0xf]
    %v213 = vld [vmem:[%s1 + $0x2d4] sm:$0xf]
    %v214 = vld [vmem:[%s1 + $0x2d8] sm:$0xf]
    %v215 = vld [vmem:[%s1 + $0x2dc] sm:$0xf]
    %v216 = vld [vmem:[%s1 + $0x2e0] sm:$0xf]
    %v217 = vld [vmem:[%s1 + $0x2e4] sm:$0xf]
    %v218 = vld [vmem:[%s1 + $0x2e8] sm:$0xf]
    %v219 = vld [vmem:[%s1 + $0x2ec] sm:$0xf]
    %v220 = vld [vmem:[%s1 + $0x2f0] sm:$0xf]
    %v221 = vld [vmem:[%s1 + $0x2f4] sm:$0xf]
    %v222 = vld [vmem:[%s1 + $0x2f8] sm:$0xf]
    %v223 = vld [vmem:[%s1 + $0x2fc] sm:$0xf]
    %v224 = vld [vmem:[%s1 + $0x300] sm:$0xf]
    %v225 = vld [vmem:[%s1 + $0x304] sm:$0xf]
    %v226 = vld [vmem:[%s1 + $0x308] sm:$0xf]
    %v227 = vld [vmem:[%s1 + $0x30c] sm:$0xf]
    %v228 = vld [vmem:[%s1 + $0x310] sm:$0xf]
    %v229 = vld [vmem:[%s1 + $0x314] sm:$0xf]
    %v230 = vld [vmem:[%s1 + $0x318] sm:$0xf]
    %v231 = vld [vmem:[%s1 + $0x31c] sm:$0xf]
    %v232 = vld [vmem:[%s1 + $0x320] sm:$0xf]
    %v233 = vld [vmem:[%s1 + $0x324] sm:$0xf]
    %v234 = vld [vmem:[%s1 + $0x328] sm:$0xf]
    %v235 = vld [vmem:[%s1 + $0x32c] sm:$0xf]
    %v236 = vld [vmem:[%s1 + $0x330] sm:$0xf]
    %v237 = vld [vmem:[%s1 + $0x334] sm:$0xf]
    %v238 = vld [vmem:[%s1 + $0x338] sm:$0xf]
    %v239 = vld [vmem:[%s1 + $0x33c] sm:$0xf]
    %v240 = vld [vmem:[%s1 + $0x340] sm:$0xf]
    %v241 = vld [vmem:[%s1 + $0x344] sm:$0xf]
    %v242 = vld [vmem:[%s1 + $0x348] sm:$0xf]
    %v243 = vld [vmem:[%s1 + $0x34c] sm:$0xf]
    %v244 = vld [vmem:[%s1 + $0x350] sm:$0xf]
    %v245 = vld [vmem:[%s1 + $0x354] sm:$0xf]
    %v246 = vld [vmem:[%s1 + $0x358] sm:$0xf]
    %v247 = vld [vmem:[%s1 + $0x35c] sm:$0xf]
    %v248 = vld [vmem:[%s1 + $0x360] sm:$0xf]
    %v249 = vld [vmem:[%s1 + $0x364] sm:$0xf]
    %v250 = vld [vmem:[%s1 + $0x368] sm:$0xf]
    %v251 = vld [vmem:[%s1 + $0x36c] sm:$0xf]
    %v252 = vld [vmem:[%s1 + $0x370] sm:$0xf]
    %v253 = vld [vmem:[%s1 + $0x374] sm:$0xf]
    %v254 = vld [vmem:[%s1 + $0x378] sm:$0xf]
    %v255 = vld [vmem:[%s1 + $0x37c] sm:$0xf]
    %v256 = vld [vmem:[%s1 + $0x380] sm:$0xf]
    %v257 = vld [vmem:[%s1 + $0x384] sm:$0xf]
    %v258 = vld [vmem:[%s1 + $0x388] sm:$0xf]
    %v259 = vld [vmem:[%s1 + $0x38c] sm:$0xf]
    %v260 = vld [vmem:[%s1 + $0x390] sm:$0xf]
    %v261 = vld [vmem:[%s1 + $0x394] sm:$0xf]
    %v262 = vld [vmem:[%s1 + $0x398] sm:$0xf]
    %v263 = vld [vmem:[%s1 + $0x39c] sm:$0xf]
    %v264 = vld [vmem:[%s1 + $0x3a0] sm:$0xf]
    %v265 = vld [vmem:[%s1 + $0x3a4] sm:$0xf]
    %v266 = vld [vmem:[%s1 + $0x3a8] sm:$0xf]
    %v267 = vld [vmem:[%s1 + $0x3ac] sm:$0xf]
    %v268 = vld [vmem:[%s1 + $0x3b0] sm:$0xf]
    %v269 = vld [vmem:[%s1 + $0x3b4] sm:$0xf]
    %v270 = vld [vmem:[%s1 + $0x3b8] sm:$0xf]
    %v271 = vld [vmem:[%s1 + $0x3bc] sm:$0xf]
    %v272 = vld [vmem:[%s1 + $0x3c0] sm:$0xf]
    %v273 = vld [vmem:[%s1 + $0x3c4] sm:$0xf]
    %v274 = vld [vmem:[%s1 + $0x3c8] sm:$0xf]
    %v275 = vld [vmem:[%s1 + $0x3cc] sm:$0xf]
    %v276 = vld [vmem:[%s1 + $0x3d0] sm:$0xf]
    %v277 = vld [vmem:[%s1 + $0x3d4] sm:$0xf]
    %v278 = vld [vmem:[%s1 + $0x3d8] sm:$0xf]
    %v279 = vld [vmem:[%s1 + $0x3dc] sm:$0xf]
    %v280 = vld [vmem:[%s1 + $0x3e0] sm:$0xf]
    %v281 = vld [vmem:[%s1 + $0x3e4] sm:$0xf]
    %v282 = vld [vmem:[%s1 + $0x3e8] sm:$0xf]
    %v283 = vld [vmem:[%s1 + $0x3ec] sm:$0xf]
    %v284 = vld [vmem:[%s1 + $0x3f0] sm:$0xf]
    %v285 = vld [vmem:[%s1 + $0x3f4] sm:$0xf]
    %v286 = vld [vmem:[%s1 + $0x3f8] sm:$0xf]
    %v287 = vld [vmem:[%s1 + $0x3fc] sm:$0xf]
    %v288 = vld [vmem:[%s1 + $0x400] sm:$0xf]
    %v289 = vld [vmem:[%s1 + $0x404] sm:$0xf]
    %v290 = vld [vmem:[%s1 + $0x408] sm:$0xf]
    %v291 = vld [vmem:[%s1 + $0x40c] sm:$0xf]
    %v292 = vld [vmem:[%s1 + $0x410] sm:$0xf]
    %v293 = vld [vmem:[%s1 + $0x414] sm:$0xf]
    %v294 = vld [vmem:[%s1 + $0x418] sm:$0xf]
    %v295 = vld [vmem:[%s1 + $0x41c] sm:$0xf]
    %v296 = vld [vmem:[%s1 + $0x420] sm:$0xf]
    %v297 = vld [vmem:[%s1 + $0x424] sm:$0xf]
    %v298 = vld [vmem:[%s1 + $0x428] sm:$0xf]
    %v299 = vld [vmem:[%s1 + $0x42c] sm:$0xf]
    %v300 = vld [vmem:[%s1 + $0x430] sm:$0xf]
    %v301 = vld [vmem:[%s1 + $0x434] sm:$0xf]
    %v302 = vld [vmem:[%s1 + $0x438] sm:$0xf]
    %v303 = vld [vmem:[%s1 + $0x43c] sm:$0xf]
    %v304 = vld [vmem:[%s1 + $0x440] sm:$0xf]
    %v305 = vld [vmem:[%s1 + $0x444] sm:$0xf]
    %v306 = vld [vmem:[%s1 + $0x448] sm:$0xf]
    %v307 = vld [vmem:[%s1 + $0x44c] sm:$0xf]
    %v308 = vld [vmem:[%s1 + $0x450] sm:$0xf]
    %v309 = vld [vmem:[%s1 + $0x454] sm:$0xf]
    %v310 = vld [vmem:[%s1 + $0x458] sm:$0xf]
    %v311 = vld [vmem:[%s1 + $0x45c] sm:$0xf]
    %v312 = vld [vmem:[%s1 + $0x460] sm:$0xf]
    %v313 = vld [vmem:[%s1 + $0x464] sm:$0xf]
    %v314 = vld [vmem:[%s1 + $0x468] sm:$0xf]
    %v315 = vld [vmem:[%s1 + $0x46c] sm:$0xf]
    %v316 = vld [vmem:[%s1 + $0x470] sm:$0xf]
    %v317 = vld [vmem:[%s1 + $0x474] sm:$0xf]
    %v318 = vld [vmem:[%s1 + $0x478] sm:$0xf]
    %v319 = vld [vmem:[%s1 + $0x47c] sm:$0xf]
    %v320 = vld [vmem:[%s1 + $0x480] sm:$0xf]
    %v321 = vld [vmem:[%s1 + $0x484] sm:$0xf]
    %v322 = vld [vmem:[%s1 + $0x488] sm:$0xf]
    %v323 = vld [vmem:[%s1 + $0x48c] sm:$0xf]
    %v324 = vld [vmem:[%s1 + $0x490] sm:$0xf]
    %v325 = vld [vmem:[%s1 + $0x494] sm:$0xf]
    %v326 = vld [vmem:[%s1 + $0x498] sm:$0xf]
    %v327 = vld [vmem:[%s1 + $0x49c] sm:$0xf]
    %v328 = vld [vmem:[%s1 + $0x4a0] sm:$0xf]
    %v329 = vld [vmem:[%s1 + $0x4a4] sm:$0xf]
    %v330 = vld [vmem:[%s1 + $0x4a8] sm:$0xf]
    %v331 = vld [vmem:[%s1 + $0x4ac] sm:$0xf]
    %v332 = vld [vmem:[%s1 + $0x4b0] sm:$0xf]
    %v333 = vld [vmem:[%s1 + $0x4b4] sm:$0xf]
    %v334 = vld [vmem:[%s1 + $0x4b8] sm:$0xf]
    %v335 = vld [vmem:[%s1 + $0x4bc] sm:$0xf]
    %v336 = vld [vmem:[%s1 + $0x4c0] sm:$0xf]
    %v337 = vld [vmem:[%s1 + $0x4c4] sm:$0xf]
    %v338 = vld [vmem:[%s1 + $0x4c8] sm:$0xf]
    %v339 = vld [vmem:[%s1 + $0x4cc] sm:$0xf]
    %v340 = vld [vmem:[%s1 + $0x4d0] sm:$0xf]
    %v341 = vld [vmem:[%s1 + $0x4d4] sm:$0xf]
    %v342 = vld [vmem:[%s1 + $0x4d8] sm:$0xf]
    %v343 = vld [vmem:[%s1 + $0x4dc] sm:$0xf]
    %v344 = vld [vmem:[%s1 + $0x4e0] sm:$0xf]
    %v345 = vld [vmem:[%s1 + $0x4e4] sm:$0xf]
    %v346 = vld [vmem:[%s1 + $0x4e8] sm:$0xf]
    %v347 = vld [vmem:[%s1 + $0x4ec] sm:$0xf]
    %v348 = vld [vmem:[%s1 + $0x4f0] sm:$0xf]
    %v349 = vld [vmem:[%s1 + $0x4f4] sm:$0xf]
    %v350 = vld [vmem:[%s1 + $0x4f8] sm:$0xf]
    %v351 = vld [vmem:[%s1 + $0x4fc] sm:$0xf]
    %v352 = vld [vmem:[%s1 + $0x500] sm:$0xf]
    %v353 = vld [vmem:[%s1 + $0x504] sm:$0xf]
    %v354 = vld [vmem:[%s1 + $0x508] sm:$0xf]
    %v355 = vld [vmem:[%s1 + $0x50c] sm:$0xf]
    %v356 = vld [vmem:[%s1 + $0x510] sm:$0xf]
    %v357 = vld [vmem:[%s1 + $0x514] sm:$0xf]
    %v358 = vld [vmem:[%s1 + $0x518] sm:$0xf]
    %v359 = vld [vmem:[%s1 + $0x51c] sm:$0xf]
    %v360 = vld [vmem:[%s1 + $0x520] sm:$0xf]
    %v361 = vld [vmem:[%s1 + $0x524] sm:$0xf]
    %v362 = vld [vmem:[%s1 + $0x528] sm:$0xf]
    %v363 = vld [vmem:[%s1 + $0x52c] sm:$0xf]
    %v364 = vld [vmem:[%s1 + $0x530] sm:$0xf]
    %v365 = vld [vmem:[%s1 + $0x534] sm:$0xf]
    %v366 = vld [vmem:[%s1 + $0x538] sm:$0xf]
    %v367 = vld [vmem:[%s1 + $0x53c] sm:$0xf]
    %v368 = vld [vmem:[%s1 + $0x540] sm:$0xf]
    %v369 = vld [vmem:[%s1 + $0x544] sm:$0xf]
    %v370 = vld [vmem:[%s1 + $0x548] sm:$0xf]
    %v371 = vld [vmem:[%s1 + $0x54c] sm:$0xf]
    %v372 = vld [vmem:[%s1 + $0x550] sm:$0xf]
    %v373 = vld [vmem:[%s1 + $0x554] sm:$0xf]
    %v374 = vld [vmem:[%s1 + $0x558] sm:$0xf]
    %v375 = vld [vmem:[%s1 + $0x55c] sm:$0xf]
    %v376 = vld [vmem:[%s1 + $0x560] sm:$0xf]
    %v377 = vld [vmem:[%s1 + $0x564] sm:$0xf]
    %v378 = vld [vmem:[%s1 + $0x568] sm:$0xf]
    %v379 = vld [vmem:[%s1 + $0x56c] sm:$0xf]
    %v380 = vld [vmem:[%s1 + $0x570] sm:$0xf]
    %v381 = vld [vmem:[%s1 + $0x574] sm:$0xf]
    %v382 = vld [vmem:[%s1 + $0x578] sm:$0xf]
    %v383 = vld [vmem:[%s1 + $0x57c] sm:$0xf]
    %v384 = vld [vmem:[%s1 + $0x580] sm:$0xf]
    %v385 = vld [vmem:[%s1 + $0x584] sm:$0xf]
    %v386 = vld [vmem:[%s1 + $0x588] sm:$0xf]
    %v387 = vld [vmem:[%s1 + $0x58c] sm:$0xf]
    %v388 = vld [vmem:[%s1 + $0x590] sm:$0xf]
    %v389 = vld [vmem:[%s1 + $0x594] sm:$0xf]
    %v390 = vld [vmem:[%s1 + $0x598] sm:$0xf]
    %v391 = vld [vmem:[%s1 + $0x59c] sm:$0xf]
    %v392 = vld [vmem:[%s1 + $0x5a0] sm:$0xf]
    %v393 = vld [vmem:[%s1 + $0x5a4] sm:$0xf]
    %v394 = vld [vmem:[%s1 + $0x5a8] sm:$0xf]
    %v395 = vld [vmem:[%s1 + $0x5ac] sm:$0xf]
    %v396 = vld [vmem:[%s1 + $0x5b0] sm:$0xf]
    %v397 = vld [vmem:[%s1 + $0x5b4] sm:$0xf]
    %v398 = vld [vmem:[%s1 + $0x5b8] sm:$0xf]
    %v399 = vld [vmem:[%s1 + $0x5bc] sm:$0xf]
    %v400 = vld [vmem:[%s1 + $0x5c0] sm:$0xf]
    %v401 = vld [vmem:[%s1 + $0x5c4] sm:$0xf]
    %v402 = vld [vmem:[%s1 + $0x5c8] sm:$0xf]
    %v403 = vld [vmem:[%s1 + $0x5cc] sm:$0xf]
    %v404 = vld [vmem:[%s1 + $0x5d0] sm:$0xf]
    %v405 = vld [vmem:[%s1 + $0x5d4] sm:$0xf]
    %v406 = vld [vmem:[%s1 + $0x5d8] sm:$0xf]
    %v407 = vld [vmem:[%s1 + $0x5dc] sm:$0xf]
    %v408 = vld [vmem:[%s1 + $0x5e0] sm:$0xf]
    %v409 = vld [vmem:[%s1 + $0x5e4] sm:$0xf]
    %v410 = vld [vmem:[%s1 + $0x5e8] sm:$0xf]
    %v411 = vld [vmem:[%s1 + $0x5ec] sm:$0xf]
    %v412 = vld [vmem:[%s1 + $0x5f0] sm:$0xf]
    %v413 = vld [vmem:[%s1 + $0x5f4] sm:$0xf]
    %v414 = vld [vmem:[%s1 + $0x5f8] sm:$0xf]
    %v415 = vld [vmem:[%s1 + $0x5fc] sm:$0xf]
    %v416 = vld [vmem:[%s1 + $0x600] sm:$0xf]
    %v417 = vld [vmem:[%s1 + $0x604] sm:$0xf]
    %v418 = vld [vmem:[%s1 + $0x608] sm:$0xf]
    %v419 = vld [vmem:[%s1 + $0x60c] sm:$0xf]
    %v420 = vld [vmem:[%s1 + $0x610] sm:$0xf]
    %v421 = vld [vmem:[%s1 + $0x614] sm:$0xf]
    %v422 = vld [vmem:[%s1 + $0x618] sm:$0xf]
    %v423 = vld [vmem:[%s1 + $0x61c] sm:$0xf]
    %v424 = vld [vmem:[%s1 + $0x620] sm:$0xf]
    %v425 = vld [vmem:[%s1 + $0x624] sm:$0xf]
    %v426 = vld [vmem:[%s1 + $0x628] sm:$0xf]
    %v427 = vld [vmem:[%s1 + $0x62c] sm:$0xf]
    %v428 = vld [vmem:[%s1 + $0x630] sm:$0xf]
    %v429 = vld [vmem:[%s1 + $0x634] sm:$0xf]
    %v430 = vld [vmem:[%s1 + $0x638] sm:$0xf]
    %v431 = vld [vmem:[%s1 + $0x63c] sm:$0xf]
    %v432 = vld [vmem:[%s2] sm:$0x1]
    %v434 = vlaneseq
    %v435 = vshrl.u32 %v434, 7
    %v436 = vsub.s32 0, %v435
    %v437 = vrot.slane %v432, %v436
    %v443 = vcombine.high %v28, %v28
    %v445 = vunpack.c.l.s4 1966171168
    %v446 = vunpack.c.0.s8 %v445
    %v447 = vlaneseq
    %v448 = vshrl.u32 %v447, 7
    %v449 = vsub.s32 %v446, %v448
    %v450 = vrot.slane %v28, %v449
    %v452 = vunpack.c.l.s4 1966171168
    %v453 = vunpack.c.0.s8 %v452
    %v454 = vlaneseq
    %v455 = vshrl.u32 %v454, 7
    %v456 = vsub.s32 %v453, %v455
    %v457 = vrot.slane %v443, %v456
    %v458 = vcombine.high %v450, %v450
    %v459 = vcombine.high %v457, %v457
    %v461 = vunpack.c.l.s4 1966171168
    %v462 = vunpack.c.0.s8 %v461
    %v463 = vlaneseq
    %v464 = vshrl.u32 %v463, 7
    %v465 = vsub.s32 %v462, %v464
    %v466 = vrot.slane %v450, %v465
    %v468 = vunpack.c.l.s4 1966171168
    %v469 = vunpack.c.0.s8 %v468
    %v470 = vlaneseq
    %v471 = vshrl.u32 %v470, 7
    %v472 = vsub.s32 %v469, %v471
    %v473 = vrot.slane %v457, %v472
    %v475 = vunpack.c.l.s4 1966171168
    %v476 = vunpack.c.0.s8 %v475
    %v477 = vlaneseq
    %v478 = vshrl.u32 %v477, 7
    %v479 = vsub.s32 %v476, %v478
    %v480 = vrot.slane %v458, %v479
    %v482 = vunpack.c.l.s4 1966171168
    %v483 = vunpack.c.0.s8 %v482
    %v484 = vlaneseq
    %v485 = vshrl.u32 %v484, 7
    %v486 = vsub.s32 %v483, %v485
    %v487 = vrot.slane %v459, %v486
    %v488 = vcombine.high %v466, %v466
    %v489 = vcombine.high %v473, %v473
    %v490 = vcombine.high %v480, %v480
    %v491 = vcombine.high %v487, %v487
    %v492 = vcombine.high %v29, %v29
    %v494 = vunpack.c.l.s4 1966171168
    %v495 = vunpack.c.0.s8 %v494
    %v496 = vlaneseq
    %v497 = vshrl.u32 %v496, 7
    %v498 = vsub.s32 %v495, %v497
    %v499 = vrot.slane %v29, %v498
    %v501 = vunpack.c.l.s4 1966171168
    %v502 = vunpack.c.0.s8 %v501
    %v503 = vlaneseq
    %v504 = vshrl.u32 %v503, 7
    %v505 = vsub.s32 %v502, %v504
    %v506 = vrot.slane %v492, %v505
    %v507 = vcombine.high %v499, %v499
    %v508 = vcombine.high %v506, %v506
    %v510 = vunpack.c.l.s4 1966171168
    %v511 = vunpack.c.0.s8 %v510
    %v512 = vlaneseq
    %v513 = vshrl.u32 %v512, 7
    %v514 = vsub.s32 %v511, %v513
    %v515 = vrot.slane %v499, %v514
    %v517 = vunpack.c.l.s4 1966171168
    %v518 = vunpack.c.0.s8 %v517
    %v519 = vlaneseq
    %v520 = vshrl.u32 %v519, 7
    %v521 = vsub.s32 %v518, %v520
    %v522 = vrot.slane %v506, %v521
    %v524 = vunpack.c.l.s4 1966171168
    %v525 = vunpack.c.0.s8 %v524
    %v526 = vlaneseq
    %v527 = vshrl.u32 %v526, 7
    %v528 = vsub.s32 %v525, %v527
    %v529 = vrot.slane %v507, %v528
    %v531 = vunpack.c.l.s4 1966171168
    %v532 = vunpack.c.0.s8 %v531
    %v533 = vlaneseq
    %v534 = vshrl.u32 %v533, 7
    %v535 = vsub.s32 %v532, %v534
    %v536 = vrot.slane %v508, %v535
    %v537 = vcombine.high %v515, %v515
    %v538 = vcombine.high %v522, %v522
    %v539 = vcombine.high %v529, %v529
    %v540 = vcombine.high %v536, %v536
    %v541 = vcombine.high %v30, %v30
    %v543 = vunpack.c.l.s4 1966171168
    %v544 = vunpack.c.0.s8 %v543
    %v545 = vlaneseq
    %v546 = vshrl.u32 %v545, 7
    %v547 = vsub.s32 %v544, %v546
    %v548 = vrot.slane %v30, %v547
    %v550 = vunpack.c.l.s4 1966171168
    %v551 = vunpack.c.0.s8 %v550
    %v552 = vlaneseq
    %v553 = vshrl.u32 %v552, 7
    %v554 = vsub.s32 %v551, %v553
    %v555 = vrot.slane %v541, %v554
    %v556 = vcombine.high %v548, %v548
    %v557 = vcombine.high %v555, %v555
    %v559 = vunpack.c.l.s4 1966171168
    %v560 = vunpack.c.0.s8 %v559
    %v561 = vlaneseq
    %v562 = vshrl.u32 %v561, 7
    %v563 = vsub.s32 %v560, %v562
    %v564 = vrot.slane %v548, %v563
    %v566 = vunpack.c.l.s4 1966171168
    %v567 = vunpack.c.0.s8 %v566
    %v568 = vlaneseq
    %v569 = vshrl.u32 %v568, 7
    %v570 = vsub.s32 %v567, %v569
    %v571 = vrot.slane %v555, %v570
    %v573 = vunpack.c.l.s4 1966171168
    %v574 = vunpack.c.0.s8 %v573
    %v575 = vlaneseq
    %v576 = vshrl.u32 %v575, 7
    %v577 = vsub.s32 %v574, %v576
    %v578 = vrot.slane %v556, %v577
    %v580 = vunpack.c.l.s4 1966171168
    %v581 = vunpack.c.0.s8 %v580
    %v582 = vlaneseq
    %v583 = vshrl.u32 %v582, 7
    %v584 = vsub.s32 %v581, %v583
    %v585 = vrot.slane %v557, %v584
    %v586 = vcombine.high %v564, %v564
    %v587 = vcombine.high %v571, %v571
    %v588 = vcombine.high %v578, %v578
    %v589 = vcombine.high %v585, %v585
    %v591 = vunpack.c.l.s4 1966171168
    %v592 = vunpack.c.0.s8 %v591
    %v593 = vlaneseq
    %v594 = vshrl.u32 %v593, 7
    %v595 = vsub.s32 %v592, %v594
    %v596 = vrot.slane %v31, %v595
    %v598 = vunpack.c.l.s4 1966171168
    %v599 = vunpack.c.0.s8 %v598
    %v600 = vlaneseq
    %v601 = vshrl.u32 %v600, 7
    %v602 = vsub.s32 %v599, %v601
    %v603 = vrot.slane %v596, %v602
    %v1029 = vunpack.c.l.b16 %v32
    %v1030 = vunpack.c.l.b16 %v33
    %v1031 = vunpack.c.l.b16 %v34
    %v1032 = vunpack.c.l.b16 %v35
    %v1033 = vunpack.c.l.b16 %v36
    %v1034 = vunpack.c.l.b16 %v37
    %v1035 = vunpack.c.l.b16 %v38
    %v1036 = vunpack.c.l.b16 %v39
    %v1037 = vunpack.c.l.b16 %v40
    %v1038 = vunpack.c.l.b16 %v41
    %v1039 = vunpack.c.l.b16 %v42
    %v1040 = vunpack.c.l.b16 %v43
    %v1041 = vunpack.c.l.b16 %v44
    %v1042 = vunpack.c.l.b16 %v45
    %v1043 = vunpack.c.l.b16 %v46
    %v1044 = vunpack.c.l.b16 %v47
    %v1045 = vunpack.c.l.b16 %v48
    %v1046 = vunpack.c.l.b16 %v49
    %v1047 = vunpack.c.l.b16 %v50
    %v1048 = vunpack.c.l.b16 %v51
    %v1049 = vunpack.c.l.b16 %v52
    %v1050 = vunpack.c.l.b16 %v53
    %v1051 = vunpack.c.l.b16 %v54
    %v1052 = vunpack.c.l.b16 %v55
    %v1053 = vunpack.c.l.b16 %v56
    %v1054 = vunpack.c.l.b16 %v57
    %v1055 = vunpack.c.l.b16 %v58
    %v1056 = vunpack.c.l.b16 %v59
    %v1057 = vunpack.c.l.b16 %v60
    %v1058 = vunpack.c.l.b16 %v61
    %v1059 = vunpack.c.l.b16 %v62
    %v1060 = vunpack.c.l.b16 %v63
    %v1061 = vunpack.c.l.b16 %v64
    %v1062 = vunpack.c.l.b16 %v65
    %v1063 = vunpack.c.l.b16 %v66
    %v1064 = vunpack.c.l.b16 %v67
    %v1065 = vunpack.c.l.b16 %v68
    %v1066 = vunpack.c.l.b16 %v69
    %v1067 = vunpack.c.l.b16 %v70
    %v1068 = vunpack.c.l.b16 %v71
    %v1069 = vunpack.c.l.b16 %v72
    %v1070 = vunpack.c.l.b16 %v73
    %v1071 = vunpack.c.l.b16 %v74
    %v1072 = vunpack.c.l.b16 %v75
    %v1073 = vunpack.c.l.b16 %v76
    %v1074 = vunpack.c.l.b16 %v77
    %v1075 = vunpack.c.l.b16 %v78
    %v1076 = vunpack.c.l.b16 %v79
    %v1077 = vunpack.c.l.b16 %v80
    %v1078 = vunpack.c.l.b16 %v81
    %v1079 = vunpack.c.l.b16 %v82
    %v1080 = vunpack.c.l.b16 %v83
    %v1081 = vunpack.c.l.b16 %v84
    %v1082 = vunpack.c.l.b16 %v85
    %v1083 = vunpack.c.l.b16 %v86
    %v1084 = vunpack.c.l.b16 %v87
    %v1085 = vunpack.c.l.b16 %v88
    %v1086 = vunpack.c.l.b16 %v89
    %v1087 = vunpack.c.l.b16 %v90
    %v1088 = vunpack.c.l.b16 %v91
    %v1089 = vunpack.c.l.b16 %v92
    %v1090 = vunpack.c.l.b16 %v93
    %v1091 = vunpack.c.l.b16 %v94
    %v1092 = vunpack.c.l.b16 %v95
    %v1093 = vunpack.c.l.b16 %v96
    %v1094 = vunpack.c.l.b16 %v97
    %v1095 = vunpack.c.l.b16 %v98
    %v1096 = vunpack.c.l.b16 %v99
    %v1097 = vunpack.c.l.b16 %v100
    %v1098 = vunpack.c.l.b16 %v101
    %v1099 = vunpack.c.l.b16 %v102
    %v1100 = vunpack.c.l.b16 %v103
    %v1101 = vunpack.c.l.b16 %v104
    %v1102 = vunpack.c.l.b16 %v105
    %v1103 = vunpack.c.l.b16 %v106
    %v1104 = vunpack.c.l.b16 %v107
    %v1105 = vunpack.c.l.b16 %v108
    %v1106 = vunpack.c.l.b16 %v109
    %v1107 = vunpack.c.l.b16 %v110
    %v1108 = vunpack.c.l.b16 %v111
    %v1109 = vunpack.c.l.b16 %v112
    %v1110 = vunpack.c.l.b16 %v113
    %v1111 = vunpack.c.l.b16 %v114
    %v1112 = vunpack.c.l.b16 %v115
    %v1113 = vunpack.c.l.b16 %v116
    %v1114 = vunpack.c.l.b16 %v117
    %v1115 = vunpack.c.l.b16 %v118
    %v1116 = vunpack.c.l.b16 %v119
    %v1117 = vunpack.c.l.b16 %v120
    %v1118 = vunpack.c.l.b16 %v121
    %v1119 = vunpack.c.l.b16 %v122
    %v1120 = vunpack.c.l.b16 %v123
    %v1121 = vunpack.c.l.b16 %v124
    %v1122 = vunpack.c.l.b16 %v125
    %v1123 = vunpack.c.l.b16 %v126
    %v1124 = vunpack.c.l.b16 %v127
    %v1125 = vunpack.c.l.b16 %v128
    %v1126 = vunpack.c.l.b16 %v129
    %v1127 = vunpack.c.l.b16 %v130
    %v1128 = vunpack.c.l.b16 %v131
    %v1129 = vunpack.c.l.b16 %v132
    %v1130 = vunpack.c.l.b16 %v133
    %v1131 = vunpack.c.l.b16 %v134
    %v1132 = vunpack.c.l.b16 %v135
    %v1133 = vunpack.c.l.b16 %v136
    %v1134 = vunpack.c.l.b16 %v137
    %v1135 = vunpack.c.l.b16 %v138
    %v1136 = vunpack.c.l.b16 %v139
    %v1137 = vunpack.c.l.b16 %v140
    %v1138 = vunpack.c.l.b16 %v141
    %v1139 = vunpack.c.l.b16 %v142
    %v1140 = vunpack.c.l.b16 %v143
    %v1141 = vunpack.c.l.b16 %v144
    %v1142 = vunpack.c.l.b16 %v145
    %v1143 = vunpack.c.l.b16 %v146
    %v1144 = vunpack.c.l.b16 %v147
    %v1145 = vunpack.c.l.b16 %v148
    %v1146 = vunpack.c.l.b16 %v149
    %v1147 = vunpack.c.l.b16 %v150
    %v1148 = vunpack.c.l.b16 %v151
    %v1149 = vunpack.c.l.b16 %v152
    %v1150 = vunpack.c.l.b16 %v153
    %v1151 = vunpack.c.l.b16 %v154
    %v1152 = vunpack.c.l.b16 %v155
    %v1153 = vunpack.c.l.b16 %v156
    %v1154 = vunpack.c.l.b16 %v157
    %v1155 = vunpack.c.l.b16 %v158
    %v1156 = vunpack.c.l.b16 %v159
    %v1157 = vunpack.c.l.b16 %v160
    %v1158 = vunpack.c.l.b16 %v161
    %v1159 = vunpack.c.l.b16 %v162
    %v1160 = vunpack.c.l.b16 %v163
    %v1161 = vunpack.c.l.b16 %v164
    %v1162 = vunpack.c.l.b16 %v165
    %v1163 = vunpack.c.l.b16 %v166
    %v1164 = vunpack.c.l.b16 %v167
    %v1165 = vunpack.c.l.b16 %v168
    %v1166 = vunpack.c.l.b16 %v169
    %v1167 = vunpack.c.l.b16 %v170
    %v1168 = vunpack.c.l.b16 %v171
    %v1169 = vunpack.c.l.b16 %v172
    %v1170 = vunpack.c.l.b16 %v173
    %v1171 = vunpack.c.l.b16 %v174
    %v1172 = vunpack.c.l.b16 %v175
    %v1173 = vunpack.c.l.b16 %v176
    %v1174 = vunpack.c.l.b16 %v177
    %v1175 = vunpack.c.l.b16 %v178
    %v1176 = vunpack.c.l.b16 %v179
    %v1177 = vunpack.c.l.b16 %v180
    %v1178 = vunpack.c.l.b16 %v181
    %v1179 = vunpack.c.l.b16 %v182
    %v1180 = vunpack.c.l.b16 %v183
    %v1181 = vunpack.c.l.b16 %v184
    %v1182 = vunpack.c.l.b16 %v185
    %v1183 = vunpack.c.l.b16 %v186
    %v1184 = vunpack.c.l.b16 %v187
    %v1185 = vunpack.c.l.b16 %v188
    %v1186 = vunpack.c.l.b16 %v189
    %v1187 = vunpack.c.l.b16 %v190
    %v1188 = vunpack.c.l.b16 %v191
    %v1189 = vunpack.c.l.b16 %v192
    %v1190 = vunpack.c.l.b16 %v193
    %v1191 = vunpack.c.l.b16 %v194
    %v1192 = vunpack.c.l.b16 %v195
    %v1193 = vunpack.c.l.b16 %v196
    %v1194 = vunpack.c.l.b16 %v197
    %v1195 = vunpack.c.l.b16 %v198
    %v1196 = vunpack.c.l.b16 %v199
    %v1197 = vunpack.c.l.b16 %v200
    %v1198 = vunpack.c.l.b16 %v201
    %v1199 = vunpack.c.l.b16 %v202
    %v1200 = vunpack.c.l.b16 %v203
    %v1201 = vunpack.c.l.b16 %v204
    %v1202 = vunpack.c.l.b16 %v205
    %v1203 = vunpack.c.l.b16 %v206
    %v1204 = vunpack.c.l.b16 %v207
    %v1205 = vunpack.c.l.b16 %v208
    %v1206 = vunpack.c.l.b16 %v209
    %v1207 = vunpack.c.l.b16 %v210
    %v1208 = vunpack.c.l.b16 %v211
    %v1209 = vunpack.c.l.b16 %v212
    %v1210 = vunpack.c.l.b16 %v213
    %v1211 = vunpack.c.l.b16 %v214
    %v1212 = vunpack.c.l.b16 %v215
    %v1213 = vunpack.c.l.b16 %v216
    %v1214 = vunpack.c.l.b16 %v217
    %v1215 = vunpack.c.l.b16 %v218
    %v1216 = vunpack.c.l.b16 %v219
    %v1217 = vunpack.c.l.b16 %v220
    %v1218 = vunpack.c.l.b16 %v221
    %v1219 = vunpack.c.l.b16 %v222
    %v1220 = vunpack.c.l.b16 %v223
    %v1221 = vunpack.c.l.b16 %v224
    %v1222 = vunpack.c.l.b16 %v225
    %v1223 = vunpack.c.l.b16 %v226
    %v1224 = vunpack.c.l.b16 %v227
    %v1225 = vunpack.c.l.b16 %v228
    %v1226 = vunpack.c.l.b16 %v229
    %v1227 = vunpack.c.l.b16 %v230
    %v1228 = vunpack.c.l.b16 %v231
    %v1229 = vunpack.c.l.b16 %v232
    %v1230 = vunpack.c.l.b16 %v233
    %v1231 = vunpack.c.l.b16 %v234
    %v1232 = vunpack.c.l.b16 %v235
    %v1233 = vunpack.c.l.b16 %v236
    %v1234 = vunpack.c.l.b16 %v237
    %v1235 = vunpack.c.l.b16 %v238
    %v1236 = vunpack.c.l.b16 %v239
    %v1237 = vunpack.c.l.b16 %v240
    %v1238 = vunpack.c.l.b16 %v241
    %v1239 = vunpack.c.l.b16 %v242
    %v1240 = vunpack.c.l.b16 %v243
    %v1241 = vunpack.c.l.b16 %v244
    %v1242 = vunpack.c.l.b16 %v245
    %v1243 = vunpack.c.l.b16 %v246
    %v1244 = vunpack.c.l.b16 %v247
    %v1245 = vunpack.c.l.b16 %v248
    %v1246 = vunpack.c.l.b16 %v249
    %v1247 = vunpack.c.l.b16 %v250
    %v1248 = vunpack.c.l.b16 %v251
    %v1249 = vunpack.c.l.b16 %v252
    %v1250 = vunpack.c.l.b16 %v253
    %v1251 = vunpack.c.l.b16 %v254
    %v1252 = vunpack.c.l.b16 %v255
    %v1253 = vunpack.c.l.b16 %v256
    %v1254 = vunpack.c.l.b16 %v257
    %v1255 = vunpack.c.l.b16 %v258
    %v1256 = vunpack.c.l.b16 %v259
    %v1257 = vunpack.c.l.b16 %v260
    %v1258 = vunpack.c.l.b16 %v261
    %v1259 = vunpack.c.l.b16 %v262
    %v1260 = vunpack.c.l.b16 %v263
    %v1261 = vunpack.c.l.b16 %v264
    %v1262 = vunpack.c.l.b16 %v265
    %v1263 = vunpack.c.l.b16 %v266
    %v1264 = vunpack.c.l.b16 %v267
    %v1265 = vunpack.c.l.b16 %v268
    %v1266 = vunpack.c.l.b16 %v269
    %v1267 = vunpack.c.l.b16 %v270
    %v1268 = vunpack.c.l.b16 %v271
    %v1269 = vunpack.c.l.b16 %v272
    %v1270 = vunpack.c.l.b16 %v273
    %v1271 = vunpack.c.l.b16 %v274
    %v1272 = vunpack.c.l.b16 %v275
    %v1273 = vunpack.c.l.b16 %v276
    %v1274 = vunpack.c.l.b16 %v277
    %v1275 = vunpack.c.l.b16 %v278
    %v1276 = vunpack.c.l.b16 %v279
    %v1277 = vunpack.c.l.b16 %v280
    %v1278 = vunpack.c.l.b16 %v281
    %v1279 = vunpack.c.l.b16 %v282
    %v1280 = vunpack.c.l.b16 %v283
    %v1281 = vunpack.c.l.b16 %v284
    %v1282 = vunpack.c.l.b16 %v285
    %v1283 = vunpack.c.l.b16 %v286
    %v1284 = vunpack.c.l.b16 %v287
    %v1285 = vunpack.c.l.b16 %v288
    %v1286 = vunpack.c.l.b16 %v289
    %v1287 = vunpack.c.l.b16 %v290
    %v1288 = vunpack.c.l.b16 %v291
    %v1289 = vunpack.c.l.b16 %v292
    %v1290 = vunpack.c.l.b16 %v293
    %v1291 = vunpack.c.l.b16 %v294
    %v1292 = vunpack.c.l.b16 %v295
    %v1293 = vunpack.c.l.b16 %v296
    %v1294 = vunpack.c.l.b16 %v297
    %v1295 = vunpack.c.l.b16 %v298
    %v1296 = vunpack.c.l.b16 %v299
    %v1297 = vunpack.c.l.b16 %v300
    %v1298 = vunpack.c.l.b16 %v301
    %v1299 = vunpack.c.l.b16 %v302
    %v1300 = vunpack.c.l.b16 %v303
    %v1301 = vunpack.c.l.b16 %v304
    %v1302 = vunpack.c.l.b16 %v305
    %v1303 = vunpack.c.l.b16 %v306
    %v1304 = vunpack.c.l.b16 %v307
    %v1305 = vunpack.c.l.b16 %v308
    %v1306 = vunpack.c.l.b16 %v309
    %v1307 = vunpack.c.l.b16 %v310
    %v1308 = vunpack.c.l.b16 %v311
    %v1309 = vunpack.c.l.b16 %v312
    %v1310 = vunpack.c.l.b16 %v313
    %v1311 = vunpack.c.l.b16 %v314
    %v1312 = vunpack.c.l.b16 %v315
    %v1313 = vunpack.c.l.b16 %v316
    %v1314 = vunpack.c.l.b16 %v317
    %v1315 = vunpack.c.l.b16 %v318
    %v1316 = vunpack.c.l.b16 %v319
    %v1317 = vunpack.c.l.b16 %v320
    %v1318 = vunpack.c.l.b16 %v321
    %v1319 = vunpack.c.l.b16 %v322
    %v1320 = vunpack.c.l.b16 %v323
    %v1321 = vunpack.c.l.b16 %v324
    %v1322 = vunpack.c.l.b16 %v325
    %v1323 = vunpack.c.l.b16 %v326
    %v1324 = vunpack.c.l.b16 %v327
    %v1325 = vunpack.c.l.b16 %v328
    %v1326 = vunpack.c.l.b16 %v329
    %v1327 = vunpack.c.l.b16 %v330
    %v1328 = vunpack.c.l.b16 %v331
    %v1329 = vunpack.c.l.b16 %v332
    %v1330 = vunpack.c.l.b16 %v333
    %v1331 = vunpack.c.l.b16 %v334
    %v1332 = vunpack.c.l.b16 %v335
    %v1333 = vunpack.c.l.b16 %v336
    %v1334 = vunpack.c.l.b16 %v337
    %v1335 = vunpack.c.l.b16 %v338
    %v1336 = vunpack.c.l.b16 %v339
    %v1337 = vunpack.c.l.b16 %v340
    %v1338 = vunpack.c.l.b16 %v341
    %v1339 = vunpack.c.l.b16 %v342
    %v1340 = vunpack.c.l.b16 %v343
    %v1341 = vunpack.c.l.b16 %v344
    %v1342 = vunpack.c.l.b16 %v345
    %v1343 = vunpack.c.l.b16 %v346
    %v1344 = vunpack.c.l.b16 %v347
    %v1345 = vunpack.c.l.b16 %v348
    %v1346 = vunpack.c.l.b16 %v349
    %v1347 = vunpack.c.l.b16 %v350
    %v1348 = vunpack.c.l.b16 %v351
    %v1349 = vunpack.c.l.b16 %v352
    %v1350 = vunpack.c.l.b16 %v353
    %v1351 = vunpack.c.l.b16 %v354
    %v1352 = vunpack.c.l.b16 %v355
    %v1353 = vunpack.c.l.b16 %v356
    %v1354 = vunpack.c.l.b16 %v357
    %v1355 = vunpack.c.l.b16 %v358
    %v1356 = vunpack.c.l.b16 %v359
    %v1357 = vunpack.c.l.b16 %v360
    %v1358 = vunpack.c.l.b16 %v361
    %v1359 = vunpack.c.l.b16 %v362
    %v1360 = vunpack.c.l.b16 %v363
    %v1361 = vunpack.c.l.b16 %v364
    %v1362 = vunpack.c.l.b16 %v365
    %v1363 = vunpack.c.l.b16 %v366
    %v1364 = vunpack.c.l.b16 %v367
    %v1365 = vunpack.c.l.b16 %v368
    %v1366 = vunpack.c.l.b16 %v369
    %v1367 = vunpack.c.l.b16 %v370
    %v1368 = vunpack.c.l.b16 %v371
    %v1369 = vunpack.c.l.b16 %v372
    %v1370 = vunpack.c.l.b16 %v373
    %v1371 = vunpack.c.l.b16 %v374
    %v1372 = vunpack.c.l.b16 %v375
    %v1373 = vunpack.c.l.b16 %v376
    %v1374 = vunpack.c.l.b16 %v377
    %v1375 = vunpack.c.l.b16 %v378
    %v1376 = vunpack.c.l.b16 %v379
    %v1377 = vunpack.c.l.b16 %v380
    %v1378 = vunpack.c.l.b16 %v381
    %v1379 = vunpack.c.l.b16 %v382
    %v1380 = vunpack.c.l.b16 %v383
    %v1381 = vunpack.c.l.b16 %v384
    %v1382 = vunpack.c.l.b16 %v385
    %v1383 = vunpack.c.l.b16 %v386
    %v1384 = vunpack.c.l.b16 %v387
    %v1385 = vunpack.c.l.b16 %v388
    %v1386 = vunpack.c.l.b16 %v389
    %v1387 = vunpack.c.l.b16 %v390
    %v1388 = vunpack.c.l.b16 %v391
    %v1389 = vunpack.c.l.b16 %v392
    %v1390 = vunpack.c.l.b16 %v393
    %v1391 = vunpack.c.l.b16 %v394
    %v1392 = vunpack.c.l.b16 %v395
    %v1393 = vunpack.c.l.b16 %v396
    %v1394 = vunpack.c.l.b16 %v397
    %v1395 = vunpack.c.l.b16 %v398
    %v1396 = vunpack.c.l.b16 %v399
    %v1397 = vunpack.c.l.b16 %v400
    %v1398 = vunpack.c.l.b16 %v401
    %v1399 = vunpack.c.l.b16 %v402
    %v1400 = vunpack.c.l.b16 %v403
    %v1401 = vunpack.c.l.b16 %v404
    %v1402 = vunpack.c.l.b16 %v405
    %v1403 = vunpack.c.l.b16 %v406
    %v1404 = vunpack.c.l.b16 %v407
    %v1405 = vunpack.c.l.b16 %v408
    %v1406 = vunpack.c.l.b16 %v409
    %v1407 = vunpack.c.l.b16 %v410
    %v1408 = vunpack.c.l.b16 %v411
    %v1409 = vunpack.c.l.b16 %v412
    %v1410 = vunpack.c.l.b16 %v413
    %v1411 = vunpack.c.l.b16 %v414
    %v1412 = vunpack.c.l.b16 %v415
    %v1413 = vunpack.c.l.b16 %v416
    %v1414 = vunpack.c.l.b16 %v417
    %v1415 = vunpack.c.l.b16 %v418
    %v1416 = vunpack.c.l.b16 %v419
    %v1417 = vunpack.c.l.b16 %v420
    %v1418 = vunpack.c.l.b16 %v421
    %v1419 = vunpack.c.l.b16 %v422
    %v1420 = vunpack.c.l.b16 %v423
    %v1421 = vunpack.c.l.b16 %v424
    %v1422 = vunpack.c.l.b16 %v425
    %v1423 = vunpack.c.l.b16 %v426
    %v1424 = vunpack.c.l.b16 %v427
    %v1425 = vunpack.c.l.b16 %v428
    %v1426 = vunpack.c.l.b16 %v429
    %v1427 = vunpack.c.l.b16 %v430
    %v1428 = vunpack.c.l.b16 %v431
    %v1429 = vpack.c.b16 %v1030, %v1029
    %v1430 = vpack.c.b16 %v1032, %v1031
    %v1431 = vpack.c.b16 %v1034, %v1033
    %v1432 = vpack.c.b16 %v1036, %v1035
    %v1433 = vpack.c.b16 %v1038, %v1037
    %v1434 = vpack.c.b16 %v1040, %v1039
    %v1435 = vpack.c.b16 %v1042, %v1041
    %v1436 = vpack.c.b16 %v1044, %v1043
    %v1437 = vpack.c.b16 %v1046, %v1045
    %v1438 = vpack.c.b16 %v1048, %v1047
    %v1439 = vpack.c.b16 %v1050, %v1049
    %v1440 = vpack.c.b16 %v1052, %v1051
    %v1441 = vpack.c.b16 %v1054, %v1053
    %v1442 = vpack.c.b16 %v1056, %v1055
    %v1443 = vpack.c.b16 %v1058, %v1057
    %v1444 = vpack.c.b16 %v1060, %v1059
    %v1445 = vpack.c.b16 %v1062, %v1061
    %v1446 = vpack.c.b16 %v1064, %v1063
    %v1447 = vpack.c.b16 %v1066, %v1065
    %v1448 = vpack.c.b16 %v1068, %v1067
    %v1449 = vpack.c.b16 %v1070, %v1069
    %v1450 = vpack.c.b16 %v1072, %v1071
    %v1451 = vpack.c.b16 %v1074, %v1073
    %v1452 = vpack.c.b16 %v1076, %v1075
    %v1453 = vpack.c.b16 %v1078, %v1077
    %v1454 = vpack.c.b16 %v1080, %v1079
    %v1455 = vpack.c.b16 %v1082, %v1081
    %v1456 = vpack.c.b16 %v1084, %v1083
    %v1457 = vpack.c.b16 %v1086, %v1085
    %v1458 = vpack.c.b16 %v1088, %v1087
    %v1459 = vpack.c.b16 %v1090, %v1089
    %v1460 = vpack.c.b16 %v1092, %v1091
    %v1461 = vpack.c.b16 %v1094, %v1093
    %v1462 = vpack.c.b16 %v1096, %v1095
    %v1463 = vpack.c.b16 %v1098, %v1097
    %v1464 = vpack.c.b16 %v1100, %v1099
    %v1465 = vpack.c.b16 %v1102, %v1101
    %v1466 = vpack.c.b16 %v1104, %v1103
    %v1467 = vpack.c.b16 %v1106, %v1105
    %v1468 = vpack.c.b16 %v1108, %v1107
    %v1469 = vpack.c.b16 %v1110, %v1109
    %v1470 = vpack.c.b16 %v1112, %v1111
    %v1471 = vpack.c.b16 %v1114, %v1113
    %v1472 = vpack.c.b16 %v1116, %v1115
    %v1473 = vpack.c.b16 %v1118, %v1117
    %v1474 = vpack.c.b16 %v1120, %v1119
    %v1475 = vpack.c.b16 %v1122, %v1121
    %v1476 = vpack.c.b16 %v1124, %v1123
    %v1477 = vpack.c.b16 %v1126, %v1125
    %v1478 = vpack.c.b16 %v1128, %v1127
    %v1479 = vpack.c.b16 %v1130, %v1129
    %v1480 = vpack.c.b16 %v1132, %v1131
    %v1481 = vpack.c.b16 %v1134, %v1133
    %v1482 = vpack.c.b16 %v1136, %v1135
    %v1483 = vpack.c.b16 %v1138, %v1137
    %v1484 = vpack.c.b16 %v1140, %v1139
    %v1485 = vpack.c.b16 %v1142, %v1141
    %v1486 = vpack.c.b16 %v1144, %v1143
    %v1487 = vpack.c.b16 %v1146, %v1145
    %v1488 = vpack.c.b16 %v1148, %v1147
    %v1489 = vpack.c.b16 %v1150, %v1149
    %v1490 = vpack.c.b16 %v1152, %v1151
    %v1491 = vpack.c.b16 %v1154, %v1153
    %v1492 = vpack.c.b16 %v1156, %v1155
    %v1493 = vpack.c.b16 %v1158, %v1157
    %v1494 = vpack.c.b16 %v1160, %v1159
    %v1495 = vpack.c.b16 %v1162, %v1161
    %v1496 = vpack.c.b16 %v1164, %v1163
    %v1497 = vpack.c.b16 %v1166, %v1165
    %v1498 = vpack.c.b16 %v1168, %v1167
    %v1499 = vpack.c.b16 %v1170, %v1169
    %v1500 = vpack.c.b16 %v1172, %v1171
    %v1501 = vpack.c.b16 %v1174, %v1173
    %v1502 = vpack.c.b16 %v1176, %v1175
    %v1503 = vpack.c.b16 %v1178, %v1177
    %v1504 = vpack.c.b16 %v1180, %v1179
    %v1505 = vpack.c.b16 %v1182, %v1181
    %v1506 = vpack.c.b16 %v1184, %v1183
    %v1507 = vpack.c.b16 %v1186, %v1185
    %v1508 = vpack.c.b16 %v1188, %v1187
    %v1509 = vpack.c.b16 %v1190, %v1189
    %v1510 = vpack.c.b16 %v1192, %v1191
    %v1511 = vpack.c.b16 %v1194, %v1193
    %v1512 = vpack.c.b16 %v1196, %v1195
    %v1513 = vpack.c.b16 %v1198, %v1197
    %v1514 = vpack.c.b16 %v1200, %v1199
    %v1515 = vpack.c.b16 %v1202, %v1201
    %v1516 = vpack.c.b16 %v1204, %v1203
    %v1517 = vpack.c.b16 %v1206, %v1205
    %v1518 = vpack.c.b16 %v1208, %v1207
    %v1519 = vpack.c.b16 %v1210, %v1209
    %v1520 = vpack.c.b16 %v1212, %v1211
    %v1521 = vpack.c.b16 %v1214, %v1213
    %v1522 = vpack.c.b16 %v1216, %v1215
    %v1523 = vpack.c.b16 %v1218, %v1217
    %v1524 = vpack.c.b16 %v1220, %v1219
    %v1525 = vpack.c.b16 %v1222, %v1221
    %v1526 = vpack.c.b16 %v1224, %v1223
    %v1527 = vpack.c.b16 %v1226, %v1225
    %v1528 = vpack.c.b16 %v1228, %v1227
    %v1529 = vpack.c.b16 %v1230, %v1229
    %v1530 = vpack.c.b16 %v1232, %v1231
    %v1531 = vpack.c.b16 %v1234, %v1233
    %v1532 = vpack.c.b16 %v1236, %v1235
    %v1533 = vpack.c.b16 %v1238, %v1237
    %v1534 = vpack.c.b16 %v1240, %v1239
    %v1535 = vpack.c.b16 %v1242, %v1241
    %v1536 = vpack.c.b16 %v1244, %v1243
    %v1537 = vpack.c.b16 %v1246, %v1245
    %v1538 = vpack.c.b16 %v1248, %v1247
    %v1539 = vpack.c.b16 %v1250, %v1249
    %v1540 = vpack.c.b16 %v1252, %v1251
    %v1541 = vpack.c.b16 %v1254, %v1253
    %v1542 = vpack.c.b16 %v1256, %v1255
    %v1543 = vpack.c.b16 %v1258, %v1257
    %v1544 = vpack.c.b16 %v1260, %v1259
    %v1545 = vpack.c.b16 %v1262, %v1261
    %v1546 = vpack.c.b16 %v1264, %v1263
    %v1547 = vpack.c.b16 %v1266, %v1265
    %v1548 = vpack.c.b16 %v1268, %v1267
    %v1549 = vpack.c.b16 %v1270, %v1269
    %v1550 = vpack.c.b16 %v1272, %v1271
    %v1551 = vpack.c.b16 %v1274, %v1273
    %v1552 = vpack.c.b16 %v1276, %v1275
    %v1553 = vpack.c.b16 %v1278, %v1277
    %v1554 = vpack.c.b16 %v1280, %v1279
    %v1555 = vpack.c.b16 %v1282, %v1281
    %v1556 = vpack.c.b16 %v1284, %v1283
    %v1557 = vpack.c.b16 %v1286, %v1285
    %v1558 = vpack.c.b16 %v1288, %v1287
    %v1559 = vpack.c.b16 %v1290, %v1289
    %v1560 = vpack.c.b16 %v1292, %v1291
    %v1561 = vpack.c.b16 %v1294, %v1293
    %v1562 = vpack.c.b16 %v1296, %v1295
    %v1563 = vpack.c.b16 %v1298, %v1297
    %v1564 = vpack.c.b16 %v1300, %v1299
    %v1565 = vpack.c.b16 %v1302, %v1301
    %v1566 = vpack.c.b16 %v1304, %v1303
    %v1567 = vpack.c.b16 %v1306, %v1305
    %v1568 = vpack.c.b16 %v1308, %v1307
    %v1569 = vpack.c.b16 %v1310, %v1309
    %v1570 = vpack.c.b16 %v1312, %v1311
    %v1571 = vpack.c.b16 %v1314, %v1313
    %v1572 = vpack.c.b16 %v1316, %v1315
    %v1573 = vpack.c.b16 %v1318, %v1317
    %v1574 = vpack.c.b16 %v1320, %v1319
    %v1575 = vpack.c.b16 %v1322, %v1321
    %v1576 = vpack.c.b16 %v1324, %v1323
    %v1577 = vpack.c.b16 %v1326, %v1325
    %v1578 = vpack.c.b16 %v1328, %v1327
    %v1579 = vpack.c.b16 %v1330, %v1329
    %v1580 = vpack.c.b16 %v1332, %v1331
    %v1581 = vpack.c.b16 %v1334, %v1333
    %v1582 = vpack.c.b16 %v1336, %v1335
    %v1583 = vpack.c.b16 %v1338, %v1337
    %v1584 = vpack.c.b16 %v1340, %v1339
    %v1585 = vpack.c.b16 %v1342, %v1341
    %v1586 = vpack.c.b16 %v1344, %v1343
    %v1587 = vpack.c.b16 %v1346, %v1345
    %v1588 = vpack.c.b16 %v1348, %v1347
    %v1589 = vpack.c.b16 %v1350, %v1349
    %v1590 = vpack.c.b16 %v1352, %v1351
    %v1591 = vpack.c.b16 %v1354, %v1353
    %v1592 = vpack.c.b16 %v1356, %v1355
    %v1593 = vpack.c.b16 %v1358, %v1357
    %v1594 = vpack.c.b16 %v1360, %v1359
    %v1595 = vpack.c.b16 %v1362, %v1361
    %v1596 = vpack.c.b16 %v1364, %v1363
    %v1597 = vpack.c.b16 %v1366, %v1365
    %v1598 = vpack.c.b16 %v1368, %v1367
    %v1599 = vpack.c.b16 %v1370, %v1369
    %v1600 = vpack.c.b16 %v1372, %v1371
    %v1601 = vpack.c.b16 %v1374, %v1373
    %v1602 = vpack.c.b16 %v1376, %v1375
    %v1603 = vpack.c.b16 %v1378, %v1377
    %v1604 = vpack.c.b16 %v1380, %v1379
    %v1605 = vpack.c.b16 %v1382, %v1381
    %v1606 = vpack.c.b16 %v1384, %v1383
    %v1607 = vpack.c.b16 %v1386, %v1385
    %v1608 = vpack.c.b16 %v1388, %v1387
    %v1609 = vpack.c.b16 %v1390, %v1389
    %v1610 = vpack.c.b16 %v1392, %v1391
    %v1611 = vpack.c.b16 %v1394, %v1393
    %v1612 = vpack.c.b16 %v1396, %v1395
    %v1613 = vpack.c.b16 %v1398, %v1397
    %v1614 = vpack.c.b16 %v1400, %v1399
    %v1615 = vpack.c.b16 %v1402, %v1401
    %v1616 = vpack.c.b16 %v1404, %v1403
    %v1617 = vpack.c.b16 %v1406, %v1405
    %v1618 = vpack.c.b16 %v1408, %v1407
    %v1619 = vpack.c.b16 %v1410, %v1409
    %v1620 = vpack.c.b16 %v1412, %v1411
    %v1621 = vpack.c.b16 %v1414, %v1413
    %v1622 = vpack.c.b16 %v1416, %v1415
    %v1623 = vpack.c.b16 %v1418, %v1417
    %v1624 = vpack.c.b16 %v1420, %v1419
    %v1625 = vpack.c.b16 %v1422, %v1421
    %v1626 = vpack.c.b16 %v1424, %v1423
    %v1627 = vpack.c.b16 %v1426, %v1425
    %v1628 = vpack.c.b16 %v1428, %v1427
    %1829 = vmatprep.subr.bf16.mxu0 0
    %1830 = vmatpush1.bf16.msra.mxu0 %v1429
    %1831 = vmatprep.subr.bf16.mxu0 0
    %1832 = vmatpush1.bf16.msra.mxu0 %v1430
    %1833 = vmatprep.subr.bf16.mxu0 0
    %1834 = vmatpush1.bf16.msra.mxu0 %v1431
    %1835 = vmatprep.subr.bf16.mxu0 0
    %1836 = vmatpush1.bf16.msra.mxu0 %v1432
    %1837 = vmatprep.subr.bf16.mxu0 0
    %1838 = vmatpush1.bf16.msra.mxu0 %v1433
    %1839 = vmatprep.subr.bf16.mxu0 0
    %1840 = vmatpush1.bf16.msra.mxu0 %v1434
    %1841 = vmatprep.subr.bf16.mxu0 0
    %1842 = vmatpush1.bf16.msra.mxu0 %v1435
    %1843 = vmatprep.subr.bf16.mxu0 0
    %1844 = vmatpush1.bf16.msra.mxu0 %v1436
    %1845 = vmatprep.subr.bf16.mxu0 0
    %1846 = vmatpush1.bf16.msra.mxu0 %v1437
    %1847 = vmatprep.subr.bf16.mxu0 0
    %1848 = vmatpush1.bf16.msra.mxu0 %v1438
    %1849 = vmatprep.subr.bf16.mxu0 0
    %1850 = vmatpush1.bf16.msra.mxu0 %v1439
    %1851 = vmatprep.subr.bf16.mxu0 0
    %1852 = vmatpush1.bf16.msra.mxu0 %v1440
    %1853 = vmatprep.subr.bf16.mxu0 0
    %1854 = vmatpush1.bf16.msra.mxu0 %v1441
    %1855 = vmatprep.subr.bf16.mxu0 0
    %1856 = vmatpush1.bf16.msra.mxu0 %v1442
    %1857 = vmatprep.subr.bf16.mxu0 0
    %1858 = vmatpush1.bf16.msra.mxu0 %v1443
    %1859 = vmatprep.subr.bf16.mxu0 0
    %1860 = vmatpush1.bf16.msra.mxu0 %v1444
    %1861 = vmatprep.mubr.bf16.mxu0 %v480
    %1862 = vmatmul.mubr.bf16.gmra.mrb[0].mxu0 %v466
    %v1863 = vpop.f32.mrb[0].mxu0
    %v1864 = vadd.f32 %v437, %v1863
    %v1865 = vpop.f32.mrb[0].mxu0
    %v1866 = vpop.f32.mrb[0].mxu0
    %v1867 = vpop.f32.mrb[0].mxu0
    %1868 = vdwg.mxu0
    %1869 = vmatprep.subr.bf16.mxu0 0
    %1870 = vmatpush1.bf16.msra.mxu0 %v1445
    %1871 = vmatprep.subr.bf16.mxu0 0
    %1872 = vmatpush1.bf16.msra.mxu0 %v1446
    %1873 = vmatprep.subr.bf16.mxu0 0
    %1874 = vmatpush1.bf16.msra.mxu0 %v1447
    %1875 = vmatprep.subr.bf16.mxu0 0
    %1876 = vmatpush1.bf16.msra.mxu0 %v1448
    %1877 = vmatprep.subr.bf16.mxu0 0
    %1878 = vmatpush1.bf16.msra.mxu0 %v1449
    %1879 = vmatprep.subr.bf16.mxu0 0
    %1880 = vmatpush1.bf16.msra.mxu0 %v1450
    %1881 = vmatprep.subr.bf16.mxu0 0
    %1882 = vmatpush1.bf16.msra.mxu0 %v1451
    %1883 = vmatprep.subr.bf16.mxu0 0
    %1884 = vmatpush1.bf16.msra.mxu0 %v1452
    %1885 = vmatprep.subr.bf16.mxu0 0
    %1886 = vmatpush1.bf16.msra.mxu0 %v1453
    %1887 = vmatprep.subr.bf16.mxu0 0
    %1888 = vmatpush1.bf16.msra.mxu0 %v1454
    %1889 = vmatprep.subr.bf16.mxu0 0
    %1890 = vmatpush1.bf16.msra.mxu0 %v1455
    %1891 = vmatprep.subr.bf16.mxu0 0
    %1892 = vmatpush1.bf16.msra.mxu0 %v1456
    %1893 = vmatprep.subr.bf16.mxu0 0
    %1894 = vmatpush1.bf16.msra.mxu0 %v1457
    %1895 = vmatprep.subr.bf16.mxu0 0
    %1896 = vmatpush1.bf16.msra.mxu0 %v1458
    %1897 = vmatprep.subr.bf16.mxu0 0
    %1898 = vmatpush1.bf16.msra.mxu0 %v1459
    %1899 = vmatprep.subr.bf16.mxu0 0
    %1900 = vmatpush1.bf16.msra.mxu0 %v1460
    %1901 = vmatprep.mubr.bf16.mxu0 %v490
    %1902 = vmatmul.mubr.bf16.gmra.mrb[0].mxu0 %v488
    %v1903 = vpop.f32.mrb[0].mxu0
    %v1904 = vadd.f32 %v1864, %v1903
    %v1905 = vpop.f32.mrb[0].mxu0
    %v1906 = vpop.f32.mrb[0].mxu0
    %v1907 = vpop.f32.mrb[0].mxu0
    %1908 = vdwg.mxu0
    %1909 = vmatprep.subr.bf16.mxu0 0
    %1910 = vmatpush1.bf16.msra.mxu0 %v1461
    %1911 = vmatprep.subr.bf16.mxu0 0
    %1912 = vmatpush1.bf16.msra.mxu0 %v1462
    %1913 = vmatprep.subr.bf16.mxu0 0
    %1914 = vmatpush1.bf16.msra.mxu0 %v1463
    %1915 = vmatprep.subr.bf16.mxu0 0
    %1916 = vmatpush1.bf16.msra.mxu0 %v1464
    %1917 = vmatprep.subr.bf16.mxu0 0
    %1918 = vmatpush1.bf16.msra.mxu0 %v1465
    %1919 = vmatprep.subr.bf16.mxu0 0
    %1920 = vmatpush1.bf16.msra.mxu0 %v1466
    %1921 = vmatprep.subr.bf16.mxu0 0
    %1922 = vmatpush1.bf16.msra.mxu0 %v1467
    %1923 = vmatprep.subr.bf16.mxu0 0
    %1924 = vmatpush1.bf16.msra.mxu0 %v1468
    %1925 = vmatprep.subr.bf16.mxu0 0
    %1926 = vmatpush1.bf16.msra.mxu0 %v1469
    %1927 = vmatprep.subr.bf16.mxu0 0
    %1928 = vmatpush1.bf16.msra.mxu0 %v1470
    %1929 = vmatprep.subr.bf16.mxu0 0
    %1930 = vmatpush1.bf16.msra.mxu0 %v1471
    %1931 = vmatprep.subr.bf16.mxu0 0
    %1932 = vmatpush1.bf16.msra.mxu0 %v1472
    %1933 = vmatprep.subr.bf16.mxu0 0
    %1934 = vmatpush1.bf16.msra.mxu0 %v1473
    %1935 = vmatprep.subr.bf16.mxu0 0
    %1936 = vmatpush1.bf16.msra.mxu0 %v1474
    %1937 = vmatprep.subr.bf16.mxu0 0
    %1938 = vmatpush1.bf16.msra.mxu0 %v1475
    %1939 = vmatprep.subr.bf16.mxu0 0
    %1940 = vmatpush1.bf16.msra.mxu0 %v1476
    %1941 = vmatprep.mubr.bf16.mxu0 %v487
    %1942 = vmatmul.mubr.bf16.gmra.mrb[0].mxu0 %v473
    %v1943 = vpop.f32.mrb[0].mxu0
    %v1944 = vadd.f32 %v1904, %v1943
    %v1945 = vpop.f32.mrb[0].mxu0
    %v1946 = vpop.f32.mrb[0].mxu0
    %v1947 = vpop.f32.mrb[0].mxu0
    %1948 = vdwg.mxu0
    %1949 = vmatprep.subr.bf16.mxu0 0
    %1950 = vmatpush1.bf16.msra.mxu0 %v1477
    %1951 = vmatprep.subr.bf16.mxu0 0
    %1952 = vmatpush1.bf16.msra.mxu0 %v1478
    %1953 = vmatprep.subr.bf16.mxu0 0
    %1954 = vmatpush1.bf16.msra.mxu0 %v1479
    %1955 = vmatprep.subr.bf16.mxu0 0
    %1956 = vmatpush1.bf16.msra.mxu0 %v1480
    %1957 = vmatprep.subr.bf16.mxu0 0
    %1958 = vmatpush1.bf16.msra.mxu0 %v1481
    %1959 = vmatprep.subr.bf16.mxu0 0
    %1960 = vmatpush1.bf16.msra.mxu0 %v1482
    %1961 = vmatprep.subr.bf16.mxu0 0
    %1962 = vmatpush1.bf16.msra.mxu0 %v1483
    %1963 = vmatprep.subr.bf16.mxu0 0
    %1964 = vmatpush1.bf16.msra.mxu0 %v1484
    %1965 = vmatprep.subr.bf16.mxu0 0
    %1966 = vmatpush1.bf16.msra.mxu0 %v1485
    %1967 = vmatprep.subr.bf16.mxu0 0
    %1968 = vmatpush1.bf16.msra.mxu0 %v1486
    %1969 = vmatprep.subr.bf16.mxu0 0
    %1970 = vmatpush1.bf16.msra.mxu0 %v1487
    %1971 = vmatprep.subr.bf16.mxu0 0
    %1972 = vmatpush1.bf16.msra.mxu0 %v1488
    %1973 = vmatprep.subr.bf16.mxu0 0
    %1974 = vmatpush1.bf16.msra.mxu0 %v1489
    %1975 = vmatprep.subr.bf16.mxu0 0
    %1976 = vmatpush1.bf16.msra.mxu0 %v1490
    %1977 = vmatprep.subr.bf16.mxu0 0
    %1978 = vmatpush1.bf16.msra.mxu0 %v1491
    %1979 = vmatprep.subr.bf16.mxu0 0
    %1980 = vmatpush1.bf16.msra.mxu0 %v1492
    %1981 = vmatprep.mubr.bf16.mxu0 %v491
    %1982 = vmatmul.mubr.bf16.gmra.mrb[0].mxu0 %v489
    %v1983 = vpop.f32.mrb[0].mxu0
    %v1984 = vadd.f32 %v1944, %v1983
    %v1985 = vpop.f32.mrb[0].mxu0
    %v1986 = vpop.f32.mrb[0].mxu0
    %v1987 = vpop.f32.mrb[0].mxu0
    %1988 = vdwg.mxu0
    %1989 = vmatprep.subr.bf16.mxu0 0
    %1990 = vmatpush1.bf16.msra.mxu0 %v1493
    %1991 = vmatprep.subr.bf16.mxu0 0
    %1992 = vmatpush1.bf16.msra.mxu0 %v1494
    %1993 = vmatprep.subr.bf16.mxu0 0
    %1994 = vmatpush1.bf16.msra.mxu0 %v1495
    %1995 = vmatprep.subr.bf16.mxu0 0
    %1996 = vmatpush1.bf16.msra.mxu0 %v1496
    %1997 = vmatprep.subr.bf16.mxu0 0
    %1998 = vmatpush1.bf16.msra.mxu0 %v1497
    %1999 = vmatprep.subr.bf16.mxu0 0
    %2000 = vmatpush1.bf16.msra.mxu0 %v1498
    %2001 = vmatprep.subr.bf16.mxu0 0
    %2002 = vmatpush1.bf16.msra.mxu0 %v1499
    %2003 = vmatprep.subr.bf16.mxu0 0
    %2004 = vmatpush1.bf16.msra.mxu0 %v1500
    %2005 = vmatprep.subr.bf16.mxu0 0
    %2006 = vmatpush1.bf16.msra.mxu0 %v1501
    %2007 = vmatprep.subr.bf16.mxu0 0
    %2008 = vmatpush1.bf16.msra.mxu0 %v1502
    %2009 = vmatprep.subr.bf16.mxu0 0
    %2010 = vmatpush1.bf16.msra.mxu0 %v1503
    %2011 = vmatprep.subr.bf16.mxu0 0
    %2012 = vmatpush1.bf16.msra.mxu0 %v1504
    %2013 = vmatprep.subr.bf16.mxu0 0
    %2014 = vmatpush1.bf16.msra.mxu0 %v1505
    %2015 = vmatprep.subr.bf16.mxu0 0
    %2016 = vmatpush1.bf16.msra.mxu0 %v1506
    %2017 = vmatprep.subr.bf16.mxu0 0
    %2018 = vmatpush1.bf16.msra.mxu0 %v1507
    %2019 = vmatprep.subr.bf16.mxu0 0
    %2020 = vmatpush1.bf16.msra.mxu0 %v1508
    %2021 = vmatprep.mubr.bf16.mxu0 %v529
    %2022 = vmatmul.mubr.bf16.gmra.mrb[0].mxu0 %v515
    %v2023 = vpop.f32.mrb[0].mxu0
    %v2024 = vadd.f32 %v1984, %v2023
    %v2025 = vpop.f32.mrb[0].mxu0
    %v2026 = vpop.f32.mrb[0].mxu0
    %v2027 = vpop.f32.mrb[0].mxu0
    %2028 = vdwg.mxu0
    %2029 = vmatprep.subr.bf16.mxu0 0
    %2030 = vmatpush1.bf16.msra.mxu0 %v1509
    %2031 = vmatprep.subr.bf16.mxu0 0
    %2032 = vmatpush1.bf16.msra.mxu0 %v1510
    %2033 = vmatprep.subr.bf16.mxu0 0
    %2034 = vmatpush1.bf16.msra.mxu0 %v1511
    %2035 = vmatprep.subr.bf16.mxu0 0
    %2036 = vmatpush1.bf16.msra.mxu0 %v1512
    %2037 = vmatprep.subr.bf16.mxu0 0
    %2038 = vmatpush1.bf16.msra.mxu0 %v1513
    %2039 = vmatprep.subr.bf16.mxu0 0
    %2040 = vmatpush1.bf16.msra.mxu0 %v1514
    %2041 = vmatprep.subr.bf16.mxu0 0
    %2042 = vmatpush1.bf16.msra.mxu0 %v1515
    %2043 = vmatprep.subr.bf16.mxu0 0
    %2044 = vmatpush1.bf16.msra.mxu0 %v1516
    %2045 = vmatprep.subr.bf16.mxu0 0
    %2046 = vmatpush1.bf16.msra.mxu0 %v1517
    %2047 = vmatprep.subr.bf16.mxu0 0
    %2048 = vmatpush1.bf16.msra.mxu0 %v1518
    %2049 = vmatprep.subr.bf16.mxu0 0
    %2050 = vmatpush1.bf16.msra.mxu0 %v1519
    %2051 = vmatprep.subr.bf16.mxu0 0
    %2052 = vmatpush1.bf16.msra.mxu0 %v1520
    %2053 = vmatprep.subr.bf16.mxu0 0
    %2054 = vmatpush1.bf16.msra.mxu0 %v1521
    %2055 = vmatprep.subr.bf16.mxu0 0
    %2056 = vmatpush1.bf16.msra.mxu0 %v1522
    %2057 = vmatprep.subr.bf16.mxu0 0
    %2058 = vmatpush1.bf16.msra.mxu0 %v1523
    %2059 = vmatprep.subr.bf16.mxu0 0
    %2060 = vmatpush1.bf16.msra.mxu0 %v1524
    %2061 = vmatprep.mubr.bf16.mxu0 %v539
    %2062 = vmatmul.mubr.bf16.gmra.mrb[0].mxu0 %v537
    %v2063 = vpop.f32.mrb[0].mxu0
    %v2064 = vadd.f32 %v2024, %v2063
    %v2065 = vpop.f32.mrb[0].mxu0
    %v2066 = vpop.f32.mrb[0].mxu0
    %v2067 = vpop.f32.mrb[0].mxu0
    %2068 = vdwg.mxu0
    %2069 = vmatprep.subr.bf16.mxu0 0
    %2070 = vmatpush1.bf16.msra.mxu0 %v1525
    %2071 = vmatprep.subr.bf16.mxu0 0
    %2072 = vmatpush1.bf16.msra.mxu0 %v1526
    %2073 = vmatprep.subr.bf16.mxu0 0
    %2074 = vmatpush1.bf16.msra.mxu0 %v1527
    %2075 = vmatprep.subr.bf16.mxu0 0
    %2076 = vmatpush1.bf16.msra.mxu0 %v1528
    %2077 = vmatprep.subr.bf16.mxu0 0
    %2078 = vmatpush1.bf16.msra.mxu0 %v1529
    %2079 = vmatprep.subr.bf16.mxu0 0
    %2080 = vmatpush1.bf16.msra.mxu0 %v1530
    %2081 = vmatprep.subr.bf16.mxu0 0
    %2082 = vmatpush1.bf16.msra.mxu0 %v1531
    %2083 = vmatprep.subr.bf16.mxu0 0
    %2084 = vmatpush1.bf16.msra.mxu0 %v1532
    %2085 = vmatprep.subr.bf16.mxu0 0
    %2086 = vmatpush1.bf16.msra.mxu0 %v1533
    %2087 = vmatprep.subr.bf16.mxu0 0
    %2088 = vmatpush1.bf16.msra.mxu0 %v1534
    %2089 = vmatprep.subr.bf16.mxu0 0
    %2090 = vmatpush1.bf16.msra.mxu0 %v1535
    %2091 = vmatprep.subr.bf16.mxu0 0
    %2092 = vmatpush1.bf16.msra.mxu0 %v1536
    %2093 = vmatprep.subr.bf16.mxu0 0
    %2094 = vmatpush1.bf16.msra.mxu0 %v1537
    %2095 = vmatprep.subr.bf16.mxu0 0
    %2096 = vmatpush1.bf16.msra.mxu0 %v1538
    %2097 = vmatprep.subr.bf16.mxu0 0
    %2098 = vmatpush1.bf16.msra.mxu0 %v1539
    %2099 = vmatprep.subr.bf16.mxu0 0
    %2100 = vmatpush1.bf16.msra.mxu0 %v1540
    %2101 = vmatprep.mubr.bf16.mxu0 %v536
    %2102 = vmatmul.mubr.bf16.gmra.mrb[0].mxu0 %v522
    %v2103 = vpop.f32.mrb[0].mxu0
    %v2104 = vadd.f32 %v2064, %v2103
    %v2105 = vpop.f32.mrb[0].mxu0
    %v2106 = vpop.f32.mrb[0].mxu0
    %v2107 = vpop.f32.mrb[0].mxu0
    %2108 = vdwg.mxu0
    %2109 = vmatprep.subr.bf16.mxu0 0
    %2110 = vmatpush1.bf16.msra.mxu0 %v1541
    %2111 = vmatprep.subr.bf16.mxu0 0
    %2112 = vmatpush1.bf16.msra.mxu0 %v1542
    %2113 = vmatprep.subr.bf16.mxu0 0
    %2114 = vmatpush1.bf16.msra.mxu0 %v1543
    %2115 = vmatprep.subr.bf16.mxu0 0
    %2116 = vmatpush1.bf16.msra.mxu0 %v1544
    %2117 = vmatprep.subr.bf16.mxu0 0
    %2118 = vmatpush1.bf16.msra.mxu0 %v1545
    %2119 = vmatprep.subr.bf16.mxu0 0
    %2120 = vmatpush1.bf16.msra.mxu0 %v1546
    %2121 = vmatprep.subr.bf16.mxu0 0
    %2122 = vmatpush1.bf16.msra.mxu0 %v1547
    %2123 = vmatprep.subr.bf16.mxu0 0
    %2124 = vmatpush1.bf16.msra.mxu0 %v1548
    %2125 = vmatprep.subr.bf16.mxu0 0
    %2126 = vmatpush1.bf16.msra.mxu0 %v1549
    %2127 = vmatprep.subr.bf16.mxu0 0
    %2128 = vmatpush1.bf16.msra.mxu0 %v1550
    %2129 = vmatprep.subr.bf16.mxu0 0
    %2130 = vmatpush1.bf16.msra.mxu0 %v1551
    %2131 = vmatprep.subr.bf16.mxu0 0
    %2132 = vmatpush1.bf16.msra.mxu0 %v1552
    %2133 = vmatprep.subr.bf16.mxu0 0
    %2134 = vmatpush1.bf16.msra.mxu0 %v1553
    %2135 = vmatprep.subr.bf16.mxu0 0
    %2136 = vmatpush1.bf16.msra.mxu0 %v1554
    %2137 = vmatprep.subr.bf16.mxu0 0
    %2138 = vmatpush1.bf16.msra.mxu0 %v1555
    %2139 = vmatprep.subr.bf16.mxu0 0
    %2140 = vmatpush1.bf16.msra.mxu0 %v1556
    %2141 = vmatprep.mubr.bf16.mxu0 %v540
    %2142 = vmatmul.mubr.bf16.gmra.mrb[0].mxu0 %v538
    %v2143 = vpop.f32.mrb[0].mxu0
    %v2144 = vadd.f32 %v2104, %v2143
    %v2145 = vpop.f32.mrb[0].mxu0
    %v2146 = vpop.f32.mrb[0].mxu0
    %v2147 = vpop.f32.mrb[0].mxu0
    %2148 = vdwg.mxu0
    %2149 = vmatprep.subr.bf16.mxu0 0
    %2150 = vmatpush1.bf16.msra.mxu0 %v1557
    %2151 = vmatprep.subr.bf16.mxu0 0
    %2152 = vmatpush1.bf16.msra.mxu0 %v1558
    %2153 = vmatprep.subr.bf16.mxu0 0
    %2154 = vmatpush1.bf16.msra.mxu0 %v1559
    %2155 = vmatprep.subr.bf16.mxu0 0
    %2156 = vmatpush1.bf16.msra.mxu0 %v1560
    %2157 = vmatprep.subr.bf16.mxu0 0
    %2158 = vmatpush1.bf16.msra.mxu0 %v1561
    %2159 = vmatprep.subr.bf16.mxu0 0
    %2160 = vmatpush1.bf16.msra.mxu0 %v1562
    %2161 = vmatprep.subr.bf16.mxu0 0
    %2162 = vmatpush1.bf16.msra.mxu0 %v1563
    %2163 = vmatprep.subr.bf16.mxu0 0
    %2164 = vmatpush1.bf16.msra.mxu0 %v1564
    %2165 = vmatprep.subr.bf16.mxu0 0
    %2166 = vmatpush1.bf16.msra.mxu0 %v1565
    %2167 = vmatprep.subr.bf16.mxu0 0
    %2168 = vmatpush1.bf16.msra.mxu0 %v1566
    %2169 = vmatprep.subr.bf16.mxu0 0
    %2170 = vmatpush1.bf16.msra.mxu0 %v1567
    %2171 = vmatprep.subr.bf16.mxu0 0
    %2172 = vmatpush1.bf16.msra.mxu0 %v1568
    %2173 = vmatprep.subr.bf16.mxu0 0
    %2174 = vmatpush1.bf16.msra.mxu0 %v1569
    %2175 = vmatprep.subr.bf16.mxu0 0
    %2176 = vmatpush1.bf16.msra.mxu0 %v1570
    %2177 = vmatprep.subr.bf16.mxu0 0
    %2178 = vmatpush1.bf16.msra.mxu0 %v1571
    %2179 = vmatprep.subr.bf16.mxu0 0
    %2180 = vmatpush1.bf16.msra.mxu0 %v1572
    %2181 = vmatprep.mubr.bf16.mxu0 %v578
    %2182 = vmatmul.mubr.bf16.gmra.mrb[0].mxu0 %v564
    %v2183 = vpop.f32.mrb[0].mxu0
    %v2184 = vadd.f32 %v2144, %v2183
    %v2185 = vpop.f32.mrb[0].mxu0
    %v2186 = vpop.f32.mrb[0].mxu0
    %v2187 = vpop.f32.mrb[0].mxu0
    %2188 = vdwg.mxu0
    %2189 = vmatprep.subr.bf16.mxu0 0
    %2190 = vmatpush1.bf16.msra.mxu0 %v1573
    %2191 = vmatprep.subr.bf16.mxu0 0
    %2192 = vmatpush1.bf16.msra.mxu0 %v1574
    %2193 = vmatprep.subr.bf16.mxu0 0
    %2194 = vmatpush1.bf16.msra.mxu0 %v1575
    %2195 = vmatprep.subr.bf16.mxu0 0
    %2196 = vmatpush1.bf16.msra.mxu0 %v1576
    %2197 = vmatprep.subr.bf16.mxu0 0
    %2198 = vmatpush1.bf16.msra.mxu0 %v1577
    %2199 = vmatprep.subr.bf16.mxu0 0
    %2200 = vmatpush1.bf16.msra.mxu0 %v1578
    %2201 = vmatprep.subr.bf16.mxu0 0
    %2202 = vmatpush1.bf16.msra.mxu0 %v1579
    %2203 = vmatprep.subr.bf16.mxu0 0
    %2204 = vmatpush1.bf16.msra.mxu0 %v1580
    %2205 = vmatprep.subr.bf16.mxu0 0
    %2206 = vmatpush1.bf16.msra.mxu0 %v1581
    %2207 = vmatprep.subr.bf16.mxu0 0
    %2208 = vmatpush1.bf16.msra.mxu0 %v1582
    %2209 = vmatprep.subr.bf16.mxu0 0
    %2210 = vmatpush1.bf16.msra.mxu0 %v1583
    %2211 = vmatprep.subr.bf16.mxu0 0
    %2212 = vmatpush1.bf16.msra.mxu0 %v1584
    %2213 = vmatprep.subr.bf16.mxu0 0
    %2214 = vmatpush1.bf16.msra.mxu0 %v1585
    %2215 = vmatprep.subr.bf16.mxu0 0
    %2216 = vmatpush1.bf16.msra.mxu0 %v1586
    %2217 = vmatprep.subr.bf16.mxu0 0
    %2218 = vmatpush1.bf16.msra.mxu0 %v1587
    %2219 = vmatprep.subr.bf16.mxu0 0
    %2220 = vmatpush1.bf16.msra.mxu0 %v1588
    %2221 = vmatprep.mubr.bf16.mxu0 %v588
    %2222 = vmatmul.mubr.bf16.gmra.mrb[0].mxu0 %v586
    %v2223 = vpop.f32.mrb[0].mxu0
    %v2224 = vadd.f32 %v2184, %v2223
    %v2225 = vpop.f32.mrb[0].mxu0
    %v2226 = vpop.f32.mrb[0].mxu0
    %v2227 = vpop.f32.mrb[0].mxu0
    %2228 = vdwg.mxu0
    %2229 = vmatprep.subr.bf16.mxu0 0
    %2230 = vmatpush1.bf16.msra.mxu0 %v1589
    %2231 = vmatprep.subr.bf16.mxu0 0
    %2232 = vmatpush1.bf16.msra.mxu0 %v1590
    %2233 = vmatprep.subr.bf16.mxu0 0
    %2234 = vmatpush1.bf16.msra.mxu0 %v1591
    %2235 = vmatprep.subr.bf16.mxu0 0
    %2236 = vmatpush1.bf16.msra.mxu0 %v1592
    %2237 = vmatprep.subr.bf16.mxu0 0
    %2238 = vmatpush1.bf16.msra.mxu0 %v1593
    %2239 = vmatprep.subr.bf16.mxu0 0
    %2240 = vmatpush1.bf16.msra.mxu0 %v1594
    %2241 = vmatprep.subr.bf16.mxu0 0
    %2242 = vmatpush1.bf16.msra.mxu0 %v1595
    %2243 = vmatprep.subr.bf16.mxu0 0
    %2244 = vmatpush1.bf16.msra.mxu0 %v1596
    %2245 = vmatprep.subr.bf16.mxu0 0
    %2246 = vmatpush1.bf16.msra.mxu0 %v1597
    %2247 = vmatprep.subr.bf16.mxu0 0
    %2248 = vmatpush1.bf16.msra.mxu0 %v1598
    %2249 = vmatprep.subr.bf16.mxu0 0
    %2250 = vmatpush1.bf16.msra.mxu0 %v1599
    %2251 = vmatprep.subr.bf16.mxu0 0
    %2252 = vmatpush1.bf16.msra.mxu0 %v1600
    %2253 = vmatprep.subr.bf16.mxu0 0
    %2254 = vmatpush1.bf16.msra.mxu0 %v1601
    %2255 = vmatprep.subr.bf16.mxu0 0
    %2256 = vmatpush1.bf16.msra.mxu0 %v1602
    %2257 = vmatprep.subr.bf16.mxu0 0
    %2258 = vmatpush1.bf16.msra.mxu0 %v1603
    %2259 = vmatprep.subr.bf16.mxu0 0
    %2260 = vmatpush1.bf16.msra.mxu0 %v1604
    %2261 = vmatprep.mubr.bf16.mxu0 %v585
    %2262 = vmatmul.mubr.bf16.gmra.mrb[0].mxu0 %v571
    %v2263 = vpop.f32.mrb[0].mxu0
    %v2264 = vadd.f32 %v2224, %v2263
    %v2265 = vpop.f32.mrb[0].mxu0
    %v2266 = vpop.f32.mrb[0].mxu0
    %v2267 = vpop.f32.mrb[0].mxu0
    %2268 = vdwg.mxu0
    %2269 = vmatprep.subr.bf16.mxu0 0
    %2270 = vmatpush1.bf16.msra.mxu0 %v1605
    %2271 = vmatprep.subr.bf16.mxu0 0
    %2272 = vmatpush1.bf16.msra.mxu0 %v1606
    %2273 = vmatprep.subr.bf16.mxu0 0
    %2274 = vmatpush1.bf16.msra.mxu0 %v1607
    %2275 = vmatprep.subr.bf16.mxu0 0
    %2276 = vmatpush1.bf16.msra.mxu0 %v1608
    %2277 = vmatprep.subr.bf16.mxu0 0
    %2278 = vmatpush1.bf16.msra.mxu0 %v1609
    %2279 = vmatprep.subr.bf16.mxu0 0
    %2280 = vmatpush1.bf16.msra.mxu0 %v1610
    %2281 = vmatprep.subr.bf16.mxu0 0
    %2282 = vmatpush1.bf16.msra.mxu0 %v1611
    %2283 = vmatprep.subr.bf16.mxu0 0
    %2284 = vmatpush1.bf16.msra.mxu0 %v1612
    %2285 = vmatprep.subr.bf16.mxu0 0
    %2286 = vmatpush1.bf16.msra.mxu0 %v1613
    %2287 = vmatprep.subr.bf16.mxu0 0
    %2288 = vmatpush1.bf16.msra.mxu0 %v1614
    %2289 = vmatprep.subr.bf16.mxu0 0
    %2290 = vmatpush1.bf16.msra.mxu0 %v1615
    %2291 = vmatprep.subr.bf16.mxu0 0
    %2292 = vmatpush1.bf16.msra.mxu0 %v1616
    %2293 = vmatprep.subr.bf16.mxu0 0
    %2294 = vmatpush1.bf16.msra.mxu0 %v1617
    %2295 = vmatprep.subr.bf16.mxu0 0
    %2296 = vmatpush1.bf16.msra.mxu0 %v1618
    %2297 = vmatprep.subr.bf16.mxu0 0
    %2298 = vmatpush1.bf16.msra.mxu0 %v1619
    %2299 = vmatprep.subr.bf16.mxu0 0
    %2300 = vmatpush1.bf16.msra.mxu0 %v1620
    %2301 = vmatprep.mubr.bf16.mxu0 %v589
    %2302 = vmatmul.mubr.bf16.gmra.mrb[0].mxu0 %v587
    %v2303 = vpop.f32.mrb[0].mxu0
    %v2304 = vadd.f32 %v2264, %v2303
    %v2305 = vpop.f32.mrb[0].mxu0
    %v2306 = vpop.f32.mrb[0].mxu0
    %v2307 = vpop.f32.mrb[0].mxu0
    %2308 = vdwg.mxu0
    %2309 = vmatprep.subr.bf16.mxu0 0
    %2310 = vmatpush1.bf16.msra.mxu0 %v1621
    %2311 = vmatprep.subr.bf16.mxu0 0
    %2312 = vmatpush1.bf16.msra.mxu0 %v1622
    %2313 = vmatprep.subr.bf16.mxu0 0
    %2314 = vmatpush1.bf16.msra.mxu0 %v1623
    %2315 = vmatprep.subr.bf16.mxu0 0
    %2316 = vmatpush1.bf16.msra.mxu0 %v1624
    %2317 = vmatprep.subr.bf16.mxu0 0
    %2318 = vmatpush1.bf16.msra.mxu0 %v1625
    %2319 = vmatprep.subr.bf16.mxu0 0
    %2320 = vmatpush1.bf16.msra.mxu0 %v1626
    %2321 = vmatprep.subr.bf16.mxu0 0
    %2322 = vmatpush1.bf16.msra.mxu0 %v1627
    %2323 = vmatprep.subr.bf16.mxu0 0
    %2324 = vmatpush1.bf16.msra.mxu0 %v1628
    %2325 = vmatprep.subr.bf16.mxu0 0
    %2326 = vmatpush1.bf16.msra.mxu0 0
    %2327 = vmatprep.subr.bf16.mxu0 0
    %2328 = vmatpush1.bf16.msra.mxu0 0
    %2329 = vmatprep.subr.bf16.mxu0 0
    %2330 = vmatpush1.bf16.msra.mxu0 0
    %2331 = vmatprep.subr.bf16.mxu0 0
    %2332 = vmatpush1.bf16.msra.mxu0 0
    %2333 = vmatprep.subr.bf16.mxu0 0
    %2334 = vmatpush1.bf16.msra.mxu0 0
    %2335 = vmatprep.subr.bf16.mxu0 0
    %2336 = vmatpush1.bf16.msra.mxu0 0
    %2337 = vmatprep.subr.bf16.mxu0 0
    %2338 = vmatpush1.bf16.msra.mxu0 0
    %2339 = vmatprep.subr.bf16.mxu0 0
    %2340 = vmatpush1.bf16.msra.mxu0 0
    %2341 = vmatprep.mubr.bf16.mxu0 0
    %2342 = vmatmul.mubr.bf16.gmra.mrb[0].mxu0 %v603
    %v2343 = vpop.f32.mrb[0].mxu0
    %v2344 = vadd.f32 %v2304, %v2343
    %v2345 = vpop.f32.mrb[0].mxu0
    %v2346 = vpop.f32.mrb[0].mxu0
    %v2347 = vpop.f32.mrb[0].mxu0
    %2348 = vdwg.mxu0
    %v2349 = vmax.f32 %v2344, 0.0
    %v2350 = vpack.c.bf16 %v2349, %v2349
    %v2351 = vld [vmem:[%s3] sm:$0xf]
    %v2352 = vld [vmem:[%s3 + $0x4] sm:$0xf]
    %v2353 = vld [vmem:[%s3 + $0x8] sm:$0xf]
    %v2354 = vld [vmem:[%s3 + $0xc] sm:$0xf]
    %v2355 = vld [vmem:[%s3 + $0x10] sm:$0xf]
    %v2356 = vld [vmem:[%s3 + $0x14] sm:$0xf]
    %v2357 = vld [vmem:[%s3 + $0x18] sm:$0xf]
    %v2358 = vld [vmem:[%s3 + $0x1c] sm:$0xf]
    %v2359 = vld [vmem:[%s3 + $0x20] sm:$0xf]
    %v2360 = vld [vmem:[%s3 + $0x24] sm:$0xf]
    %v2361 = vld [vmem:[%s3 + $0x28] sm:$0xf]
    %v2362 = vld [vmem:[%s3 + $0x2c] sm:$0xf]
    %v2363 = vld [vmem:[%s3 + $0x30] sm:$0xf]
    %v2364 = vld [vmem:[%s3 + $0x34] sm:$0xf]
    %v2365 = vld [vmem:[%s3 + $0x38] sm:$0xf]
    %v2366 = vld [vmem:[%s3 + $0x3c] sm:$0xf]
    %v2367 = vld [vmem:[%s4] sm:$0x1]
    %v2369 = vlaneseq
    %v2370 = vshrl.u32 %v2369, 7
    %v2371 = vsub.s32 0, %v2370
    %v2372 = vrot.slane %v2367, %v2371
    %v2390 = vunpack.c.l.b16 %v2351
    %v2391 = vunpack.c.l.b16 %v2352
    %v2392 = vunpack.c.l.b16 %v2353
    %v2393 = vunpack.c.l.b16 %v2354
    %v2394 = vunpack.c.l.b16 %v2355
    %v2395 = vunpack.c.l.b16 %v2356
    %v2396 = vunpack.c.l.b16 %v2357
    %v2397 = vunpack.c.l.b16 %v2358
    %v2398 = vunpack.c.l.b16 %v2359
    %v2399 = vunpack.c.l.b16 %v2360
    %v2400 = vunpack.c.l.b16 %v2361
    %v2401 = vunpack.c.l.b16 %v2362
    %v2402 = vunpack.c.l.b16 %v2363
    %v2403 = vunpack.c.l.b16 %v2364
    %v2404 = vunpack.c.l.b16 %v2365
    %v2405 = vunpack.c.l.b16 %v2366
    %v2406 = vpack.c.b16 %v2391, %v2390
    %v2407 = vpack.c.b16 %v2393, %v2392
    %v2408 = vpack.c.b16 %v2395, %v2394
    %v2409 = vpack.c.b16 %v2397, %v2396
    %v2410 = vpack.c.b16 %v2399, %v2398
    %v2411 = vpack.c.b16 %v2401, %v2400
    %v2412 = vpack.c.b16 %v2403, %v2402
    %v2413 = vpack.c.b16 %v2405, %v2404
    %2422 = vmatprep.subr.bf16.mxu0 0
    %2423 = vmatpush1.bf16.msra.mxu0 %v2406
    %2424 = vmatprep.subr.bf16.mxu0 0
    %2425 = vmatpush1.bf16.msra.mxu0 %v2407
    %2426 = vmatprep.subr.bf16.mxu0 0
    %2427 = vmatpush1.bf16.msra.mxu0 %v2408
    %2428 = vmatprep.subr.bf16.mxu0 0
    %2429 = vmatpush1.bf16.msra.mxu0 %v2409
    %2430 = vmatprep.subr.bf16.mxu0 0
    %2431 = vmatpush1.bf16.msra.mxu0 %v2410
    %2432 = vmatprep.subr.bf16.mxu0 0
    %2433 = vmatpush1.bf16.msra.mxu0 %v2411
    %2434 = vmatprep.subr.bf16.mxu0 0
    %2435 = vmatpush1.bf16.msra.mxu0 %v2412
    %2436 = vmatprep.subr.bf16.mxu0 0
    %2437 = vmatpush1.bf16.msra.mxu0 %v2413
    %2438 = vmatprep.subr.bf16.mxu0 0
    %2439 = vmatpush1.bf16.msra.mxu0 0
    %2440 = vmatprep.subr.bf16.mxu0 0
    %2441 = vmatpush1.bf16.msra.mxu0 0
    %2442 = vmatprep.subr.bf16.mxu0 0
    %2443 = vmatpush1.bf16.msra.mxu0 0
    %2444 = vmatprep.subr.bf16.mxu0 0
    %2445 = vmatpush1.bf16.msra.mxu0 0
    %2446 = vmatprep.subr.bf16.mxu0 0
    %2447 = vmatpush1.bf16.msra.mxu0 0
    %2448 = vmatprep.subr.bf16.mxu0 0
    %2449 = vmatpush1.bf16.msra.mxu0 0
    %2450 = vmatprep.subr.bf16.mxu0 0
    %2451 = vmatpush1.bf16.msra.mxu0 0
    %2452 = vmatprep.subr.bf16.mxu0 0
    %2453 = vmatpush1.bf16.msra.mxu0 0
    %2454 = vmatprep.mubr.bf16.mxu0 0
    %2455 = vmatmul.mubr.bf16.gmra.mrb[0].mxu0 %v2350
    %v2456 = vpop.f32.mrb[0].mxu0
    %v2457 = vadd.f32 %v2372, %v2456
    %v2458 = vpop.f32.mrb[0].mxu0
    %v2459 = vpop.f32.mrb[0].mxu0
    %v2460 = vpop.f32.mrb[0].mxu0
    %2461 = vdwg.mxu0
    %v2462 = vmax.f32 %v2457, 0.0
    %v2463 = vpack.c.bf16 %v2462, %v2462
    %v2464 = vld [vmem:[%s5] sm:$0xf]
    %v2465 = vld [vmem:[%s5 + $0x4] sm:$0xf]
    %v2466 = vld [vmem:[%s5 + $0x8] sm:$0xf]
    %v2467 = vld [vmem:[%s5 + $0xc] sm:$0xf]
    %v2468 = vld [vmem:[%s5 + $0x10] sm:$0xf]
    %v2469 = vld [vmem:[%s5 + $0x14] sm:$0xf]
    %v2470 = vld [vmem:[%s5 + $0x18] sm:$0xf]
    %v2471 = vld [vmem:[%s5 + $0x1c] sm:$0xf]
    %v2472 = vld [vmem:[%s5 + $0x20] sm:$0xf]
    %v2473 = vld [vmem:[%s5 + $0x24] sm:$0xf]
    %v2474 = vld [vmem:[%s5 + $0x28] sm:$0xf]
    %v2475 = vld [vmem:[%s5 + $0x2c] sm:$0xf]
    %v2476 = vld [vmem:[%s5 + $0x30] sm:$0xf]
    %v2477 = vld [vmem:[%s5 + $0x34] sm:$0xf]
    %v2478 = vld [vmem:[%s5 + $0x38] sm:$0xf]
    %v2479 = vld [vmem:[%s5 + $0x3c] sm:$0xf]
    %v2480 = vld [vmem:[%s6] sm:$0x1]
    %v2482 = vlaneseq
    %v2483 = vshrl.u32 %v2482, 7
    %v2484 = vsub.s32 0, %v2483
    %v2485 = vrot.slane %v2480, %v2484
    %v2503 = vunpack.c.l.b16 %v2464
    %v2504 = vunpack.c.l.b16 %v2465
    %v2505 = vunpack.c.l.b16 %v2466
    %v2506 = vunpack.c.l.b16 %v2467
    %v2507 = vunpack.c.l.b16 %v2468
    %v2508 = vunpack.c.l.b16 %v2469
    %v2509 = vunpack.c.l.b16 %v2470
    %v2510 = vunpack.c.l.b16 %v2471
    %v2511 = vunpack.c.l.b16 %v2472
    %v2512 = vunpack.c.l.b16 %v2473
    %v2513 = vunpack.c.l.b16 %v2474
    %v2514 = vunpack.c.l.b16 %v2475
    %v2515 = vunpack.c.l.b16 %v2476
    %v2516 = vunpack.c.l.b16 %v2477
    %v2517 = vunpack.c.l.b16 %v2478
    %v2518 = vunpack.c.l.b16 %v2479
    %v2519 = vpack.c.b16 %v2504, %v2503
    %v2520 = vpack.c.b16 %v2506, %v2505
    %v2521 = vpack.c.b16 %v2508, %v2507
    %v2522 = vpack.c.b16 %v2510, %v2509
    %v2523 = vpack.c.b16 %v2512, %v2511
    %v2524 = vpack.c.b16 %v2514, %v2513
    %v2525 = vpack.c.b16 %v2516, %v2515
    %v2526 = vpack.c.b16 %v2518, %v2517
    %2535 = vmatprep.subr.bf16.mxu0 0
    %2536 = vmatpush1.bf16.msra.mxu0 %v2519
    %2537 = vmatprep.subr.bf16.mxu0 0
    %2538 = vmatpush1.bf16.msra.mxu0 %v2520
    %2539 = vmatprep.subr.bf16.mxu0 0
    %2540 = vmatpush1.bf16.msra.mxu0 %v2521
    %2541 = vmatprep.subr.bf16.mxu0 0
    %2542 = vmatpush1.bf16.msra.mxu0 %v2522
    %2543 = vmatprep.subr.bf16.mxu0 0
    %2544 = vmatpush1.bf16.msra.mxu0 %v2523
    %2545 = vmatprep.subr.bf16.mxu0 0
    %2546 = vmatpush1.bf16.msra.mxu0 %v2524
    %2547 = vmatprep.subr.bf16.mxu0 0
    %2548 = vmatpush1.bf16.msra.mxu0 %v2525
    %2549 = vmatprep.subr.bf16.mxu0 0
    %2550 = vmatpush1.bf16.msra.mxu0 %v2526
    %2551 = vmatprep.subr.bf16.mxu0 0
    %2552 = vmatpush1.bf16.msra.mxu0 0
    %2553 = vmatprep.subr.bf16.mxu0 0
    %2554 = vmatpush1.bf16.msra.mxu0 0
    %2555 = vmatprep.subr.bf16.mxu0 0
    %2556 = vmatpush1.bf16.msra.mxu0 0
    %2557 = vmatprep.subr.bf16.mxu0 0
    %2558 = vmatpush1.bf16.msra.mxu0 0
    %2559 = vmatprep.subr.bf16.mxu0 0
    %2560 = vmatpush1.bf16.msra.mxu0 0
    %2561 = vmatprep.subr.bf16.mxu0 0
    %2562 = vmatpush1.bf16.msra.mxu0 0
    %2563 = vmatprep.subr.bf16.mxu0 0
    %2564 = vmatpush1.bf16.msra.mxu0 0
    %2565 = vmatprep.subr.bf16.mxu0 0
    %2566 = vmatpush1.bf16.msra.mxu0 0
    %2567 = vmatprep.mubr.bf16.mxu0 0
    %2568 = vmatmul.mubr.bf16.gmra.mrb[0].mxu0 %v2463
    %v2569 = vpop.f32.mrb[0].mxu0
    %v2570 = vadd.f32 %v2485, %v2569
    %v2571 = vpop.f32.mrb[0].mxu0
    %v2572 = vpop.f32.mrb[0].mxu0
    %v2573 = vpop.f32.mrb[0].mxu0
    %2574 = vdwg.mxu0
    %2575 = vst [vmem:[#allocation2] sm:$0x3] %v2570
    // Predicated region
    $region30: #{forward.5} parent=1 // pred_check
      _
    $region31: #{forward.5} parent=1 // pred_check_branch
      %2577 = sbr.rel (0) target = $region33
    $region32: #{forward.5} parent=1 // pred_region
      %s2579 = ssub.s32 32, 32
      %2580 = vsyncadd [#allocation3], %s2579
      %s2582 = sshll.u32 [#allocation2], 4
      %s2583 = int_to_ptr.vmem [resolvable:$true] %s2582
      %2585 = dma.vmem_to_hbm [thread:$0]  %s2583, 32, %s7, [#allocation3]
    $region33: #{forward.5} parent=1 // pred_fallthru
      _
    // Predicated region
    $region34: #{forward.5} parent=1 // pred_check
      _
    $region35: #{forward.5} parent=1 // pred_check_branch
      %2587 = sbr.rel (0) target = $region37
    $region36: #{forward.5} parent=1 // pred_region
      %2588 = dma.done [#allocation3], 32
    $region37: #{forward.5} parent=1 // pred_fallthru
      _
    %2589 = vsyncpa [#allocation3], 1

</llo_original>
